<compile_context>
chip_gen: v6e
topology: v6e:2x2x1
jax: 0.10.0
libtpu: 0.0.40
codegen_flags: <defaults>
</compile_context>

<pallas_src>
import functools
import math

import jax
import jax.numpy as jnp
from jax.experimental import pallas as pl
from jax.experimental.pallas import tpu as pltpu


# Row layout of the packed per-layer (10, D) parameter block.
_R_B_CA_Q = 0     # cross-attn q in-proj bias
_R_B_SA_OUT = 1   # self-attn out-proj bias
_R_B_CA_OUT = 2   # cross-attn out-proj bias
_R_B_FF2 = 3      # second feed-forward bias
_R_LN1_G, _R_LN1_B = 4, 5
_R_LN2_G, _R_LN2_B = 6, 7
_R_LN3_G, _R_LN3_B = 8, 9


def decoder_stack_kernel(x_ref, mem_ref,
                         w_sa_in_ref, w_sa_out_ref, w_ca_q_ref, w_ca_kv_ref,
                         w_ca_out_ref, w_ff1_ref, w_ff2_ref,
                         b_sa_in_ref, b_ca_kv_ref, b_ff1_ref, rows_ref,
                         out_ref, *, num_heads, num_layers):
    _, S, D = x_ref.shape
    M = mem_ref.shape[1]
    H = num_heads
    Dh = D // H
    scale = 1.0 / math.sqrt(Dh)

    x = x_ref[0]          # (S, D) float32 residual stream (this batch element)
    mem = mem_ref[0]      # (M, D) float32 encoder memory (this batch element)

    # Causal additive mask built in-kernel (no HBM traffic / VMEM residency).
    row_i = jax.lax.broadcasted_iota(jnp.int32, (S, S), 0)
    col_i = jax.lax.broadcasted_iota(jnp.int32, (S, S), 1)
    causal = jnp.where(col_i <= row_i, 0.0, -1e30).astype(jnp.float32)

    def mm(a, w_bf16):
        # (N, K) @ (K, P): weights pre-transposed host-side to (in, out),
        # bf16 on the MXU with f32 accumulation.
        return jnp.dot(a.astype(jnp.bfloat16), w_bf16,
                       preferred_element_type=jnp.float32)

    def layer_norm(v, g, b):
        # Fused statistics: var = E[x^2] - mu^2 (2 reductions instead of 3).
        mu = jnp.mean(v, axis=-1, keepdims=True)
        var = jnp.mean(v * v, axis=-1, keepdims=True) - mu * mu
        return (v - mu) * jax.lax.rsqrt(var + 1e-5) * g + b

    def q_heads(q):
        # (N, D) -> (H, N, Dh): H lane slices + one leading-axis stack.
        return jnp.stack([q[:, h * Dh:(h + 1) * Dh] for h in range(H)],
                         axis=0).astype(jnp.bfloat16)

    def kv_heads(t_T):
        # (Dsub, N) feature-major -> (H, Dh, N): leading-dim split only.
        return t_T.reshape(H, Dh, t_T.shape[-1]).astype(jnp.bfloat16)

    def attention(qh, kT, vT, mask):
        # qh: (H, N, Dh) bf16; kT/vT: (H, Dh, M) bf16; mask: (N, M) f32 or None.
        n = qh.shape[1]
        # scores 'hnd,hdm->hnm' (standard batched matmul on the MXU)
        s = jax.lax.dot_general(qh, kT, (((2,), (1,)), ((0,), (0,))),
                                preferred_element_type=jnp.float32)
        s = s * scale
        if mask is not None:
            s = s + mask[None, :, :]
        smax = jnp.max(s, axis=-1, keepdims=True)
        p = jnp.exp(s - smax)
        p = p * pl.reciprocal(jnp.sum(p, axis=-1, keepdims=True), approx=True)
        # output, head-transposed: 'hdm,hnm->hdn'
        oT = jax.lax.dot_general(vT, p.astype(jnp.bfloat16),
                                 (((2,), (2,)), ((0,), (0,))),
                                 preferred_element_type=jnp.float32)  # (H,Dh,N)
        return jnp.transpose(oT.reshape(D, n))                        # (N, D)

    # Layer loop unrolled in-kernel; all weights stay resident in VMEM.
    for l in range(num_layers):
        rows = rows_ref[l]                                   # (10, D)

        # ---------------- self-attention + residual + LN1 ----------------
        qkv = mm(x, w_sa_in_ref[l]) + b_sa_in_ref[l]         # (S, 3D)
        qkvT = jnp.transpose(qkv)                            # (3D, S)
        sa = attention(q_heads(qkv[:, 0:D]),
                       kv_heads(qkvT[D:2 * D, :]),
                       kv_heads(qkvT[2 * D:3 * D, :]),
                       causal)
        sa = mm(sa, w_sa_out_ref[l]) + rows[_R_B_SA_OUT:_R_B_SA_OUT + 1]
        x = layer_norm(x + sa, rows[_R_LN1_G:_R_LN1_G + 1],
                       rows[_R_LN1_B:_R_LN1_B + 1])

        # ---------------- cross-attention + residual + LN2 ----------------
        qc = mm(x, w_ca_q_ref[l]) + rows[_R_B_CA_Q:_R_B_CA_Q + 1]       # (S, D)
        kvT = jnp.transpose(mm(mem, w_ca_kv_ref[l]) + b_ca_kv_ref[l])   # (2D, M)
        ca = attention(q_heads(qc),
                       kv_heads(kvT[0:D, :]),
                       kv_heads(kvT[D:2 * D, :]),
                       None)
        ca = mm(ca, w_ca_out_ref[l]) + rows[_R_B_CA_OUT:_R_B_CA_OUT + 1]
        x = layer_norm(x + ca, rows[_R_LN2_G:_R_LN2_G + 1],
                       rows[_R_LN2_B:_R_LN2_B + 1])

        # ------------- feed-forward (ReLU, dim_ff = vocab) + LN3 -------------
        h = jnp.maximum(mm(x, w_ff1_ref[l]) + b_ff1_ref[l], 0.0)        # (S, F)
        ff = mm(h, w_ff2_ref[l]) + rows[_R_B_FF2:_R_B_FF2 + 1]
        x = layer_norm(x + ff, rows[_R_LN3_G:_R_LN3_G + 1],
                       rows[_R_LN3_B:_R_LN3_B + 1])

    out_ref[0] = x.astype(out_ref.dtype)


def run_decoder_stack(x, memory, stacked, num_heads):
    B, S, D = x.shape
    M = memory.shape[1]
    L = stacked[0].shape[0]

    def resident(arr):
        # Whole array resident in VMEM; same block for every grid step.
        return pl.BlockSpec(arr.shape, lambda b, _n=arr.ndim: (0,) * _n)

    in_specs = ([pl.BlockSpec((1, S, D), lambda b: (b, 0, 0)),
                 pl.BlockSpec((1, M, D), lambda b: (b, 0, 0))]
                + [resident(a) for a in stacked])
    out_spec = pl.BlockSpec((1, S, D), lambda b: (b, 0, 0))

    kern = functools.partial(decoder_stack_kernel,
                             num_heads=num_heads, num_layers=L)
    return pl.pallas_call(
        kern,
        out_shape=jax.ShapeDtypeStruct((B, S, D), jnp.float32),
        grid_spec=pltpu.PrefetchScalarGridSpec(
            num_scalar_prefetch=0,
            grid=(B,),
            in_specs=in_specs,
            out_specs=out_spec),
        compiler_params=pltpu.CompilerParams(
            dimension_semantics=("parallel",)),
    )(x, memory, *stacked)


def sinusoidal_pos_encoding(seq_len, d_model):
    position = jnp.arange(seq_len, dtype=jnp.float32)[:, None]
    div_term = jnp.exp(jnp.arange(0, d_model, 2, dtype=jnp.float32)
                       * (-math.log(10000.0) / d_model))
    pe = jnp.zeros((seq_len, d_model), jnp.float32)
    pe = pe.at[:, 0::2].set(jnp.sin(position * div_term))
    pe = pe.at[:, 1::2].set(jnp.cos(position * div_term))
    return pe[None]                                   # (1, S, D)


def init_layer_params(key, embed_dim, dim_feedforward):
    D, F = embed_dim, dim_feedforward
    ks = jax.random.split(key, 12)
    s = 0.02
    n = lambda k, shape: jax.random.normal(k, shape, jnp.float32) * s
    return dict(
        w_sa_in=n(ks[0], (3 * D, D)),  b_sa_in=n(ks[1], (3 * D,)),
        w_sa_out=n(ks[2], (D, D)),     b_sa_out=n(ks[3], (D,)),
        w_ca_in=n(ks[4], (3 * D, D)),  b_ca_in=n(ks[5], (3 * D,)),
        w_ca_out=n(ks[6], (D, D)),     b_ca_out=n(ks[7], (D,)),
        w_ff1=n(ks[8], (F, D)),        b_ff1=n(ks[9], (F,)),
        w_ff2=n(ks[10], (D, F)),       b_ff2=n(ks[11], (D,)),
        # rows: g1, b1, g2, b2, g3, b3
        ln=jnp.concatenate([jnp.ones((1, D), jnp.float32),
                            jnp.zeros((1, D), jnp.float32)] * 3, axis=0),
    )


def stack_layer_params(layers):
    D = layers[0]['w_sa_out'].shape[0]
    bf16, f32 = jnp.bfloat16, jnp.float32

    def st(fn, dtype):
        return jnp.stack([fn(p) for p in layers], axis=0).astype(dtype)

    # Weights pre-transposed to (in, out) so the kernel does plain a @ w.
    w_sa_in = st(lambda p: p['w_sa_in'].T, bf16)               # (L, D, 3D)
    w_sa_out = st(lambda p: p['w_sa_out'].T, bf16)             # (L, D, D)
    w_ca_q = st(lambda p: p['w_ca_in'][0:D, :].T, bf16)        # (L, D, D)
    w_ca_kv = st(lambda p: p['w_ca_in'][D:, :].T, bf16)        # (L, D, 2D)
    w_ca_out = st(lambda p: p['w_ca_out'].T, bf16)             # (L, D, D)
    w_ff1 = st(lambda p: p['w_ff1'].T, bf16)                   # (L, D, F)
    w_ff2 = st(lambda p: p['w_ff2'].T, bf16)                   # (L, F, D)
    b_sa_in = st(lambda p: p['b_sa_in'][None, :], f32)         # (L, 1, 3D)
    b_ca_kv = st(lambda p: p['b_ca_in'][D:][None, :], f32)     # (L, 1, 2D)
    b_ff1 = st(lambda p: p['b_ff1'][None, :], f32)             # (L, 1, F)
    rows = st(lambda p: jnp.stack(
        [p['b_ca_in'][0:D], p['b_sa_out'], p['b_ca_out'], p['b_ff2'],
         p['ln'][0], p['ln'][1], p['ln'][2], p['ln'][3], p['ln'][4], p['ln'][5]],
        axis=0), f32)                                          # (L, 10, D)
    return (w_sa_in, w_sa_out, w_ca_q, w_ca_kv, w_ca_out, w_ff1, w_ff2,
            b_sa_in, b_ca_kv, b_ff1, rows)


def decoder_forward(tgt_ids, memory, emb_table, stacked_params, num_heads):
    B, S = tgt_ids.shape
    D = emb_table.shape[1]
    # Glue (plain JAX): embedding gather * sqrt(d_model) + positional encoding,
    # matching `self.embedding(tgt) * sqrt(embed_dim) + pos`.
    x = emb_table[tgt_ids] * math.sqrt(D)
    x = (x + sinusoidal_pos_encoding(S, D)).astype(jnp.float32)
    memory = memory.astype(jnp.float32)
    # TODO(synk): dropout layers are identity (inference-mode semantics).
    return run_decoder_stack(x, memory, stacked_params, num_heads)


if __name__ == "__main__":
    embed_dim, num_heads, num_layers_dec = 32, 4, 2
    vocab_size = 64            # also dim_feedforward, per the module
    B, S, M = 2, 8, 8

    key = jax.random.PRNGKey(0)
    k_emb, k_tok, k_mem, k_layers = jax.random.split(key, 4)

    emb_table = (jax.random.normal(k_emb, (vocab_size, embed_dim), jnp.float32)
                 * 0.02)
    tgt_ids = jax.random.randint(k_tok, (B, S), 0, vocab_size)
    memory = jax.random.normal(k_mem, (B, M, embed_dim), jnp.float32)

    layer_list = [init_layer_params(lk, embed_dim, vocab_size)
                  for lk in jax.random.split(k_layers, num_layers_dec)]
    stacked_params = stack_layer_params(layer_list)

    out = decoder_forward(tgt_ids, memory, emb_table, stacked_params, num_heads)
    out = jax.block_until_ready(out)
    assert out.shape == (B, S, embed_dim)
    assert bool(jnp.all(jnp.isfinite(out)))
    print("KERNEL_OK")
</pallas_src>

<mosaic_0001>
module attributes {stable_mosaic.version = 11 : i64} {
  func.func @decoder_stack_kernel(%arg0: i32, %arg1: memref<1x8x32xf32, #tpu.memory_space<vmem>>, %arg2: memref<1x8x32xf32, #tpu.memory_space<vmem>>, %arg3: memref<2x32x96xbf16, #tpu.memory_space<vmem>>, %arg4: memref<2x32x32xbf16, #tpu.memory_space<vmem>>, %arg5: memref<2x32x32xbf16, #tpu.memory_space<vmem>>, %arg6: memref<2x32x64xbf16, #tpu.memory_space<vmem>>, %arg7: memref<2x32x32xbf16, #tpu.memory_space<vmem>>, %arg8: memref<2x32x64xbf16, #tpu.memory_space<vmem>>, %arg9: memref<2x64x32xbf16, #tpu.memory_space<vmem>>, %arg10: memref<2x1x96xf32, #tpu.memory_space<vmem>>, %arg11: memref<2x1x64xf32, #tpu.memory_space<vmem>>, %arg12: memref<2x1x64xf32, #tpu.memory_space<vmem>>, %arg13: memref<2x10x32xf32, #tpu.memory_space<vmem>>, %arg14: memref<1x8x32xf32, #tpu.memory_space<vmem>>) attributes {dimension_semantics = [#tpu.dimension_semantics<parallel>], iteration_bounds = array<i64: 2>, scalar_prefetch = 0 : i64, scratch_operands = 0 : i64, tpu.core_type = #tpu.core_type<tc>, window_params = [{transform_indices = @transform_0, window_bounds = array<i64: 1, 8, 32>}, {transform_indices = @transform_1, window_bounds = array<i64: 1, 8, 32>}, {pipeline_mode = #tpu.pipeline_mode<synchronous>, transform_indices = @transform_2, window_bounds = array<i64: 2, 32, 96>}, {pipeline_mode = #tpu.pipeline_mode<synchronous>, transform_indices = @transform_3, window_bounds = array<i64: 2, 32, 32>}, {pipeline_mode = #tpu.pipeline_mode<synchronous>, transform_indices = @transform_4, window_bounds = array<i64: 2, 32, 32>}, {pipeline_mode = #tpu.pipeline_mode<synchronous>, transform_indices = @transform_5, window_bounds = array<i64: 2, 32, 64>}, {pipeline_mode = #tpu.pipeline_mode<synchronous>, transform_indices = @transform_6, window_bounds = array<i64: 2, 32, 32>}, {pipeline_mode = #tpu.pipeline_mode<synchronous>, transform_indices = @transform_7, window_bounds = array<i64: 2, 32, 64>}, {pipeline_mode = #tpu.pipeline_mode<synchronous>, transform_indices = @transform_8, window_bounds = array<i64: 2, 64, 32>}, {pipeline_mode = #tpu.pipeline_mode<synchronous>, transform_indices = @transform_9, window_bounds = array<i64: 2, 1, 96>}, {pipeline_mode = #tpu.pipeline_mode<synchronous>, transform_indices = @transform_10, window_bounds = array<i64: 2, 1, 64>}, {pipeline_mode = #tpu.pipeline_mode<synchronous>, transform_indices = @transform_11, window_bounds = array<i64: 2, 1, 64>}, {pipeline_mode = #tpu.pipeline_mode<synchronous>, transform_indices = @transform_12, window_bounds = array<i64: 2, 10, 32>}, {transform_indices = @transform_13, window_bounds = array<i64: 1, 8, 32>}]} {
    %c0 = arith.constant 0 : index
    %c0_0 = arith.constant 0 : index
    %c0_1 = arith.constant 0 : index
    %0 = vector.load %arg1[%c0, %c0_0, %c0_1] : memref<1x8x32xf32, #tpu.memory_space<vmem>>, vector<1x8x32xf32>
    %1 = vector.shape_cast %0 : vector<1x8x32xf32> to vector<8x32xf32>
    %c0_2 = arith.constant 0 : index
    %c0_3 = arith.constant 0 : index
    %c0_4 = arith.constant 0 : index
    %2 = vector.load %arg2[%c0_2, %c0_3, %c0_4] : memref<1x8x32xf32, #tpu.memory_space<vmem>>, vector<1x8x32xf32>
    %3 = vector.shape_cast %2 : vector<1x8x32xf32> to vector<8x32xf32>
    %4 = tpu.iota {dimensions = array<i32: 0>} : vector<8x8xi32>
    %5 = tpu.iota {dimensions = array<i32: 1>} : vector<8x8xi32>
    %6 = arith.cmpi sle, %5, %4 : vector<8x8xi32>
    %cst = arith.constant 0.000000e+00 : f32
    %cst_5 = arith.constant -1.000000e+30 : f32
    %7 = vector.broadcast %cst : f32 to vector<8x8xf32>
    %8 = vector.broadcast %cst_5 : f32 to vector<8x8xf32>
    %9 = arith.select %6, %7, %8 : vector<8x8xi1>, vector<8x8xf32>
    %c0_6 = arith.constant 0 : index
    %c0_7 = arith.constant 0 : index
    %c0_8 = arith.constant 0 : index
    %10 = vector.load %arg13[%c0_6, %c0_7, %c0_8] : memref<2x10x32xf32, #tpu.memory_space<vmem>>, vector<1x10x32xf32>
    %11 = vector.shape_cast %10 : vector<1x10x32xf32> to vector<10x32xf32>
    %c0_9 = arith.constant 0 : index
    %c0_10 = arith.constant 0 : index
    %c0_11 = arith.constant 0 : index
    %12 = vector.load %arg3[%c0_9, %c0_10, %c0_11] : memref<2x32x96xbf16, #tpu.memory_space<vmem>>, vector<1x32x96xbf16>
    %13 = vector.shape_cast %12 : vector<1x32x96xbf16> to vector<32x96xbf16>
    %14 = arith.truncf %1 : vector<8x32xf32> to vector<8x32xbf16>
    %cst_12 = arith.constant dense<0.000000e+00> : vector<8x96xf32>
    %15 = tpu.matmul %14, %13, %cst_12 {dimension_numbers = #tpu.dot_dimension_numbers<[1], [0], [0], [1], [0, 0, 1, 1], [], []>} : vector<8x32xbf16>, vector<32x96xbf16>, vector<8x96xf32> -> vector<8x96xf32>
    %c0_13 = arith.constant 0 : index
    %c0_14 = arith.constant 0 : index
    %c0_15 = arith.constant 0 : index
    %16 = vector.load %arg10[%c0_13, %c0_14, %c0_15] : memref<2x1x96xf32, #tpu.memory_space<vmem>>, vector<1x1x96xf32>
    %17 = vector.shape_cast %16 : vector<1x1x96xf32> to vector<1x96xf32>
    %18 = vector.broadcast %17 : vector<1x96xf32> to vector<8x96xf32>
    %19 = arith.addf %15, %18 : vector<8x96xf32>
    %20 = tpu.transpose %19, [1, 0] : vector<8x96xf32> -> vector<96x8xf32>
    %21 = vector.extract_strided_slice %19 {offsets = [0, 0], sizes = [8, 32], strides = [1, 1]} : vector<8x96xf32> to vector<8x32xf32>
    %22 = vector.extract_strided_slice %21 {offsets = [0, 0], sizes = [8, 8], strides = [1, 1]} : vector<8x32xf32> to vector<8x8xf32>
    %23 = vector.extract_strided_slice %21 {offsets = [0, 8], sizes = [8, 8], strides = [1, 1]} : vector<8x32xf32> to vector<8x8xf32>
    %24 = vector.extract_strided_slice %21 {offsets = [0, 16], sizes = [8, 8], strides = [1, 1]} : vector<8x32xf32> to vector<8x8xf32>
    %25 = vector.extract_strided_slice %21 {offsets = [0, 24], sizes = [8, 8], strides = [1, 1]} : vector<8x32xf32> to vector<8x8xf32>
    %26 = vector.shape_cast %22 : vector<8x8xf32> to vector<1x8x8xf32>
    %27 = vector.shape_cast %23 : vector<8x8xf32> to vector<1x8x8xf32>
    %28 = vector.shape_cast %24 : vector<8x8xf32> to vector<1x8x8xf32>
    %29 = vector.shape_cast %25 : vector<8x8xf32> to vector<1x8x8xf32>
    %30 = tpu.concatenate %26, %27, %28, %29 in 0 : vector<1x8x8xf32>, vector<1x8x8xf32>, vector<1x8x8xf32>, vector<1x8x8xf32> -> vector<4x8x8xf32>
    %31 = arith.truncf %30 : vector<4x8x8xf32> to vector<4x8x8xbf16>
    %32 = vector.extract_strided_slice %20 {offsets = [32, 0], sizes = [32, 8], strides = [1, 1]} : vector<96x8xf32> to vector<32x8xf32>
    %33 = vector.shape_cast %32 : vector<32x8xf32> to vector<4x8x8xf32>
    %34 = arith.truncf %33 : vector<4x8x8xf32> to vector<4x8x8xbf16>
    %35 = vector.extract_strided_slice %20 {offsets = [64, 0], sizes = [32, 8], strides = [1, 1]} : vector<96x8xf32> to vector<32x8xf32>
    %36 = vector.shape_cast %35 : vector<32x8xf32> to vector<4x8x8xf32>
    %37 = arith.truncf %36 : vector<4x8x8xf32> to vector<4x8x8xbf16>
    %cst_16 = arith.constant dense<0.000000e+00> : vector<4x8x8xf32>
    %38 = tpu.matmul %31, %34, %cst_16 {dimension_numbers = #tpu.dot_dimension_numbers<[2], [1], [1], [2], [0, 0, 0, 1, 1, 2], [0], [0]>} : vector<4x8x8xbf16>, vector<4x8x8xbf16>, vector<4x8x8xf32> -> vector<4x8x8xf32>
    %cst_17 = arith.constant 0.353553385 : f32
    %39 = vector.broadcast %cst_17 : f32 to vector<4x8x8xf32>
    %40 = arith.mulf %38, %39 : vector<4x8x8xf32>
    %41 = vector.shape_cast %9 : vector<8x8xf32> to vector<1x8x8xf32>
    %42 = vector.broadcast %41 : vector<1x8x8xf32> to vector<4x8x8xf32>
    %43 = arith.addf %40, %42 : vector<4x8x8xf32>
    %cst_18 = arith.constant dense<0xFF800000> : vector<4x8xf32>
    %44 = vector.multi_reduction <maximumf>, %43, %cst_18 [2] : vector<4x8x8xf32> to vector<4x8xf32>
    %45 = vector.shape_cast %44 : vector<4x8xf32> to vector<4x8x1xf32>
    %46 = vector.broadcast %45 : vector<4x8x1xf32> to vector<4x8x8xf32>
    %47 = arith.subf %43, %46 : vector<4x8x8xf32>
    %48 = math.exp %47 : vector<4x8x8xf32>
    %cst_19 = arith.constant dense<0.000000e+00> : vector<4x8xf32>
    %49 = vector.multi_reduction <add>, %48, %cst_19 [2] : vector<4x8x8xf32> to vector<4x8xf32>
    %50 = vector.shape_cast %49 : vector<4x8xf32> to vector<4x8x1xf32>
    %51 = tpu.reciprocal %50 {approx = true} : vector<4x8x1xf32> -> vector<4x8x1xf32>
    %52 = vector.broadcast %51 : vector<4x8x1xf32> to vector<4x8x8xf32>
    %53 = arith.mulf %48, %52 : vector<4x8x8xf32>
    %54 = arith.truncf %53 : vector<4x8x8xf32> to vector<4x8x8xbf16>
    %cst_20 = arith.constant dense<0.000000e+00> : vector<4x8x8xf32>
    %55 = tpu.matmul %37, %54, %cst_20 {dimension_numbers = #tpu.dot_dimension_numbers<[2], [2], [1], [1], [0, 0, 0, 1, 1, 1], [0], [0]>} : vector<4x8x8xbf16>, vector<4x8x8xbf16>, vector<4x8x8xf32> -> vector<4x8x8xf32>
    %56 = vector.shape_cast %55 : vector<4x8x8xf32> to vector<32x8xf32>
    %57 = tpu.transpose %56, [1, 0] : vector<32x8xf32> -> vector<8x32xf32>
    %c0_21 = arith.constant 0 : index
    %c0_22 = arith.constant 0 : index
    %c0_23 = arith.constant 0 : index
    %58 = vector.load %arg4[%c0_21, %c0_22, %c0_23] : memref<2x32x32xbf16, #tpu.memory_space<vmem>>, vector<1x32x32xbf16>
    %59 = vector.shape_cast %58 : vector<1x32x32xbf16> to vector<32x32xbf16>
    %60 = arith.truncf %57 : vector<8x32xf32> to vector<8x32xbf16>
    %cst_24 = arith.constant dense<0.000000e+00> : vector<8x32xf32>
    %61 = tpu.matmul %60, %59, %cst_24 {dimension_numbers = #tpu.dot_dimension_numbers<[1], [0], [0], [1], [0, 0, 1, 1], [], []>} : vector<8x32xbf16>, vector<32x32xbf16>, vector<8x32xf32> -> vector<8x32xf32>
    %62 = vector.extract_strided_slice %11 {offsets = [1, 0], sizes = [1, 32], strides = [1, 1]} : vector<10x32xf32> to vector<1x32xf32>
    %63 = vector.broadcast %62 : vector<1x32xf32> to vector<8x32xf32>
    %64 = arith.addf %61, %63 : vector<8x32xf32>
    %65 = arith.addf %1, %64 : vector<8x32xf32>
    %66 = vector.extract_strided_slice %11 {offsets = [4, 0], sizes = [1, 32], strides = [1, 1]} : vector<10x32xf32> to vector<1x32xf32>
    %67 = vector.extract_strided_slice %11 {offsets = [5, 0], sizes = [1, 32], strides = [1, 1]} : vector<10x32xf32> to vector<1x32xf32>
    %cst_25 = arith.constant dense<0.000000e+00> : vector<8xf32>
    %68 = vector.multi_reduction <add>, %65, %cst_25 [1] : vector<8x32xf32> to vector<8xf32>
    %69 = vector.shape_cast %68 : vector<8xf32> to vector<8x1xf32>
    %cst_26 = arith.constant 3.200000e+01 : f32
    %70 = vector.broadcast %cst_26 : f32 to vector<8x1xf32>
    %71 = arith.divf %69, %70 : vector<8x1xf32>
    %72 = arith.mulf %65, %65 : vector<8x32xf32>
    %cst_27 = arith.constant dense<0.000000e+00> : vector<8xf32>
    %73 = vector.multi_reduction <add>, %72, %cst_27 [1] : vector<8x32xf32> to vector<8xf32>
    %74 = vector.shape_cast %73 : vector<8xf32> to vector<8x1xf32>
    %cst_28 = arith.constant 3.200000e+01 : f32
    %75 = vector.broadcast %cst_28 : f32 to vector<8x1xf32>
    %76 = arith.divf %74, %75 : vector<8x1xf32>
    %77 = arith.mulf %71, %71 : vector<8x1xf32>
    %78 = arith.subf %76, %77 : vector<8x1xf32>
    %79 = vector.broadcast %71 : vector<8x1xf32> to vector<8x32xf32>
    %80 = arith.subf %65, %79 : vector<8x32xf32>
    %cst_29 = arith.constant 9.99999974E-6 : f32
    %81 = vector.broadcast %cst_29 : f32 to vector<8x1xf32>
    %82 = arith.addf %78, %81 : vector<8x1xf32>
    %83 = math.rsqrt %82 : vector<8x1xf32>
    %84 = vector.broadcast %83 : vector<8x1xf32> to vector<8x32xf32>
    %85 = arith.mulf %80, %84 : vector<8x32xf32>
    %86 = vector.broadcast %66 : vector<1x32xf32> to vector<8x32xf32>
    %87 = arith.mulf %85, %86 : vector<8x32xf32>
    %88 = vector.broadcast %67 : vector<1x32xf32> to vector<8x32xf32>
    %89 = arith.addf %87, %88 : vector<8x32xf32>
    %c0_30 = arith.constant 0 : index
    %c0_31 = arith.constant 0 : index
    %c0_32 = arith.constant 0 : index
    %90 = vector.load %arg5[%c0_30, %c0_31, %c0_32] : memref<2x32x32xbf16, #tpu.memory_space<vmem>>, vector<1x32x32xbf16>
    %91 = vector.shape_cast %90 : vector<1x32x32xbf16> to vector<32x32xbf16>
    %92 = arith.truncf %89 : vector<8x32xf32> to vector<8x32xbf16>
    %cst_33 = arith.constant dense<0.000000e+00> : vector<8x32xf32>
    %93 = tpu.matmul %92, %91, %cst_33 {dimension_numbers = #tpu.dot_dimension_numbers<[1], [0], [0], [1], [0, 0, 1, 1], [], []>} : vector<8x32xbf16>, vector<32x32xbf16>, vector<8x32xf32> -> vector<8x32xf32>
    %94 = vector.extract_strided_slice %11 {offsets = [0, 0], sizes = [1, 32], strides = [1, 1]} : vector<10x32xf32> to vector<1x32xf32>
    %95 = vector.broadcast %94 : vector<1x32xf32> to vector<8x32xf32>
    %96 = arith.addf %93, %95 : vector<8x32xf32>
    %c0_34 = arith.constant 0 : index
    %c0_35 = arith.constant 0 : index
    %c0_36 = arith.constant 0 : index
    %97 = vector.load %arg6[%c0_34, %c0_35, %c0_36] : memref<2x32x64xbf16, #tpu.memory_space<vmem>>, vector<1x32x64xbf16>
    %98 = vector.shape_cast %97 : vector<1x32x64xbf16> to vector<32x64xbf16>
    %99 = arith.truncf %3 : vector<8x32xf32> to vector<8x32xbf16>
    %cst_37 = arith.constant dense<0.000000e+00> : vector<8x64xf32>
    %100 = tpu.matmul %99, %98, %cst_37 {dimension_numbers = #tpu.dot_dimension_numbers<[1], [0], [0], [1], [0, 0, 1, 1], [], []>} : vector<8x32xbf16>, vector<32x64xbf16>, vector<8x64xf32> -> vector<8x64xf32>
    %c0_38 = arith.constant 0 : index
    %c0_39 = arith.constant 0 : index
    %c0_40 = arith.constant 0 : index
    %101 = vector.load %arg11[%c0_38, %c0_39, %c0_40] : memref<2x1x64xf32, #tpu.memory_space<vmem>>, vector<1x1x64xf32>
    %102 = vector.shape_cast %101 : vector<1x1x64xf32> to vector<1x64xf32>
    %103 = vector.broadcast %102 : vector<1x64xf32> to vector<8x64xf32>
    %104 = arith.addf %100, %103 : vector<8x64xf32>
    %105 = tpu.transpose %104, [1, 0] : vector<8x64xf32> -> vector<64x8xf32>
    %106 = vector.extract_strided_slice %96 {offsets = [0, 0], sizes = [8, 8], strides = [1, 1]} : vector<8x32xf32> to vector<8x8xf32>
    %107 = vector.extract_strided_slice %96 {offsets = [0, 8], sizes = [8, 8], strides = [1, 1]} : vector<8x32xf32> to vector<8x8xf32>
    %108 = vector.extract_strided_slice %96 {offsets = [0, 16], sizes = [8, 8], strides = [1, 1]} : vector<8x32xf32> to vector<8x8xf32>
    %109 = vector.extract_strided_slice %96 {offsets = [0, 24], sizes = [8, 8], strides = [1, 1]} : vector<8x32xf32> to vector<8x8xf32>
    %110 = vector.shape_cast %106 : vector<8x8xf32> to vector<1x8x8xf32>
    %111 = vector.shape_cast %107 : vector<8x8xf32> to vector<1x8x8xf32>
    %112 = vector.shape_cast %108 : vector<8x8xf32> to vector<1x8x8xf32>
    %113 = vector.shape_cast %109 : vector<8x8xf32> to vector<1x8x8xf32>
    %114 = tpu.concatenate %110, %111, %112, %113 in 0 : vector<1x8x8xf32>, vector<1x8x8xf32>, vector<1x8x8xf32>, vector<1x8x8xf32> -> vector<4x8x8xf32>
    %115 = arith.truncf %114 : vector<4x8x8xf32> to vector<4x8x8xbf16>
    %116 = vector.extract_strided_slice %105 {offsets = [0, 0], sizes = [32, 8], strides = [1, 1]} : vector<64x8xf32> to vector<32x8xf32>
    %117 = vector.shape_cast %116 : vector<32x8xf32> to vector<4x8x8xf32>
    %118 = arith.truncf %117 : vector<4x8x8xf32> to vector<4x8x8xbf16>
    %119 = vector.extract_strided_slice %105 {offsets = [32, 0], sizes = [32, 8], strides = [1, 1]} : vector<64x8xf32> to vector<32x8xf32>
    %120 = vector.shape_cast %119 : vector<32x8xf32> to vector<4x8x8xf32>
    %121 = arith.truncf %120 : vector<4x8x8xf32> to vector<4x8x8xbf16>
    %cst_41 = arith.constant dense<0.000000e+00> : vector<4x8x8xf32>
    %122 = tpu.matmul %115, %118, %cst_41 {dimension_numbers = #tpu.dot_dimension_numbers<[2], [1], [1], [2], [0, 0, 0, 1, 1, 2], [0], [0]>} : vector<4x8x8xbf16>, vector<4x8x8xbf16>, vector<4x8x8xf32> -> vector<4x8x8xf32>
    %cst_42 = arith.constant 0.353553385 : f32
    %123 = vector.broadcast %cst_42 : f32 to vector<4x8x8xf32>
    %124 = arith.mulf %122, %123 : vector<4x8x8xf32>
    %cst_43 = arith.constant dense<0xFF800000> : vector<4x8xf32>
    %125 = vector.multi_reduction <maximumf>, %124, %cst_43 [2] : vector<4x8x8xf32> to vector<4x8xf32>
    %126 = vector.shape_cast %125 : vector<4x8xf32> to vector<4x8x1xf32>
    %127 = vector.broadcast %126 : vector<4x8x1xf32> to vector<4x8x8xf32>
    %128 = arith.subf %124, %127 : vector<4x8x8xf32>
    %129 = math.exp %128 : vector<4x8x8xf32>
    %cst_44 = arith.constant dense<0.000000e+00> : vector<4x8xf32>
    %130 = vector.multi_reduction <add>, %129, %cst_44 [2] : vector<4x8x8xf32> to vector<4x8xf32>
    %131 = vector.shape_cast %130 : vector<4x8xf32> to vector<4x8x1xf32>
    %132 = tpu.reciprocal %131 {approx = true} : vector<4x8x1xf32> -> vector<4x8x1xf32>
    %133 = vector.broadcast %132 : vector<4x8x1xf32> to vector<4x8x8xf32>
    %134 = arith.mulf %129, %133 : vector<4x8x8xf32>
    %135 = arith.truncf %134 : vector<4x8x8xf32> to vector<4x8x8xbf16>
    %cst_45 = arith.constant dense<0.000000e+00> : vector<4x8x8xf32>
    %136 = tpu.matmul %121, %135, %cst_45 {dimension_numbers = #tpu.dot_dimension_numbers<[2], [2], [1], [1], [0, 0, 0, 1, 1, 1], [0], [0]>} : vector<4x8x8xbf16>, vector<4x8x8xbf16>, vector<4x8x8xf32> -> vector<4x8x8xf32>
    %137 = vector.shape_cast %136 : vector<4x8x8xf32> to vector<32x8xf32>
    %138 = tpu.transpose %137, [1, 0] : vector<32x8xf32> -> vector<8x32xf32>
    %c0_46 = arith.constant 0 : index
    %c0_47 = arith.constant 0 : index
    %c0_48 = arith.constant 0 : index
    %139 = vector.load %arg7[%c0_46, %c0_47, %c0_48] : memref<2x32x32xbf16, #tpu.memory_space<vmem>>, vector<1x32x32xbf16>
    %140 = vector.shape_cast %139 : vector<1x32x32xbf16> to vector<32x32xbf16>
    %141 = arith.truncf %138 : vector<8x32xf32> to vector<8x32xbf16>
    %cst_49 = arith.constant dense<0.000000e+00> : vector<8x32xf32>
    %142 = tpu.matmul %141, %140, %cst_49 {dimension_numbers = #tpu.dot_dimension_numbers<[1], [0], [0], [1], [0, 0, 1, 1], [], []>} : vector<8x32xbf16>, vector<32x32xbf16>, vector<8x32xf32> -> vector<8x32xf32>
    %143 = vector.extract_strided_slice %11 {offsets = [2, 0], sizes = [1, 32], strides = [1, 1]} : vector<10x32xf32> to vector<1x32xf32>
    %144 = vector.broadcast %143 : vector<1x32xf32> to vector<8x32xf32>
    %145 = arith.addf %142, %144 : vector<8x32xf32>
    %146 = arith.addf %89, %145 : vector<8x32xf32>
    %147 = vector.extract_strided_slice %11 {offsets = [6, 0], sizes = [1, 32], strides = [1, 1]} : vector<10x32xf32> to vector<1x32xf32>
    %148 = vector.extract_strided_slice %11 {offsets = [7, 0], sizes = [1, 32], strides = [1, 1]} : vector<10x32xf32> to vector<1x32xf32>
    %cst_50 = arith.constant dense<0.000000e+00> : vector<8xf32>
    %149 = vector.multi_reduction <add>, %146, %cst_50 [1] : vector<8x32xf32> to vector<8xf32>
    %150 = vector.shape_cast %149 : vector<8xf32> to vector<8x1xf32>
    %cst_51 = arith.constant 3.200000e+01 : f32
    %151 = vector.broadcast %cst_51 : f32 to vector<8x1xf32>
    %152 = arith.divf %150, %151 : vector<8x1xf32>
    %153 = arith.mulf %146, %146 : vector<8x32xf32>
    %cst_52 = arith.constant dense<0.000000e+00> : vector<8xf32>
    %154 = vector.multi_reduction <add>, %153, %cst_52 [1] : vector<8x32xf32> to vector<8xf32>
    %155 = vector.shape_cast %154 : vector<8xf32> to vector<8x1xf32>
    %cst_53 = arith.constant 3.200000e+01 : f32
    %156 = vector.broadcast %cst_53 : f32 to vector<8x1xf32>
    %157 = arith.divf %155, %156 : vector<8x1xf32>
    %158 = arith.mulf %152, %152 : vector<8x1xf32>
    %159 = arith.subf %157, %158 : vector<8x1xf32>
    %160 = vector.broadcast %152 : vector<8x1xf32> to vector<8x32xf32>
    %161 = arith.subf %146, %160 : vector<8x32xf32>
    %cst_54 = arith.constant 9.99999974E-6 : f32
    %162 = vector.broadcast %cst_54 : f32 to vector<8x1xf32>
    %163 = arith.addf %159, %162 : vector<8x1xf32>
    %164 = math.rsqrt %163 : vector<8x1xf32>
    %165 = vector.broadcast %164 : vector<8x1xf32> to vector<8x32xf32>
    %166 = arith.mulf %161, %165 : vector<8x32xf32>
    %167 = vector.broadcast %147 : vector<1x32xf32> to vector<8x32xf32>
    %168 = arith.mulf %166, %167 : vector<8x32xf32>
    %169 = vector.broadcast %148 : vector<1x32xf32> to vector<8x32xf32>
    %170 = arith.addf %168, %169 : vector<8x32xf32>
    %c0_55 = arith.constant 0 : index
    %c0_56 = arith.constant 0 : index
    %c0_57 = arith.constant 0 : index
    %171 = vector.load %arg8[%c0_55, %c0_56, %c0_57] : memref<2x32x64xbf16, #tpu.memory_space<vmem>>, vector<1x32x64xbf16>
    %172 = vector.shape_cast %171 : vector<1x32x64xbf16> to vector<32x64xbf16>
    %173 = arith.truncf %170 : vector<8x32xf32> to vector<8x32xbf16>
    %cst_58 = arith.constant dense<0.000000e+00> : vector<8x64xf32>
    %174 = tpu.matmul %173, %172, %cst_58 {dimension_numbers = #tpu.dot_dimension_numbers<[1], [0], [0], [1], [0, 0, 1, 1], [], []>} : vector<8x32xbf16>, vector<32x64xbf16>, vector<8x64xf32> -> vector<8x64xf32>
    %c0_59 = arith.constant 0 : index
    %c0_60 = arith.constant 0 : index
    %c0_61 = arith.constant 0 : index
    %175 = vector.load %arg12[%c0_59, %c0_60, %c0_61] : memref<2x1x64xf32, #tpu.memory_space<vmem>>, vector<1x1x64xf32>
    %176 = vector.shape_cast %175 : vector<1x1x64xf32> to vector<1x64xf32>
    %177 = vector.broadcast %176 : vector<1x64xf32> to vector<8x64xf32>
    %178 = arith.addf %174, %177 : vector<8x64xf32>
    %cst_62 = arith.constant 0.000000e+00 : f32
    %179 = vector.broadcast %cst_62 : f32 to vector<8x64xf32>
    %180 = arith.maximumf %178, %179 : vector<8x64xf32>
    %c0_63 = arith.constant 0 : index
    %c0_64 = arith.constant 0 : index
    %c0_65 = arith.constant 0 : index
    %181 = vector.load %arg9[%c0_63, %c0_64, %c0_65] : memref<2x64x32xbf16, #tpu.memory_space<vmem>>, vector<1x64x32xbf16>
    %182 = vector.shape_cast %181 : vector<1x64x32xbf16> to vector<64x32xbf16>
    %183 = arith.truncf %180 : vector<8x64xf32> to vector<8x64xbf16>
    %cst_66 = arith.constant dense<0.000000e+00> : vector<8x32xf32>
    %184 = tpu.matmul %183, %182, %cst_66 {dimension_numbers = #tpu.dot_dimension_numbers<[1], [0], [0], [1], [0, 0, 1, 1], [], []>} : vector<8x64xbf16>, vector<64x32xbf16>, vector<8x32xf32> -> vector<8x32xf32>
    %185 = vector.extract_strided_slice %11 {offsets = [3, 0], sizes = [1, 32], strides = [1, 1]} : vector<10x32xf32> to vector<1x32xf32>
    %186 = vector.broadcast %185 : vector<1x32xf32> to vector<8x32xf32>
    %187 = arith.addf %184, %186 : vector<8x32xf32>
    %188 = arith.addf %170, %187 : vector<8x32xf32>
    %189 = vector.extract_strided_slice %11 {offsets = [8, 0], sizes = [1, 32], strides = [1, 1]} : vector<10x32xf32> to vector<1x32xf32>
    %190 = vector.extract_strided_slice %11 {offsets = [9, 0], sizes = [1, 32], strides = [1, 1]} : vector<10x32xf32> to vector<1x32xf32>
    %cst_67 = arith.constant dense<0.000000e+00> : vector<8xf32>
    %191 = vector.multi_reduction <add>, %188, %cst_67 [1] : vector<8x32xf32> to vector<8xf32>
    %192 = vector.shape_cast %191 : vector<8xf32> to vector<8x1xf32>
    %cst_68 = arith.constant 3.200000e+01 : f32
    %193 = vector.broadcast %cst_68 : f32 to vector<8x1xf32>
    %194 = arith.divf %192, %193 : vector<8x1xf32>
    %195 = arith.mulf %188, %188 : vector<8x32xf32>
    %cst_69 = arith.constant dense<0.000000e+00> : vector<8xf32>
    %196 = vector.multi_reduction <add>, %195, %cst_69 [1] : vector<8x32xf32> to vector<8xf32>
    %197 = vector.shape_cast %196 : vector<8xf32> to vector<8x1xf32>
    %cst_70 = arith.constant 3.200000e+01 : f32
    %198 = vector.broadcast %cst_70 : f32 to vector<8x1xf32>
    %199 = arith.divf %197, %198 : vector<8x1xf32>
    %200 = arith.mulf %194, %194 : vector<8x1xf32>
    %201 = arith.subf %199, %200 : vector<8x1xf32>
    %202 = vector.broadcast %194 : vector<8x1xf32> to vector<8x32xf32>
    %203 = arith.subf %188, %202 : vector<8x32xf32>
    %cst_71 = arith.constant 9.99999974E-6 : f32
    %204 = vector.broadcast %cst_71 : f32 to vector<8x1xf32>
    %205 = arith.addf %201, %204 : vector<8x1xf32>
    %206 = math.rsqrt %205 : vector<8x1xf32>
    %207 = vector.broadcast %206 : vector<8x1xf32> to vector<8x32xf32>
    %208 = arith.mulf %203, %207 : vector<8x32xf32>
    %209 = vector.broadcast %189 : vector<1x32xf32> to vector<8x32xf32>
    %210 = arith.mulf %208, %209 : vector<8x32xf32>
    %211 = vector.broadcast %190 : vector<1x32xf32> to vector<8x32xf32>
    %212 = arith.addf %210, %211 : vector<8x32xf32>
    %c1 = arith.constant 1 : index
    %c0_72 = arith.constant 0 : index
    %c0_73 = arith.constant 0 : index
    %213 = vector.load %arg13[%c1, %c0_72, %c0_73] : memref<2x10x32xf32, #tpu.memory_space<vmem>>, vector<1x10x32xf32>
    %214 = vector.shape_cast %213 : vector<1x10x32xf32> to vector<10x32xf32>
    %c1_74 = arith.constant 1 : index
    %c0_75 = arith.constant 0 : index
    %c0_76 = arith.constant 0 : index
    %215 = vector.load %arg3[%c1_74, %c0_75, %c0_76] : memref<2x32x96xbf16, #tpu.memory_space<vmem>>, vector<1x32x96xbf16>
    %216 = vector.shape_cast %215 : vector<1x32x96xbf16> to vector<32x96xbf16>
    %217 = arith.truncf %212 : vector<8x32xf32> to vector<8x32xbf16>
    %cst_77 = arith.constant dense<0.000000e+00> : vector<8x96xf32>
    %218 = tpu.matmul %217, %216, %cst_77 {dimension_numbers = #tpu.dot_dimension_numbers<[1], [0], [0], [1], [0, 0, 1, 1], [], []>} : vector<8x32xbf16>, vector<32x96xbf16>, vector<8x96xf32> -> vector<8x96xf32>
    %c1_78 = arith.constant 1 : index
    %c0_79 = arith.constant 0 : index
    %c0_80 = arith.constant 0 : index
    %219 = vector.load %arg10[%c1_78, %c0_79, %c0_80] : memref<2x1x96xf32, #tpu.memory_space<vmem>>, vector<1x1x96xf32>
    %220 = vector.shape_cast %219 : vector<1x1x96xf32> to vector<1x96xf32>
    %221 = vector.broadcast %220 : vector<1x96xf32> to vector<8x96xf32>
    %222 = arith.addf %218, %221 : vector<8x96xf32>
    %223 = tpu.transpose %222, [1, 0] : vector<8x96xf32> -> vector<96x8xf32>
    %224 = vector.extract_strided_slice %222 {offsets = [0, 0], sizes = [8, 32], strides = [1, 1]} : vector<8x96xf32> to vector<8x32xf32>
    %225 = vector.extract_strided_slice %224 {offsets = [0, 0], sizes = [8, 8], strides = [1, 1]} : vector<8x32xf32> to vector<8x8xf32>
    %226 = vector.extract_strided_slice %224 {offsets = [0, 8], sizes = [8, 8], strides = [1, 1]} : vector<8x32xf32> to vector<8x8xf32>
    %227 = vector.extract_strided_slice %224 {offsets = [0, 16], sizes = [8, 8], strides = [1, 1]} : vector<8x32xf32> to vector<8x8xf32>
    %228 = vector.extract_strided_slice %224 {offsets = [0, 24], sizes = [8, 8], strides = [1, 1]} : vector<8x32xf32> to vector<8x8xf32>
    %229 = vector.shape_cast %225 : vector<8x8xf32> to vector<1x8x8xf32>
    %230 = vector.shape_cast %226 : vector<8x8xf32> to vector<1x8x8xf32>
    %231 = vector.shape_cast %227 : vector<8x8xf32> to vector<1x8x8xf32>
    %232 = vector.shape_cast %228 : vector<8x8xf32> to vector<1x8x8xf32>
    %233 = tpu.concatenate %229, %230, %231, %232 in 0 : vector<1x8x8xf32>, vector<1x8x8xf32>, vector<1x8x8xf32>, vector<1x8x8xf32> -> vector<4x8x8xf32>
    %234 = arith.truncf %233 : vector<4x8x8xf32> to vector<4x8x8xbf16>
    %235 = vector.extract_strided_slice %223 {offsets = [32, 0], sizes = [32, 8], strides = [1, 1]} : vector<96x8xf32> to vector<32x8xf32>
    %236 = vector.shape_cast %235 : vector<32x8xf32> to vector<4x8x8xf32>
    %237 = arith.truncf %236 : vector<4x8x8xf32> to vector<4x8x8xbf16>
    %238 = vector.extract_strided_slice %223 {offsets = [64, 0], sizes = [32, 8], strides = [1, 1]} : vector<96x8xf32> to vector<32x8xf32>
    %239 = vector.shape_cast %238 : vector<32x8xf32> to vector<4x8x8xf32>
    %240 = arith.truncf %239 : vector<4x8x8xf32> to vector<4x8x8xbf16>
    %cst_81 = arith.constant dense<0.000000e+00> : vector<4x8x8xf32>
    %241 = tpu.matmul %234, %237, %cst_81 {dimension_numbers = #tpu.dot_dimension_numbers<[2], [1], [1], [2], [0, 0, 0, 1, 1, 2], [0], [0]>} : vector<4x8x8xbf16>, vector<4x8x8xbf16>, vector<4x8x8xf32> -> vector<4x8x8xf32>
    %cst_82 = arith.constant 0.353553385 : f32
    %242 = vector.broadcast %cst_82 : f32 to vector<4x8x8xf32>
    %243 = arith.mulf %241, %242 : vector<4x8x8xf32>
    %244 = vector.shape_cast %9 : vector<8x8xf32> to vector<1x8x8xf32>
    %245 = vector.broadcast %244 : vector<1x8x8xf32> to vector<4x8x8xf32>
    %246 = arith.addf %243, %245 : vector<4x8x8xf32>
    %cst_83 = arith.constant dense<0xFF800000> : vector<4x8xf32>
    %247 = vector.multi_reduction <maximumf>, %246, %cst_83 [2] : vector<4x8x8xf32> to vector<4x8xf32>
    %248 = vector.shape_cast %247 : vector<4x8xf32> to vector<4x8x1xf32>
    %249 = vector.broadcast %248 : vector<4x8x1xf32> to vector<4x8x8xf32>
    %250 = arith.subf %246, %249 : vector<4x8x8xf32>
    %251 = math.exp %250 : vector<4x8x8xf32>
    %cst_84 = arith.constant dense<0.000000e+00> : vector<4x8xf32>
    %252 = vector.multi_reduction <add>, %251, %cst_84 [2] : vector<4x8x8xf32> to vector<4x8xf32>
    %253 = vector.shape_cast %252 : vector<4x8xf32> to vector<4x8x1xf32>
    %254 = tpu.reciprocal %253 {approx = true} : vector<4x8x1xf32> -> vector<4x8x1xf32>
    %255 = vector.broadcast %254 : vector<4x8x1xf32> to vector<4x8x8xf32>
    %256 = arith.mulf %251, %255 : vector<4x8x8xf32>
    %257 = arith.truncf %256 : vector<4x8x8xf32> to vector<4x8x8xbf16>
    %cst_85 = arith.constant dense<0.000000e+00> : vector<4x8x8xf32>
    %258 = tpu.matmul %240, %257, %cst_85 {dimension_numbers = #tpu.dot_dimension_numbers<[2], [2], [1], [1], [0, 0, 0, 1, 1, 1], [0], [0]>} : vector<4x8x8xbf16>, vector<4x8x8xbf16>, vector<4x8x8xf32> -> vector<4x8x8xf32>
    %259 = vector.shape_cast %258 : vector<4x8x8xf32> to vector<32x8xf32>
    %260 = tpu.transpose %259, [1, 0] : vector<32x8xf32> -> vector<8x32xf32>
    %c1_86 = arith.constant 1 : index
    %c0_87 = arith.constant 0 : index
    %c0_88 = arith.constant 0 : index
    %261 = vector.load %arg4[%c1_86, %c0_87, %c0_88] : memref<2x32x32xbf16, #tpu.memory_space<vmem>>, vector<1x32x32xbf16>
    %262 = vector.shape_cast %261 : vector<1x32x32xbf16> to vector<32x32xbf16>
    %263 = arith.truncf %260 : vector<8x32xf32> to vector<8x32xbf16>
    %cst_89 = arith.constant dense<0.000000e+00> : vector<8x32xf32>
    %264 = tpu.matmul %263, %262, %cst_89 {dimension_numbers = #tpu.dot_dimension_numbers<[1], [0], [0], [1], [0, 0, 1, 1], [], []>} : vector<8x32xbf16>, vector<32x32xbf16>, vector<8x32xf32> -> vector<8x32xf32>
    %265 = vector.extract_strided_slice %214 {offsets = [1, 0], sizes = [1, 32], strides = [1, 1]} : vector<10x32xf32> to vector<1x32xf32>
    %266 = vector.broadcast %265 : vector<1x32xf32> to vector<8x32xf32>
    %267 = arith.addf %264, %266 : vector<8x32xf32>
    %268 = arith.addf %212, %267 : vector<8x32xf32>
    %269 = vector.extract_strided_slice %214 {offsets = [4, 0], sizes = [1, 32], strides = [1, 1]} : vector<10x32xf32> to vector<1x32xf32>
    %270 = vector.extract_strided_slice %214 {offsets = [5, 0], sizes = [1, 32], strides = [1, 1]} : vector<10x32xf32> to vector<1x32xf32>
    %cst_90 = arith.constant dense<0.000000e+00> : vector<8xf32>
    %271 = vector.multi_reduction <add>, %268, %cst_90 [1] : vector<8x32xf32> to vector<8xf32>
    %272 = vector.shape_cast %271 : vector<8xf32> to vector<8x1xf32>
    %cst_91 = arith.constant 3.200000e+01 : f32
    %273 = vector.broadcast %cst_91 : f32 to vector<8x1xf32>
    %274 = arith.divf %272, %273 : vector<8x1xf32>
    %275 = arith.mulf %268, %268 : vector<8x32xf32>
    %cst_92 = arith.constant dense<0.000000e+00> : vector<8xf32>
    %276 = vector.multi_reduction <add>, %275, %cst_92 [1] : vector<8x32xf32> to vector<8xf32>
    %277 = vector.shape_cast %276 : vector<8xf32> to vector<8x1xf32>
    %cst_93 = arith.constant 3.200000e+01 : f32
    %278 = vector.broadcast %cst_93 : f32 to vector<8x1xf32>
    %279 = arith.divf %277, %278 : vector<8x1xf32>
    %280 = arith.mulf %274, %274 : vector<8x1xf32>
    %281 = arith.subf %279, %280 : vector<8x1xf32>
    %282 = vector.broadcast %274 : vector<8x1xf32> to vector<8x32xf32>
    %283 = arith.subf %268, %282 : vector<8x32xf32>
    %cst_94 = arith.constant 9.99999974E-6 : f32
    %284 = vector.broadcast %cst_94 : f32 to vector<8x1xf32>
    %285 = arith.addf %281, %284 : vector<8x1xf32>
    %286 = math.rsqrt %285 : vector<8x1xf32>
    %287 = vector.broadcast %286 : vector<8x1xf32> to vector<8x32xf32>
    %288 = arith.mulf %283, %287 : vector<8x32xf32>
    %289 = vector.broadcast %269 : vector<1x32xf32> to vector<8x32xf32>
    %290 = arith.mulf %288, %289 : vector<8x32xf32>
    %291 = vector.broadcast %270 : vector<1x32xf32> to vector<8x32xf32>
    %292 = arith.addf %290, %291 : vector<8x32xf32>
    %c1_95 = arith.constant 1 : index
    %c0_96 = arith.constant 0 : index
    %c0_97 = arith.constant 0 : index
    %293 = vector.load %arg5[%c1_95, %c0_96, %c0_97] : memref<2x32x32xbf16, #tpu.memory_space<vmem>>, vector<1x32x32xbf16>
    %294 = vector.shape_cast %293 : vector<1x32x32xbf16> to vector<32x32xbf16>
    %295 = arith.truncf %292 : vector<8x32xf32> to vector<8x32xbf16>
    %cst_98 = arith.constant dense<0.000000e+00> : vector<8x32xf32>
    %296 = tpu.matmul %295, %294, %cst_98 {dimension_numbers = #tpu.dot_dimension_numbers<[1], [0], [0], [1], [0, 0, 1, 1], [], []>} : vector<8x32xbf16>, vector<32x32xbf16>, vector<8x32xf32> -> vector<8x32xf32>
    %297 = vector.extract_strided_slice %214 {offsets = [0, 0], sizes = [1, 32], strides = [1, 1]} : vector<10x32xf32> to vector<1x32xf32>
    %298 = vector.broadcast %297 : vector<1x32xf32> to vector<8x32xf32>
    %299 = arith.addf %296, %298 : vector<8x32xf32>
    %c1_99 = arith.constant 1 : index
    %c0_100 = arith.constant 0 : index
    %c0_101 = arith.constant 0 : index
    %300 = vector.load %arg6[%c1_99, %c0_100, %c0_101] : memref<2x32x64xbf16, #tpu.memory_space<vmem>>, vector<1x32x64xbf16>
    %301 = vector.shape_cast %300 : vector<1x32x64xbf16> to vector<32x64xbf16>
    %302 = arith.truncf %3 : vector<8x32xf32> to vector<8x32xbf16>
    %cst_102 = arith.constant dense<0.000000e+00> : vector<8x64xf32>
    %303 = tpu.matmul %302, %301, %cst_102 {dimension_numbers = #tpu.dot_dimension_numbers<[1], [0], [0], [1], [0, 0, 1, 1], [], []>} : vector<8x32xbf16>, vector<32x64xbf16>, vector<8x64xf32> -> vector<8x64xf32>
    %c1_103 = arith.constant 1 : index
    %c0_104 = arith.constant 0 : index
    %c0_105 = arith.constant 0 : index
    %304 = vector.load %arg11[%c1_103, %c0_104, %c0_105] : memref<2x1x64xf32, #tpu.memory_space<vmem>>, vector<1x1x64xf32>
    %305 = vector.shape_cast %304 : vector<1x1x64xf32> to vector<1x64xf32>
    %306 = vector.broadcast %305 : vector<1x64xf32> to vector<8x64xf32>
    %307 = arith.addf %303, %306 : vector<8x64xf32>
    %308 = tpu.transpose %307, [1, 0] : vector<8x64xf32> -> vector<64x8xf32>
    %309 = vector.extract_strided_slice %299 {offsets = [0, 0], sizes = [8, 8], strides = [1, 1]} : vector<8x32xf32> to vector<8x8xf32>
    %310 = vector.extract_strided_slice %299 {offsets = [0, 8], sizes = [8, 8], strides = [1, 1]} : vector<8x32xf32> to vector<8x8xf32>
    %311 = vector.extract_strided_slice %299 {offsets = [0, 16], sizes = [8, 8], strides = [1, 1]} : vector<8x32xf32> to vector<8x8xf32>
    %312 = vector.extract_strided_slice %299 {offsets = [0, 24], sizes = [8, 8], strides = [1, 1]} : vector<8x32xf32> to vector<8x8xf32>
    %313 = vector.shape_cast %309 : vector<8x8xf32> to vector<1x8x8xf32>
    %314 = vector.shape_cast %310 : vector<8x8xf32> to vector<1x8x8xf32>
    %315 = vector.shape_cast %311 : vector<8x8xf32> to vector<1x8x8xf32>
    %316 = vector.shape_cast %312 : vector<8x8xf32> to vector<1x8x8xf32>
    %317 = tpu.concatenate %313, %314, %315, %316 in 0 : vector<1x8x8xf32>, vector<1x8x8xf32>, vector<1x8x8xf32>, vector<1x8x8xf32> -> vector<4x8x8xf32>
    %318 = arith.truncf %317 : vector<4x8x8xf32> to vector<4x8x8xbf16>
    %319 = vector.extract_strided_slice %308 {offsets = [0, 0], sizes = [32, 8], strides = [1, 1]} : vector<64x8xf32> to vector<32x8xf32>
    %320 = vector.shape_cast %319 : vector<32x8xf32> to vector<4x8x8xf32>
    %321 = arith.truncf %320 : vector<4x8x8xf32> to vector<4x8x8xbf16>
    %322 = vector.extract_strided_slice %308 {offsets = [32, 0], sizes = [32, 8], strides = [1, 1]} : vector<64x8xf32> to vector<32x8xf32>
    %323 = vector.shape_cast %322 : vector<32x8xf32> to vector<4x8x8xf32>
    %324 = arith.truncf %323 : vector<4x8x8xf32> to vector<4x8x8xbf16>
    %cst_106 = arith.constant dense<0.000000e+00> : vector<4x8x8xf32>
    %325 = tpu.matmul %318, %321, %cst_106 {dimension_numbers = #tpu.dot_dimension_numbers<[2], [1], [1], [2], [0, 0, 0, 1, 1, 2], [0], [0]>} : vector<4x8x8xbf16>, vector<4x8x8xbf16>, vector<4x8x8xf32> -> vector<4x8x8xf32>
    %cst_107 = arith.constant 0.353553385 : f32
    %326 = vector.broadcast %cst_107 : f32 to vector<4x8x8xf32>
    %327 = arith.mulf %325, %326 : vector<4x8x8xf32>
    %cst_108 = arith.constant dense<0xFF800000> : vector<4x8xf32>
    %328 = vector.multi_reduction <maximumf>, %327, %cst_108 [2] : vector<4x8x8xf32> to vector<4x8xf32>
    %329 = vector.shape_cast %328 : vector<4x8xf32> to vector<4x8x1xf32>
    %330 = vector.broadcast %329 : vector<4x8x1xf32> to vector<4x8x8xf32>
    %331 = arith.subf %327, %330 : vector<4x8x8xf32>
    %332 = math.exp %331 : vector<4x8x8xf32>
    %cst_109 = arith.constant dense<0.000000e+00> : vector<4x8xf32>
    %333 = vector.multi_reduction <add>, %332, %cst_109 [2] : vector<4x8x8xf32> to vector<4x8xf32>
    %334 = vector.shape_cast %333 : vector<4x8xf32> to vector<4x8x1xf32>
    %335 = tpu.reciprocal %334 {approx = true} : vector<4x8x1xf32> -> vector<4x8x1xf32>
    %336 = vector.broadcast %335 : vector<4x8x1xf32> to vector<4x8x8xf32>
    %337 = arith.mulf %332, %336 : vector<4x8x8xf32>
    %338 = arith.truncf %337 : vector<4x8x8xf32> to vector<4x8x8xbf16>
    %cst_110 = arith.constant dense<0.000000e+00> : vector<4x8x8xf32>
    %339 = tpu.matmul %324, %338, %cst_110 {dimension_numbers = #tpu.dot_dimension_numbers<[2], [2], [1], [1], [0, 0, 0, 1, 1, 1], [0], [0]>} : vector<4x8x8xbf16>, vector<4x8x8xbf16>, vector<4x8x8xf32> -> vector<4x8x8xf32>
    %340 = vector.shape_cast %339 : vector<4x8x8xf32> to vector<32x8xf32>
    %341 = tpu.transpose %340, [1, 0] : vector<32x8xf32> -> vector<8x32xf32>
    %c1_111 = arith.constant 1 : index
    %c0_112 = arith.constant 0 : index
    %c0_113 = arith.constant 0 : index
    %342 = vector.load %arg7[%c1_111, %c0_112, %c0_113] : memref<2x32x32xbf16, #tpu.memory_space<vmem>>, vector<1x32x32xbf16>
    %343 = vector.shape_cast %342 : vector<1x32x32xbf16> to vector<32x32xbf16>
    %344 = arith.truncf %341 : vector<8x32xf32> to vector<8x32xbf16>
    %cst_114 = arith.constant dense<0.000000e+00> : vector<8x32xf32>
    %345 = tpu.matmul %344, %343, %cst_114 {dimension_numbers = #tpu.dot_dimension_numbers<[1], [0], [0], [1], [0, 0, 1, 1], [], []>} : vector<8x32xbf16>, vector<32x32xbf16>, vector<8x32xf32> -> vector<8x32xf32>
    %346 = vector.extract_strided_slice %214 {offsets = [2, 0], sizes = [1, 32], strides = [1, 1]} : vector<10x32xf32> to vector<1x32xf32>
    %347 = vector.broadcast %346 : vector<1x32xf32> to vector<8x32xf32>
    %348 = arith.addf %345, %347 : vector<8x32xf32>
    %349 = arith.addf %292, %348 : vector<8x32xf32>
    %350 = vector.extract_strided_slice %214 {offsets = [6, 0], sizes = [1, 32], strides = [1, 1]} : vector<10x32xf32> to vector<1x32xf32>
    %351 = vector.extract_strided_slice %214 {offsets = [7, 0], sizes = [1, 32], strides = [1, 1]} : vector<10x32xf32> to vector<1x32xf32>
    %cst_115 = arith.constant dense<0.000000e+00> : vector<8xf32>
    %352 = vector.multi_reduction <add>, %349, %cst_115 [1] : vector<8x32xf32> to vector<8xf32>
    %353 = vector.shape_cast %352 : vector<8xf32> to vector<8x1xf32>
    %cst_116 = arith.constant 3.200000e+01 : f32
    %354 = vector.broadcast %cst_116 : f32 to vector<8x1xf32>
    %355 = arith.divf %353, %354 : vector<8x1xf32>
    %356 = arith.mulf %349, %349 : vector<8x32xf32>
    %cst_117 = arith.constant dense<0.000000e+00> : vector<8xf32>
    %357 = vector.multi_reduction <add>, %356, %cst_117 [1] : vector<8x32xf32> to vector<8xf32>
    %358 = vector.shape_cast %357 : vector<8xf32> to vector<8x1xf32>
    %cst_118 = arith.constant 3.200000e+01 : f32
    %359 = vector.broadcast %cst_118 : f32 to vector<8x1xf32>
    %360 = arith.divf %358, %359 : vector<8x1xf32>
    %361 = arith.mulf %355, %355 : vector<8x1xf32>
    %362 = arith.subf %360, %361 : vector<8x1xf32>
    %363 = vector.broadcast %355 : vector<8x1xf32> to vector<8x32xf32>
    %364 = arith.subf %349, %363 : vector<8x32xf32>
    %cst_119 = arith.constant 9.99999974E-6 : f32
    %365 = vector.broadcast %cst_119 : f32 to vector<8x1xf32>
    %366 = arith.addf %362, %365 : vector<8x1xf32>
    %367 = math.rsqrt %366 : vector<8x1xf32>
    %368 = vector.broadcast %367 : vector<8x1xf32> to vector<8x32xf32>
    %369 = arith.mulf %364, %368 : vector<8x32xf32>
    %370 = vector.broadcast %350 : vector<1x32xf32> to vector<8x32xf32>
    %371 = arith.mulf %369, %370 : vector<8x32xf32>
    %372 = vector.broadcast %351 : vector<1x32xf32> to vector<8x32xf32>
    %373 = arith.addf %371, %372 : vector<8x32xf32>
    %c1_120 = arith.constant 1 : index
    %c0_121 = arith.constant 0 : index
    %c0_122 = arith.constant 0 : index
    %374 = vector.load %arg8[%c1_120, %c0_121, %c0_122] : memref<2x32x64xbf16, #tpu.memory_space<vmem>>, vector<1x32x64xbf16>
    %375 = vector.shape_cast %374 : vector<1x32x64xbf16> to vector<32x64xbf16>
    %376 = arith.truncf %373 : vector<8x32xf32> to vector<8x32xbf16>
    %cst_123 = arith.constant dense<0.000000e+00> : vector<8x64xf32>
    %377 = tpu.matmul %376, %375, %cst_123 {dimension_numbers = #tpu.dot_dimension_numbers<[1], [0], [0], [1], [0, 0, 1, 1], [], []>} : vector<8x32xbf16>, vector<32x64xbf16>, vector<8x64xf32> -> vector<8x64xf32>
    %c1_124 = arith.constant 1 : index
    %c0_125 = arith.constant 0 : index
    %c0_126 = arith.constant 0 : index
    %378 = vector.load %arg12[%c1_124, %c0_125, %c0_126] : memref<2x1x64xf32, #tpu.memory_space<vmem>>, vector<1x1x64xf32>
    %379 = vector.shape_cast %378 : vector<1x1x64xf32> to vector<1x64xf32>
    %380 = vector.broadcast %379 : vector<1x64xf32> to vector<8x64xf32>
    %381 = arith.addf %377, %380 : vector<8x64xf32>
    %cst_127 = arith.constant 0.000000e+00 : f32
    %382 = vector.broadcast %cst_127 : f32 to vector<8x64xf32>
    %383 = arith.maximumf %381, %382 : vector<8x64xf32>
    %c1_128 = arith.constant 1 : index
    %c0_129 = arith.constant 0 : index
    %c0_130 = arith.constant 0 : index
    %384 = vector.load %arg9[%c1_128, %c0_129, %c0_130] : memref<2x64x32xbf16, #tpu.memory_space<vmem>>, vector<1x64x32xbf16>
    %385 = vector.shape_cast %384 : vector<1x64x32xbf16> to vector<64x32xbf16>
    %386 = arith.truncf %383 : vector<8x64xf32> to vector<8x64xbf16>
    %cst_131 = arith.constant dense<0.000000e+00> : vector<8x32xf32>
    %387 = tpu.matmul %386, %385, %cst_131 {dimension_numbers = #tpu.dot_dimension_numbers<[1], [0], [0], [1], [0, 0, 1, 1], [], []>} : vector<8x64xbf16>, vector<64x32xbf16>, vector<8x32xf32> -> vector<8x32xf32>
    %388 = vector.extract_strided_slice %214 {offsets = [3, 0], sizes = [1, 32], strides = [1, 1]} : vector<10x32xf32> to vector<1x32xf32>
    %389 = vector.broadcast %388 : vector<1x32xf32> to vector<8x32xf32>
    %390 = arith.addf %387, %389 : vector<8x32xf32>
    %391 = arith.addf %373, %390 : vector<8x32xf32>
    %392 = vector.extract_strided_slice %214 {offsets = [8, 0], sizes = [1, 32], strides = [1, 1]} : vector<10x32xf32> to vector<1x32xf32>
    %393 = vector.extract_strided_slice %214 {offsets = [9, 0], sizes = [1, 32], strides = [1, 1]} : vector<10x32xf32> to vector<1x32xf32>
    %cst_132 = arith.constant dense<0.000000e+00> : vector<8xf32>
    %394 = vector.multi_reduction <add>, %391, %cst_132 [1] : vector<8x32xf32> to vector<8xf32>
    %395 = vector.shape_cast %394 : vector<8xf32> to vector<8x1xf32>
    %cst_133 = arith.constant 3.200000e+01 : f32
    %396 = vector.broadcast %cst_133 : f32 to vector<8x1xf32>
    %397 = arith.divf %395, %396 : vector<8x1xf32>
    %398 = arith.mulf %391, %391 : vector<8x32xf32>
    %cst_134 = arith.constant dense<0.000000e+00> : vector<8xf32>
    %399 = vector.multi_reduction <add>, %398, %cst_134 [1] : vector<8x32xf32> to vector<8xf32>
    %400 = vector.shape_cast %399 : vector<8xf32> to vector<8x1xf32>
    %cst_135 = arith.constant 3.200000e+01 : f32
    %401 = vector.broadcast %cst_135 : f32 to vector<8x1xf32>
    %402 = arith.divf %400, %401 : vector<8x1xf32>
    %403 = arith.mulf %397, %397 : vector<8x1xf32>
    %404 = arith.subf %402, %403 : vector<8x1xf32>
    %405 = vector.broadcast %397 : vector<8x1xf32> to vector<8x32xf32>
    %406 = arith.subf %391, %405 : vector<8x32xf32>
    %cst_136 = arith.constant 9.99999974E-6 : f32
    %407 = vector.broadcast %cst_136 : f32 to vector<8x1xf32>
    %408 = arith.addf %404, %407 : vector<8x1xf32>
    %409 = math.rsqrt %408 : vector<8x1xf32>
    %410 = vector.broadcast %409 : vector<8x1xf32> to vector<8x32xf32>
    %411 = arith.mulf %406, %410 : vector<8x32xf32>
    %412 = vector.broadcast %392 : vector<1x32xf32> to vector<8x32xf32>
    %413 = arith.mulf %411, %412 : vector<8x32xf32>
    %414 = vector.broadcast %393 : vector<1x32xf32> to vector<8x32xf32>
    %415 = arith.addf %413, %414 : vector<8x32xf32>
    %c0_137 = arith.constant 0 : index
    %c0_138 = arith.constant 0 : index
    %c0_139 = arith.constant 0 : index
    %416 = vector.load %arg14[%c0_137, %c0_138, %c0_139] : memref<1x8x32xf32, #tpu.memory_space<vmem>>, vector<1x8x32xf32>
    %417 = vector.shape_cast %416 : vector<1x8x32xf32> to vector<8x32xf32>
    %418 = vector.shape_cast %415 : vector<8x32xf32> to vector<1x8x32xf32>
    tpu.vector_store %arg14[%c0_137, %c0_138, %c0_139], %418 {strides = array<i32>} : memref<1x8x32xf32, #tpu.memory_space<vmem>>, vector<1x8x32xf32>,
    return
  }
  func.func @transform_0(%arg0: i32) -> (i32, i32, i32) {
    %c0_i32 = arith.constant 0 : i32
    %c0_i32_0 = arith.constant 0 : i32
    %c0_i32_1 = arith.constant 0 : i32
    return %arg0, %c0_i32, %c0_i32_0 : i32, i32, i32
  }
  func.func @transform_1(%arg0: i32) -> (i32, i32, i32) {
    %c0_i32 = arith.constant 0 : i32
    %c0_i32_0 = arith.constant 0 : i32
    %c0_i32_1 = arith.constant 0 : i32
    return %arg0, %c0_i32, %c0_i32_0 : i32, i32, i32
  }
  func.func @transform_2(%arg0: i32) -> (i32, i32, i32) {
    %c0_i32 = arith.constant 0 : i32
    %c0_i32_0 = arith.constant 0 : i32
    %c0_i32_1 = arith.constant 0 : i32
    %c0_i32_2 = arith.constant 0 : i32
    return %c0_i32, %c0_i32_0, %c0_i32_1 : i32, i32, i32
  }
  func.func @transform_3(%arg0: i32) -> (i32, i32, i32) {
    %c0_i32 = arith.constant 0 : i32
    %c0_i32_0 = arith.constant 0 : i32
    %c0_i32_1 = arith.constant 0 : i32
    %c0_i32_2 = arith.constant 0 : i32
    return %c0_i32, %c0_i32_0, %c0_i32_1 : i32, i32, i32
  }
  func.func @transform_4(%arg0: i32) -> (i32, i32, i32) {
    %c0_i32 = arith.constant 0 : i32
    %c0_i32_0 = arith.constant 0 : i32
    %c0_i32_1 = arith.constant 0 : i32
    %c0_i32_2 = arith.constant 0 : i32
    return %c0_i32, %c0_i32_0, %c0_i32_1 : i32, i32, i32
  }
  func.func @transform_5(%arg0: i32) -> (i32, i32, i32) {
    %c0_i32 = arith.constant 0 : i32
    %c0_i32_0 = arith.constant 0 : i32
    %c0_i32_1 = arith.constant 0 : i32
    %c0_i32_2 = arith.constant 0 : i32
    return %c0_i32, %c0_i32_0, %c0_i32_1 : i32, i32, i32
  }
  func.func @transform_6(%arg0: i32) -> (i32, i32, i32) {
    %c0_i32 = arith.constant 0 : i32
    %c0_i32_0 = arith.constant 0 : i32
    %c0_i32_1 = arith.constant 0 : i32
    %c0_i32_2 = arith.constant 0 : i32
    return %c0_i32, %c0_i32_0, %c0_i32_1 : i32, i32, i32
  }
  func.func @transform_7(%arg0: i32) -> (i32, i32, i32) {
    %c0_i32 = arith.constant 0 : i32
    %c0_i32_0 = arith.constant 0 : i32
    %c0_i32_1 = arith.constant 0 : i32
    %c0_i32_2 = arith.constant 0 : i32
    return %c0_i32, %c0_i32_0, %c0_i32_1 : i32, i32, i32
  }
  func.func @transform_8(%arg0: i32) -> (i32, i32, i32) {
    %c0_i32 = arith.constant 0 : i32
    %c0_i32_0 = arith.constant 0 : i32
    %c0_i32_1 = arith.constant 0 : i32
    %c0_i32_2 = arith.constant 0 : i32
    return %c0_i32, %c0_i32_0, %c0_i32_1 : i32, i32, i32
  }
  func.func @transform_9(%arg0: i32) -> (i32, i32, i32) {
    %c0_i32 = arith.constant 0 : i32
    %c0_i32_0 = arith.constant 0 : i32
    %c0_i32_1 = arith.constant 0 : i32
    %c0_i32_2 = arith.constant 0 : i32
    return %c0_i32, %c0_i32_0, %c0_i32_1 : i32, i32, i32
  }
  func.func @transform_10(%arg0: i32) -> (i32, i32, i32) {
    %c0_i32 = arith.constant 0 : i32
    %c0_i32_0 = arith.constant 0 : i32
    %c0_i32_1 = arith.constant 0 : i32
    %c0_i32_2 = arith.constant 0 : i32
    return %c0_i32, %c0_i32_0, %c0_i32_1 : i32, i32, i32
  }
  func.func @transform_11(%arg0: i32) -> (i32, i32, i32) {
    %c0_i32 = arith.constant 0 : i32
    %c0_i32_0 = arith.constant 0 : i32
    %c0_i32_1 = arith.constant 0 : i32
    %c0_i32_2 = arith.constant 0 : i32
    return %c0_i32, %c0_i32_0, %c0_i32_1 : i32, i32, i32
  }
  func.func @transform_12(%arg0: i32) -> (i32, i32, i32) {
    %c0_i32 = arith.constant 0 : i32
    %c0_i32_0 = arith.constant 0 : i32
    %c0_i32_1 = arith.constant 0 : i32
    %c0_i32_2 = arith.constant 0 : i32
    return %c0_i32, %c0_i32_0, %c0_i32_1 : i32, i32, i32
  }
  func.func @transform_13(%arg0: i32) -> (i32, i32, i32) {
    %c0_i32 = arith.constant 0 : i32
    %c0_i32_0 = arith.constant 0 : i32
    %c0_i32_1 = arith.constant 0 : i32
    return %arg0, %c0_i32, %c0_i32_0 : i32, i32, i32
  }
}

</mosaic_0001>

<llo_original>
// kernel: tpu_custom_call.1
$region0: #{tpu_custom_call.1}
  #allocation0 [shape = 'u32[]', space=smem, size = 0x4, offset = 0x4, fixed_abs, tag = 'smem constant byte address 0x4 - core index']
  #allocation1 [shape = 'u32[144,128]{1,0:T(1,128)}', space=vmem, size = 0x12000, scoped, tag = 'internal scratch']
  %s0 = inlined_call_operand.hbm [shape: f32[2,8,32], index: 0, kind: input, shape index: {}]
  %s1 = inlined_call_operand.hbm [shape: f32[2,8,32], index: 1, kind: input, shape index: {}]
  %s2 = inlined_call_operand.vmem [shape: bf16[2,32,96], index: 2, kind: input, shape index: {}]
  %s3 = inlined_call_operand.vmem [shape: bf16[2,32,32], index: 3, kind: input, shape index: {}]
  %s4 = inlined_call_operand.vmem [shape: bf16[2,32,32], index: 4, kind: input, shape index: {}]
  %s5 = inlined_call_operand.vmem [shape: bf16[2,32,64], index: 5, kind: input, shape index: {}]
  %s6 = inlined_call_operand.hbm [shape: bf16[2,32,32], index: 6, kind: input, shape index: {}]
  %s7 = inlined_call_operand.hbm [shape: bf16[2,32,64], index: 7, kind: input, shape index: {}]
  %s8 = inlined_call_operand.vmem [shape: bf16[2,64,32], index: 8, kind: input, shape index: {}]
  %s9 = inlined_call_operand.vmem [shape: f32[2,1,96], index: 9, kind: input, shape index: {}]
  %s10 = inlined_call_operand.vmem [shape: f32[2,1,64], index: 10, kind: input, shape index: {}]
  %s11 = inlined_call_operand.vmem [shape: f32[2,1,64], index: 11, kind: input, shape index: {}]
  %s12 = inlined_call_operand.vmem [shape: f32[2,10,32], index: 12, kind: input, shape index: {}]
  %s13 = inlined_call_operand.hbm [shape: f32[2,8,32], index: 13, kind: output, shape index: {}]
  %s14 = sld [smem:[#allocation0]]
  $region101: #{tpu_custom_call.1} parent=0
    _
  %s16 = ssub.s32 1, %s14
  %s17 = scalar_select 0, %s16, %s14
  $region1: #{tpu_custom_call.1} parent=0
    #allocation2 [shape = 'u8[8192]{0}', space=vmem, size = 0x2000, scoped, tag = 'input window, operand 0']
    #allocation3 [shape = 's32[2]{0}', space=sflag, size = 0x8, scoped, tag = 'scoped memory for tpu_custom_call.1']
    #allocation4 [shape = 's32[2]{0}', space=sflag, size = 0x8, scoped, tag = 'scoped memory for tpu_custom_call.1']
    #allocation5 [shape = 'u8[8192]{0}', space=vmem, size = 0x2000, scoped, tag = 'input window, operand 1']
    #allocation6 [shape = 's32[2]{0}', space=sflag, size = 0x8, scoped, tag = 'scoped memory for tpu_custom_call.1']
    #allocation7 [shape = 'u8[16384]{0}', space=vmem, size = 0x4000, scoped, tag = 'input window, operand 6, single buffered']
    #allocation8 [shape = 'u8[16384]{0}', space=vmem, size = 0x4000, scoped, tag = 'input window, operand 7, single buffered']
    #allocation9 [shape = 's32[1]{0}', space=sflag, size = 0x4, scoped, tag = 'scoped memory for tpu_custom_call.1']
    #allocation10 [shape = 'u8[8192]{0}', space=vmem, size = 0x2000, scoped, tag = 'output window, operand 0']
    %18 = vsyncpa [#allocation3], 0
    %s19 = scalar_lea.sflag [#allocation3], 1
    %20 = vsyncpa %s19, 0
    %21 = vsyncpa [#allocation6], 0
    %s22 = scalar_lea.sflag [#allocation6], 1
    %23 = vsyncpa %s22, 0
    %24 = vsyncpa [#allocation9], 0
    %25 = vsyncpa [#allocation4], 0
    %s26 = scalar_lea.sflag [#allocation4], 1
    %27 = vsyncpa %s26, 0
    loop: start=0, step=1, limit=4
    $region2: #{tpu_custom_call.1} parent=1 // loop_pre_header
      _
    $region3: #{tpu_custom_call.1} parent=1 // loop_header
      %s29 = sphi 0, %s33
      %p30 = scmp.ge.s32.totalorder %s29, 4
      %s39 = sphi 0, %s41
      %s42 = sphi 0, %s39
      %s43 = sphi 0, %s42
      %s59 = sphi 0, %s43
      %s65 = sphi 0, %s67
      %s68 = sphi 0, %s65
      %s69 = sphi 0, %s68
      %s85 = sphi 0, %s69
      %s89 = sphi 0, %s89
      %s91 = sphi 0, %s89
      %s92 = sphi 0, %s91
      %s106 = sphi 0, %s92
      %s110 = sphi 0, %s110
      %s112 = sphi 0, %s110
      %s113 = sphi 0, %s112
      %s127 = sphi 0, %s113
      %s131 = sphi 0, %s131
      %s133 = sphi 0, %s131
      %s134 = sphi 0, %s133
      %s148 = sphi 0, %s134
      %s152 = sphi 0, %s152
      %s154 = sphi 0, %s152
      %s155 = sphi 0, %s154
      %s169 = sphi 0, %s155
      %s173 = sphi 0, %s173
      %s175 = sphi 0, %s173
      %s176 = sphi 0, %s175
      %s190 = sphi 0, %s176
      %s194 = sphi 0, %s194
      %s196 = sphi 0, %s194
      %s197 = sphi 0, %s196
      %s211 = sphi 0, %s197
      %s215 = sphi 0, %s215
      %s217 = sphi 0, %s215
      %s218 = sphi 0, %s217
      %s232 = sphi 0, %s218
      %s236 = sphi 0, %s236
      %s238 = sphi 0, %s236
      %s239 = sphi 0, %s238
      %s253 = sphi 0, %s239
      %s257 = sphi 0, %s257
      %s259 = sphi 0, %s257
      %s260 = sphi 0, %s259
      %s274 = sphi 0, %s260
      %s278 = sphi 0, %s278
      %s280 = sphi 0, %s278
      %s281 = sphi 0, %s280
      %s295 = sphi 0, %s281
      %s299 = sphi 0, %s299
      %s301 = sphi 0, %s299
      %s302 = sphi 0, %s301
      %s316 = sphi 0, %s302
      %s322 = sphi 0, %s324
      %s325 = sphi 0, %s322
      %s326 = sphi 0, %s325
      %s342 = sphi 0, %s326
    $region4: #{tpu_custom_call.1} parent=1 // loop_header_branch
      %32 = sbr.rel (%p30) target = $region8
    $region5: #{tpu_custom_call.1} parent=1 // loop_body
      %s34 = ssub.s32 %s29, 1
      %s35 = ssub.s32 %s29, 2
      %s36 = sadd.s32 %s29, 1
      %s37 = ssub.s32 %s29, %s36
      %p38 = scmp.eq.s32.totalorder %s37, 0
      %s40 = sadd.s32 %s39, 1
      %s41 = scalar_select %p38, %s39, %s40
      %p44 = pneg %p38
      %p45 = scmp.eq.s32.totalorder %s29, 1
      %p46 = por %p44, %p45
      %p47 = scmp.ne.s32.totalorder %s39, %s42
      %p48 = scmp.eq.s32.totalorder %s29, 0
      %p49 = por %p47, %p48
      %p50 = scmp.ne.s32.totalorder %s39, %s42
      %p51 = scmp.eq.s32.totalorder %s34, 1
      %p52 = por %p50, %p51
      %p53 = scmp.ne.s32.totalorder %s42, %s43
      %p54 = scmp.eq.s32.totalorder %s34, 0
      %p55 = por %p53, %p54
      %p56 = scmp.ne.s32.totalorder %s42, %s43
      %p57 = scmp.eq.s32.totalorder %s35, 1
      %p58 = por %p56, %p57
      %p60 = scmp.ne.s32.totalorder %s43, %s59
      %p61 = scmp.eq.s32.totalorder %s35, 0
      %p62 = por %p60, %p61
      %s63 = ssub.s32 %s29, %s36
      %p64 = scmp.eq.s32.totalorder %s63, 0
      %s66 = sadd.s32 %s65, 1
      %s67 = scalar_select %p64, %s65, %s66
      %p70 = pneg %p64
      %p71 = scmp.eq.s32.totalorder %s29, 1
      %p72 = por %p70, %p71
      %p73 = scmp.ne.s32.totalorder %s65, %s68
      %p74 = scmp.eq.s32.totalorder %s29, 0
      %p75 = por %p73, %p74
      %p76 = scmp.ne.s32.totalorder %s65, %s68
      %p77 = scmp.eq.s32.totalorder %s34, 1
      %p78 = por %p76, %p77
      %p79 = scmp.ne.s32.totalorder %s68, %s69
      %p80 = scmp.eq.s32.totalorder %s34, 0
      %p81 = por %p79, %p80
      %p82 = scmp.ne.s32.totalorder %s68, %s69
      %p83 = scmp.eq.s32.totalorder %s35, 1
      %p84 = por %p82, %p83
      %p86 = scmp.ne.s32.totalorder %s69, %s85
      %p87 = scmp.eq.s32.totalorder %s35, 0
      %p88 = por %p86, %p87
      %s90 = sadd.s32 %s89, 1
      %p93 = scmp.eq.s32.totalorder %s29, 1
      %p94 = scmp.ne.s32.totalorder %s89, %s91
      %p95 = scmp.eq.s32.totalorder %s29, 0
      %p96 = por %p94, %p95
      %p97 = scmp.ne.s32.totalorder %s89, %s91
      %p98 = scmp.eq.s32.totalorder %s34, 1
      %p99 = por %p97, %p98
      %p100 = scmp.ne.s32.totalorder %s91, %s92
      %p101 = scmp.eq.s32.totalorder %s34, 0
      %p102 = por %p100, %p101
      %p103 = scmp.ne.s32.totalorder %s91, %s92
      %p104 = scmp.eq.s32.totalorder %s35, 1
      %p105 = por %p103, %p104
      %p107 = scmp.ne.s32.totalorder %s92, %s106
      %p108 = scmp.eq.s32.totalorder %s35, 0
      %p109 = por %p107, %p108
      %s111 = sadd.s32 %s110, 1
      %p114 = scmp.eq.s32.totalorder %s29, 1
      %p115 = scmp.ne.s32.totalorder %s110, %s112
      %p116 = scmp.eq.s32.totalorder %s29, 0
      %p117 = por %p115, %p116
      %p118 = scmp.ne.s32.totalorder %s110, %s112
      %p119 = scmp.eq.s32.totalorder %s34, 1
      %p120 = por %p118, %p119
      %p121 = scmp.ne.s32.totalorder %s112, %s113
      %p122 = scmp.eq.s32.totalorder %s34, 0
      %p123 = por %p121, %p122
      %p124 = scmp.ne.s32.totalorder %s112, %s113
      %p125 = scmp.eq.s32.totalorder %s35, 1
      %p126 = por %p124, %p125
      %p128 = scmp.ne.s32.totalorder %s113, %s127
      %p129 = scmp.eq.s32.totalorder %s35, 0
      %p130 = por %p128, %p129
      %s132 = sadd.s32 %s131, 1
      %p135 = scmp.eq.s32.totalorder %s29, 1
      %p136 = scmp.ne.s32.totalorder %s131, %s133
      %p137 = scmp.eq.s32.totalorder %s29, 0
      %p138 = por %p136, %p137
      %p139 = scmp.ne.s32.totalorder %s131, %s133
      %p140 = scmp.eq.s32.totalorder %s34, 1
      %p141 = por %p139, %p140
      %p142 = scmp.ne.s32.totalorder %s133, %s134
      %p143 = scmp.eq.s32.totalorder %s34, 0
      %p144 = por %p142, %p143
      %p145 = scmp.ne.s32.totalorder %s133, %s134
      %p146 = scmp.eq.s32.totalorder %s35, 1
      %p147 = por %p145, %p146
      %p149 = scmp.ne.s32.totalorder %s134, %s148
      %p150 = scmp.eq.s32.totalorder %s35, 0
      %p151 = por %p149, %p150
      %s153 = sadd.s32 %s152, 1
      %p156 = scmp.eq.s32.totalorder %s29, 1
      %p157 = scmp.ne.s32.totalorder %s152, %s154
      %p158 = scmp.eq.s32.totalorder %s29, 0
      %p159 = por %p157, %p158
      %p160 = scmp.ne.s32.totalorder %s152, %s154
      %p161 = scmp.eq.s32.totalorder %s34, 1
      %p162 = por %p160, %p161
      %p163 = scmp.ne.s32.totalorder %s154, %s155
      %p164 = scmp.eq.s32.totalorder %s34, 0
      %p165 = por %p163, %p164
      %p166 = scmp.ne.s32.totalorder %s154, %s155
      %p167 = scmp.eq.s32.totalorder %s35, 1
      %p168 = por %p166, %p167
      %p170 = scmp.ne.s32.totalorder %s155, %s169
      %p171 = scmp.eq.s32.totalorder %s35, 0
      %p172 = por %p170, %p171
      %s174 = sadd.s32 %s173, 1
      %p177 = scmp.eq.s32.totalorder %s29, 1
      %p178 = scmp.ne.s32.totalorder %s173, %s175
      %p179 = scmp.eq.s32.totalorder %s29, 0
      %p180 = por %p178, %p179
      %p181 = scmp.ne.s32.totalorder %s173, %s175
      %p182 = scmp.eq.s32.totalorder %s34, 1
      %p183 = por %p181, %p182
      %p184 = scmp.ne.s32.totalorder %s175, %s176
      %p185 = scmp.eq.s32.totalorder %s34, 0
      %p186 = por %p184, %p185
      %p187 = scmp.ne.s32.totalorder %s175, %s176
      %p188 = scmp.eq.s32.totalorder %s35, 1
      %p189 = por %p187, %p188
      %p191 = scmp.ne.s32.totalorder %s176, %s190
      %p192 = scmp.eq.s32.totalorder %s35, 0
      %p193 = por %p191, %p192
      %s195 = sadd.s32 %s194, 1
      %p198 = scmp.eq.s32.totalorder %s29, 1
      %p199 = scmp.ne.s32.totalorder %s194, %s196
      %p200 = scmp.eq.s32.totalorder %s29, 0
      %p201 = por %p199, %p200
      %p202 = scmp.ne.s32.totalorder %s194, %s196
      %p203 = scmp.eq.s32.totalorder %s34, 1
      %p204 = por %p202, %p203
      %p205 = scmp.ne.s32.totalorder %s196, %s197
      %p206 = scmp.eq.s32.totalorder %s34, 0
      %p207 = por %p205, %p206
      %p208 = scmp.ne.s32.totalorder %s196, %s197
      %p209 = scmp.eq.s32.totalorder %s35, 1
      %p210 = por %p208, %p209
      %p212 = scmp.ne.s32.totalorder %s197, %s211
      %p213 = scmp.eq.s32.totalorder %s35, 0
      %p214 = por %p212, %p213
      %s216 = sadd.s32 %s215, 1
      %p219 = scmp.eq.s32.totalorder %s29, 1
      %p220 = scmp.ne.s32.totalorder %s215, %s217
      %p221 = scmp.eq.s32.totalorder %s29, 0
      %p222 = por %p220, %p221
      %p223 = scmp.ne.s32.totalorder %s215, %s217
      %p224 = scmp.eq.s32.totalorder %s34, 1
      %p225 = por %p223, %p224
      %p226 = scmp.ne.s32.totalorder %s217, %s218
      %p227 = scmp.eq.s32.totalorder %s34, 0
      %p228 = por %p226, %p227
      %p229 = scmp.ne.s32.totalorder %s217, %s218
      %p230 = scmp.eq.s32.totalorder %s35, 1
      %p231 = por %p229, %p230
      %p233 = scmp.ne.s32.totalorder %s218, %s232
      %p234 = scmp.eq.s32.totalorder %s35, 0
      %p235 = por %p233, %p234
      %s237 = sadd.s32 %s236, 1
      %p240 = scmp.eq.s32.totalorder %s29, 1
      %p241 = scmp.ne.s32.totalorder %s236, %s238
      %p242 = scmp.eq.s32.totalorder %s29, 0
      %p243 = por %p241, %p242
      %p244 = scmp.ne.s32.totalorder %s236, %s238
      %p245 = scmp.eq.s32.totalorder %s34, 1
      %p246 = por %p244, %p245
      %p247 = scmp.ne.s32.totalorder %s238, %s239
      %p248 = scmp.eq.s32.totalorder %s34, 0
      %p249 = por %p247, %p248
      %p250 = scmp.ne.s32.totalorder %s238, %s239
      %p251 = scmp.eq.s32.totalorder %s35, 1
      %p252 = por %p250, %p251
      %p254 = scmp.ne.s32.totalorder %s239, %s253
      %p255 = scmp.eq.s32.totalorder %s35, 0
      %p256 = por %p254, %p255
      %s258 = sadd.s32 %s257, 1
      %p261 = scmp.eq.s32.totalorder %s29, 1
      %p262 = scmp.ne.s32.totalorder %s257, %s259
      %p263 = scmp.eq.s32.totalorder %s29, 0
      %p264 = por %p262, %p263
      %p265 = scmp.ne.s32.totalorder %s257, %s259
      %p266 = scmp.eq.s32.totalorder %s34, 1
      %p267 = por %p265, %p266
      %p268 = scmp.ne.s32.totalorder %s259, %s260
      %p269 = scmp.eq.s32.totalorder %s34, 0
      %p270 = por %p268, %p269
      %p271 = scmp.ne.s32.totalorder %s259, %s260
      %p272 = scmp.eq.s32.totalorder %s35, 1
      %p273 = por %p271, %p272
      %p275 = scmp.ne.s32.totalorder %s260, %s274
      %p276 = scmp.eq.s32.totalorder %s35, 0
      %p277 = por %p275, %p276
      %s279 = sadd.s32 %s278, 1
      %p282 = scmp.eq.s32.totalorder %s29, 1
      %p283 = scmp.ne.s32.totalorder %s278, %s280
      %p284 = scmp.eq.s32.totalorder %s29, 0
      %p285 = por %p283, %p284
      %p286 = scmp.ne.s32.totalorder %s278, %s280
      %p287 = scmp.eq.s32.totalorder %s34, 1
      %p288 = por %p286, %p287
      %p289 = scmp.ne.s32.totalorder %s280, %s281
      %p290 = scmp.eq.s32.totalorder %s34, 0
      %p291 = por %p289, %p290
      %p292 = scmp.ne.s32.totalorder %s280, %s281
      %p293 = scmp.eq.s32.totalorder %s35, 1
      %p294 = por %p292, %p293
      %p296 = scmp.ne.s32.totalorder %s281, %s295
      %p297 = scmp.eq.s32.totalorder %s35, 0
      %p298 = por %p296, %p297
      %s300 = sadd.s32 %s299, 1
      %p303 = scmp.eq.s32.totalorder %s29, 1
      %p304 = scmp.ne.s32.totalorder %s299, %s301
      %p305 = scmp.eq.s32.totalorder %s29, 0
      %p306 = por %p304, %p305
      %p307 = scmp.ne.s32.totalorder %s299, %s301
      %p308 = scmp.eq.s32.totalorder %s34, 1
      %p309 = por %p307, %p308
      %p310 = scmp.ne.s32.totalorder %s301, %s302
      %p311 = scmp.eq.s32.totalorder %s34, 0
      %p312 = por %p310, %p311
      %p313 = scmp.ne.s32.totalorder %s301, %s302
      %p314 = scmp.eq.s32.totalorder %s35, 1
      %p315 = por %p313, %p314
      %p317 = scmp.ne.s32.totalorder %s302, %s316
      %p318 = scmp.eq.s32.totalorder %s35, 0
      %p319 = por %p317, %p318
      %s320 = ssub.s32 %s29, %s36
      %p321 = scmp.eq.s32.totalorder %s320, 0
      %s323 = sadd.s32 %s322, 1
      %s324 = scalar_select %p321, %s322, %s323
      %p327 = pneg %p321
      %p328 = scmp.eq.s32.totalorder %s29, 1
      %p329 = por %p327, %p328
      %p330 = scmp.ne.s32.totalorder %s322, %s325
      %p331 = scmp.eq.s32.totalorder %s29, 0
      %p332 = por %p330, %p331
      %p333 = scmp.ne.s32.totalorder %s322, %s325
      %p334 = scmp.eq.s32.totalorder %s34, 1
      %p335 = por %p333, %p334
      %p336 = scmp.ne.s32.totalorder %s325, %s326
      %p337 = scmp.eq.s32.totalorder %s34, 0
      %p338 = por %p336, %p337
      %p339 = scmp.ne.s32.totalorder %s325, %s326
      %p340 = scmp.eq.s32.totalorder %s35, 1
      %p341 = por %p339, %p340
      %p343 = scmp.ne.s32.totalorder %s326, %s342
      %p344 = scmp.eq.s32.totalorder %s35, 0
      %p345 = por %p343, %p344
      %p346 = scmp.le.s32.totalorder 1, %s29
      %p347 = scmp.lt.s32.totalorder %s29, 3
      %p348 = pnand %p346, %p347
      %p349 = pneg %p348
      // Predicated region
      $region9: #{tpu_custom_call.1} parent=5 // pred_check
        _
      $region10: #{tpu_custom_call.1} parent=5 // pred_check_branch
        %351 = sbr.rel (%p348) target = $region12
      $region11: #{tpu_custom_call.1} parent=5 // pred_region
        %s352 = ssub.s32 %s29, 1
        // Predicated region
        $region13: #{tpu_custom_call.1} parent=11 // pred_check
          %p353 = pneg %p102
        $region14: #{tpu_custom_call.1} parent=11 // pred_check_branch
          %355 = sbr.rel (%p353) target = $region16
        $region15: #{tpu_custom_call.1} parent=11 // pred_region
          _
        $region16: #{tpu_custom_call.1} parent=11 // pred_fallthru
          _
        // Predicated region
        $region17: #{tpu_custom_call.1} parent=11 // pred_check
          %p356 = pneg %p123
        $region18: #{tpu_custom_call.1} parent=11 // pred_check_branch
          %358 = sbr.rel (%p356) target = $region20
        $region19: #{tpu_custom_call.1} parent=11 // pred_region
          _
        $region20: #{tpu_custom_call.1} parent=11 // pred_fallthru
          _
        // Predicated region
        $region21: #{tpu_custom_call.1} parent=11 // pred_check
          %p359 = pneg %p144
        $region22: #{tpu_custom_call.1} parent=11 // pred_check_branch
          %361 = sbr.rel (%p359) target = $region24
        $region23: #{tpu_custom_call.1} parent=11 // pred_region
          _
        $region24: #{tpu_custom_call.1} parent=11 // pred_fallthru
          _
        // Predicated region
        $region25: #{tpu_custom_call.1} parent=11 // pred_check
          %p362 = pneg %p165
        $region26: #{tpu_custom_call.1} parent=11 // pred_check_branch
          %364 = sbr.rel (%p362) target = $region28
        $region27: #{tpu_custom_call.1} parent=11 // pred_region
          _
        $region28: #{tpu_custom_call.1} parent=11 // pred_fallthru
          _
        // Predicated region
        $region29: #{tpu_custom_call.1} parent=11 // pred_check
          %p365 = pneg %p186
        $region30: #{tpu_custom_call.1} parent=11 // pred_check_branch
          %367 = sbr.rel (%p365) target = $region32
        $region31: #{tpu_custom_call.1} parent=11 // pred_region
          %s369 = ssub.s32 512, 512
          %370 = vsyncadd [#allocation6], %s369
          %s371 = sshll.u32 [#allocation7], 4
          %s372 = int_to_ptr.vmem [resolvable:$true] %s371
          %377 = dma.hbm_to_vmem [thread:$0]  %s6, 512, %s372, [#allocation6], 64, 64, 4
        $region32: #{tpu_custom_call.1} parent=11 // pred_fallthru
          _
        // Predicated region
        $region33: #{tpu_custom_call.1} parent=11 // pred_check
          %p378 = pneg %p207
        $region34: #{tpu_custom_call.1} parent=11 // pred_check_branch
          %380 = sbr.rel (%p378) target = $region36
        $region35: #{tpu_custom_call.1} parent=11 // pred_region
          %s382 = ssub.s32 512, 512
          %383 = vsyncadd [#allocation9], %s382
          %s384 = sshll.u32 [#allocation8], 4
          %s385 = int_to_ptr.vmem [resolvable:$true] %s384
          %390 = dma.hbm_to_vmem [thread:$0]  %s7, 512, %s385, [#allocation9], 64, 64, 4
        $region36: #{tpu_custom_call.1} parent=11 // pred_fallthru
          _
        // Predicated region
        $region37: #{tpu_custom_call.1} parent=11 // pred_check
          %p391 = pneg %p228
        $region38: #{tpu_custom_call.1} parent=11 // pred_check_branch
          %393 = sbr.rel (%p391) target = $region40
        $region39: #{tpu_custom_call.1} parent=11 // pred_region
          _
        $region40: #{tpu_custom_call.1} parent=11 // pred_fallthru
          _
        // Predicated region
        $region41: #{tpu_custom_call.1} parent=11 // pred_check
          %p394 = pneg %p249
        $region42: #{tpu_custom_call.1} parent=11 // pred_check_branch
          %396 = sbr.rel (%p394) target = $region44
        $region43: #{tpu_custom_call.1} parent=11 // pred_region
          _
        $region44: #{tpu_custom_call.1} parent=11 // pred_fallthru
          _
        // Predicated region
        $region45: #{tpu_custom_call.1} parent=11 // pred_check
          %p397 = pneg %p270
        $region46: #{tpu_custom_call.1} parent=11 // pred_check_branch
          %399 = sbr.rel (%p397) target = $region48
        $region47: #{tpu_custom_call.1} parent=11 // pred_region
          _
        $region48: #{tpu_custom_call.1} parent=11 // pred_fallthru
          _
        // Predicated region
        $region49: #{tpu_custom_call.1} parent=11 // pred_check
          %p400 = pneg %p291
        $region50: #{tpu_custom_call.1} parent=11 // pred_check_branch
          %402 = sbr.rel (%p400) target = $region52
        $region51: #{tpu_custom_call.1} parent=11 // pred_region
          _
        $region52: #{tpu_custom_call.1} parent=11 // pred_fallthru
          _
        // Predicated region
        $region53: #{tpu_custom_call.1} parent=11 // pred_check
          %p403 = pneg %p312
        $region54: #{tpu_custom_call.1} parent=11 // pred_check_branch
          %405 = sbr.rel (%p403) target = $region56
        $region55: #{tpu_custom_call.1} parent=11 // pred_region
          _
        $region56: #{tpu_custom_call.1} parent=11 // pred_fallthru
          _
      $region12: #{tpu_custom_call.1} parent=5 // pred_fallthru
        _
      %p406 = scmp.lt.s32.totalorder %s29, 2
      // Predicated region
      $region57: #{tpu_custom_call.1} parent=5 // pred_check
        %p407 = pneg %p406
      $region58: #{tpu_custom_call.1} parent=5 // pred_check_branch
        %409 = sbr.rel (%p407) target = $region60
      $region59: #{tpu_custom_call.1} parent=5 // pred_region
        // Predicated region
        $region61: #{tpu_custom_call.1} parent=59 // pred_check
          %p410 = pneg %p49
        $region62: #{tpu_custom_call.1} parent=59 // pred_check_branch
          %412 = sbr.rel (%p410) target = $region64
        $region63: #{tpu_custom_call.1} parent=59 // pred_region
          %s413 = sand.u32 %s39, 1
          %s414 = scalar_lea.sflag [#allocation3], %s413
          %s415 = sand.u32 %s39, 1
          %s416 = smul.addr %s415, 8
          %s417 = scalar_lea.vmem [#allocation2], %s416
          %s419 = ssub.s32 128, 128
          %420 = vsyncadd %s414, %s419
          %s421 = smul.addr %s29, 128
          %s422 = scalar_lea.hbm %s0, %s421
          %s424 = sshll.u32 %s417, 4
          %s425 = int_to_ptr.vmem [resolvable:$true] %s424
          %427 = dma.hbm_to_vmem [thread:$0]  %s422, 128, %s425, %s414
        $region64: #{tpu_custom_call.1} parent=59 // pred_fallthru
          _
        // Predicated region
        $region65: #{tpu_custom_call.1} parent=59 // pred_check
          %p428 = pneg %p75
        $region66: #{tpu_custom_call.1} parent=59 // pred_check_branch
          %430 = sbr.rel (%p428) target = $region68
        $region67: #{tpu_custom_call.1} parent=59 // pred_region
          %s431 = sand.u32 %s29, 1
          %s432 = scalar_lea.sflag [#allocation6], %s431
          %s433 = sand.u32 %s65, 1
          %s434 = smul.addr %s433, 8
          %s435 = scalar_lea.vmem [#allocation5], %s434
          %s437 = ssub.s32 128, 128
          %438 = vsyncadd %s432, %s437
          %s439 = smul.addr %s29, 128
          %s440 = scalar_lea.hbm %s1, %s439
          %s442 = sshll.u32 %s435, 4
          %s443 = int_to_ptr.vmem [resolvable:$true] %s442
          %445 = dma.hbm_to_vmem [thread:$0]  %s440, 128, %s443, %s432
        $region68: #{tpu_custom_call.1} parent=59 // pred_fallthru
          _
      $region60: #{tpu_custom_call.1} parent=5 // pred_fallthru
        _
      %p446 = scmp.le.s32.totalorder 1, %s29
      %p447 = scmp.lt.s32.totalorder %s29, 3
      %p448 = pnand %p446, %p447
      %p449 = pneg %p448
      // Predicated region
      $region69: #{tpu_custom_call.1} parent=5 // pred_check
        _
      $region70: #{tpu_custom_call.1} parent=5 // pred_check_branch
        %451 = sbr.rel (%p448) target = $region72
      $region71: #{tpu_custom_call.1} parent=5 // pred_region
        %s452 = ssub.s32 %s29, 1
        %s453 = sand.u32 %s42, 1
        %s454 = scalar_lea.sflag [#allocation3], %s453
        %s455 = sand.u32 %s42, 1
        %s456 = smul.addr %s455, 8
        %s457 = scalar_lea.vmem [#allocation2], %s456
        // Predicated region
        $region73: #{tpu_custom_call.1} parent=71 // pred_check
          %p458 = pneg %p55
        $region74: #{tpu_custom_call.1} parent=71 // pred_check_branch
          %460 = sbr.rel (%p458) target = $region76
        $region75: #{tpu_custom_call.1} parent=71 // pred_region
          %461 = dma.done %s454, 128
        $region76: #{tpu_custom_call.1} parent=71 // pred_fallthru
          _
        %s462 = sand.u32 %s34, 1
        %s463 = scalar_lea.sflag [#allocation6], %s462
        %s464 = sand.u32 %s68, 1
        %s465 = smul.addr %s464, 8
        %s466 = scalar_lea.vmem [#allocation5], %s465
        // Predicated region
        $region77: #{tpu_custom_call.1} parent=71 // pred_check
          %p467 = pneg %p81
        $region78: #{tpu_custom_call.1} parent=71 // pred_check_branch
          %469 = sbr.rel (%p467) target = $region80
        $region79: #{tpu_custom_call.1} parent=71 // pred_region
          %470 = dma.done %s463, 128
        $region80: #{tpu_custom_call.1} parent=71 // pred_fallthru
          _
        // Predicated region
        $region81: #{tpu_custom_call.1} parent=71 // pred_check
          %p471 = pneg %p186
        $region82: #{tpu_custom_call.1} parent=71 // pred_check_branch
          %473 = sbr.rel (%p471) target = $region84
        $region83: #{tpu_custom_call.1} parent=71 // pred_region
          %474 = dma.done [#allocation6], 512
        $region84: #{tpu_custom_call.1} parent=71 // pred_fallthru
          _
        // Predicated region
        $region85: #{tpu_custom_call.1} parent=71 // pred_check
          %p475 = pneg %p207
        $region86: #{tpu_custom_call.1} parent=71 // pred_check_branch
          %477 = sbr.rel (%p475) target = $region88
        $region87: #{tpu_custom_call.1} parent=71 // pred_region
          %478 = dma.done [#allocation9], 512
        $region88: #{tpu_custom_call.1} parent=71 // pred_fallthru
          _
        %s479 = sand.u32 %s42, 1
        %s480 = scalar_lea.sflag [#allocation3], %s479
        %s481 = sand.u32 %s42, 1
        %s482 = smul.addr %s481, 8
        %s483 = scalar_lea.vmem [#allocation2], %s482
        %p484 = pneg %p55
        %p485 = pneg %p52
        %s486 = sand.u32 %s34, 1
        %s487 = scalar_lea.sflag [#allocation6], %s486
        %s488 = sand.u32 %s68, 1
        %s489 = smul.addr %s488, 8
        %s490 = scalar_lea.vmem [#allocation5], %s489
        %p491 = pneg %p81
        %p492 = pneg %p78
        %p493 = pneg %p102
        %p494 = pneg %p99
        %p495 = pneg %p123
        %p496 = pneg %p120
        %p497 = pneg %p144
        %p498 = pneg %p141
        %p499 = pneg %p165
        %p500 = pneg %p162
        %p501 = pneg %p186
        %p502 = pneg %p183
        %p503 = pneg %p207
        %p504 = pneg %p204
        %p505 = pneg %p228
        %p506 = pneg %p225
        %p507 = pneg %p249
        %p508 = pneg %p246
        %p509 = pneg %p270
        %p510 = pneg %p267
        %p511 = pneg %p291
        %p512 = pneg %p288
        %p513 = pneg %p312
        %p514 = pneg %p309
        %p515 = pneg %p338
        %p516 = pneg %p335
        %s517 = sand.u32 %s325, 1
        %s518 = scalar_lea.sflag [#allocation4], %s517
        %s519 = sand.u32 %s325, 1
        %s520 = smul.addr %s519, 8
        %s521 = scalar_lea.vmem [#allocation10], %s520
        %v523 = vld [vmem:[%s457] sm:$0xff]
        %v524 = vld [vmem:[%s466] sm:$0xff]
        %v525 = vlaneseq
        %v526 = vshrl.u32 %v525, 7
        %v527 = vlaneseq
        %v528 = vand.u32 %v527, 127
        %vm529 = vcmp.le.s32.totalorder %v528, %v526
        %v530 = vsel %vm529, 0.0, -1e+30
        %v531 = vld [vmem:[%s12] sm:$0xff]
        %v532 = vld [vmem:[%s12 + $0x8] sm:$0x3]
        %v533 = vld [vmem:[%s2] sm:$0xf]
        %v534 = vld [vmem:[%s2 + $0x4] sm:$0xf]
        %v535 = vld [vmem:[%s2 + $0x8] sm:$0xf]
        %v536 = vld [vmem:[%s2 + $0xc] sm:$0xf]
        %v537 = vpack.c.bf16 %v523, %v523
        %v538 = vld [vmem:[%s9] sm:$0x1]
        %v540 = vlaneseq
        %v541 = vshrl.u32 %v540, 7
        %v542 = vsub.s32 0, %v541
        %v543 = vrot.slane %v538, %v542
        %v549 = vunpack.c.l.b16 %v533
        %v550 = vunpack.c.l.b16 %v534
        %v551 = vunpack.c.l.b16 %v535
        %v552 = vunpack.c.l.b16 %v536
        %v553 = vpack.c.b16 %v550, %v549
        %v554 = vpack.c.b16 %v552, %v551
        %vm557 = vcmask 261120
        %v559 = vsel %vm557, %v537, 0
        %561 = vmatprep.subr.bf16.mxu0 0
        %562 = vmatpush1.bf16.msra.mxu0 0
        %563 = vmatprep.subr.bf16.mxu0 0
        %564 = vmatpush1.bf16.msra.mxu0 0
        %565 = vmatprep.subr.bf16.mxu0 0
        %566 = vmatpush1.bf16.msra.mxu0 0
        %567 = vmatprep.subr.bf16.mxu0 0
        %568 = vmatpush1.bf16.msra.mxu0 0
        %569 = vmatprep.subr.bf16.mxu0 0
        %570 = vmatpush1.bf16.msra.mxu0 0
        %571 = vmatprep.subr.bf16.mxu0 0
        %572 = vmatpush1.bf16.msra.mxu0 0
        %573 = vmatprep.subr.bf16.mxu0 0
        %574 = vmatpush1.bf16.msra.mxu0 %v554
        %575 = vmatprep.subr.bf16.mxu0 0
        %576 = vmatpush1.bf16.msra.mxu0 %v553
        %577 = vmatprep.subr.bf16.mxu0 0
        %578 = vmatpush2.bf16.msra.mxu0 0
        %579 = vmatprep.subr.bf16.mxu0 0
        %580 = vmatpush2.bf16.msra.mxu0 0
        %581 = vmatprep.subr.bf16.mxu0 0
        %582 = vmatpush2.bf16.msra.mxu0 0
        %583 = vmatprep.subr.bf16.mxu0 0
        %584 = vmatpush2.bf16.msra.mxu0 0
        %585 = vmatprep.subr.bf16.mxu0 0
        %586 = vmatpush2.bf16.msra.mxu0 0
        %587 = vmatprep.subr.bf16.mxu0 0
        %588 = vmatpush2.bf16.msra.mxu0 0
        %589 = vmatprep.subr.bf16.mxu0 0
        %590 = vmatpush2.bf16.msra.mxu0 0
        %591 = vmatprep.subr.bf16.mxu0 0
        %592 = vmatpush2.bf16.msra.mxu0 0
        %593 = vmatprep.mubr.bf16.mxu0 0
        %594 = vmatmul.mubr.bf16.gmra.mxu0 %v559
        %v595 = vpop.f32.mrf.mxu0
        %v596 = vadd.f32 %v543, %v595
        %v597 = vpop.f32.mrf.mxu0
        %v598 = vpop.f32.mrf.mxu0
        %v599 = vpop.f32.mrf.mxu0
        %600 = vdwg.mxu0
        %601 = vxpose.xlu0.b32.start [1/16] %v596, 128
        %602 = vxpose.xlu0.b32.cont [2/16] 0.0, 128
        %603 = vxpose.xlu0.b32.cont [3/16] 0.0, 128
        %604 = vxpose.xlu0.b32.cont [4/16] 0.0, 128
        %605 = vxpose.xlu0.b32.cont [5/16] 0.0, 128
        %606 = vxpose.xlu0.b32.cont [6/16] 0.0, 128
        %607 = vxpose.xlu0.b32.cont [7/16] 0.0, 128
        %608 = vxpose.xlu0.b32.cont [8/16] 0.0, 128
        %609 = vxpose.xlu0.b32.cont [9/16] 0.0, 128
        %610 = vxpose.xlu0.b32.cont [10/16] 0.0, 128
        %611 = vxpose.xlu0.b32.cont [11/16] 0.0, 128
        %612 = vxpose.xlu0.b32.cont [12/16] 0.0, 128
        %613 = vxpose.xlu0.b32.cont [13/16] 0.0, 128
        %614 = vxpose.xlu0.b32.cont [14/16] 0.0, 128
        %615 = vxpose.xlu0.b32.cont [15/16] 0.0, 128
        %616 = vxpose.xlu0.b32.end [16/16] 0.0, 128
        %v617 = vpop.trf.xlu0
        %v618 = vpop.trf.xlu0
        %v619 = vpop.trf.xlu0
        %v620 = vpop.trf.xlu0
        %v621 = vpop.trf.xlu0
        %v622 = vpop.trf.xlu0
        %v623 = vpop.trf.xlu0
        %v624 = vpop.trf.xlu0
        %v625 = vpop.trf.xlu0
        %v626 = vpop.trf.xlu0
        %v627 = vpop.trf.xlu0
        %v628 = vpop.trf.xlu0
        %v629 = vpop.trf.xlu0
        %v630 = vpop.trf.xlu0
        %v631 = vpop.trf.xlu0
        %v632 = vpop.trf.xlu0
        %634 = vrot.lane.b32.xlu0 %v596, 120
        %v635 = vpop.permute.xlu0 %634
        %637 = vrot.lane.b32.xlu0 %v596, 112
        %v638 = vpop.permute.xlu0 %637
        %640 = vrot.lane.b32.xlu0 %v596, 104
        %v641 = vpop.permute.xlu0 %640
        %v643 = vpack.c.bf16 %v596, %v596
        %v644 = vpack.c.bf16 %v635, %v635
        %v645 = vpack.c.bf16 %v638, %v638
        %v646 = vpack.c.bf16 %v641, %v641
        %v647 = vpack.c.bf16 %v621, %v621
        %v648 = vpack.c.bf16 %v622, %v622
        %v649 = vpack.c.bf16 %v623, %v623
        %v650 = vpack.c.bf16 %v624, %v624
        %v651 = vpack.c.bf16 %v625, %v625
        %v652 = vpack.c.bf16 %v626, %v626
        %v653 = vpack.c.bf16 %v627, %v627
        %v654 = vpack.c.bf16 %v628, %v628
        %vm655 = vcmask 64512
        %v657 = vsel %vm655, %v643, 0
        %vm659 = vcmask 1043456
        %v661 = vsel %vm659, %v647, 0
        %663 = vmatprep.subr.bf16.mxu0 0
        %664 = vmatpush1.bf16.msra.mxu0 0
        %665 = vmatprep.subr.bf16.mxu0 0
        %666 = vmatpush1.bf16.msra.mxu0 0
        %667 = vmatprep.subr.bf16.mxu0 0
        %668 = vmatpush1.bf16.msra.mxu0 0
        %669 = vmatprep.subr.bf16.mxu0 0
        %670 = vmatpush1.bf16.msra.mxu0 0
        %671 = vmatprep.subr.bf16.mxu0 0
        %672 = vmatpush1.bf16.msra.mxu0 0
        %673 = vmatprep.subr.bf16.mxu0 0
        %674 = vmatpush1.bf16.msra.mxu0 0
        %675 = vmatprep.subr.bf16.mxu0 0
        %676 = vmatpush1.bf16.msra.mxu0 0
        %677 = vmatprep.subr.bf16.mxu0 0
        %678 = vmatpush1.bf16.msra.mxu0 %v661
        %679 = vmatprep.subr.bf16.mxu0 0
        %680 = vmatpush2.bf16.msra.mxu0 0
        %681 = vmatprep.subr.bf16.mxu0 0
        %682 = vmatpush2.bf16.msra.mxu0 0
        %683 = vmatprep.subr.bf16.mxu0 0
        %684 = vmatpush2.bf16.msra.mxu0 0
        %685 = vmatprep.subr.bf16.mxu0 0
        %686 = vmatpush2.bf16.msra.mxu0 0
        %687 = vmatprep.subr.bf16.mxu0 0
        %688 = vmatpush2.bf16.msra.mxu0 0
        %689 = vmatprep.subr.bf16.mxu0 0
        %690 = vmatpush2.bf16.msra.mxu0 0
        %691 = vmatprep.subr.bf16.mxu0 0
        %692 = vmatpush2.bf16.msra.mxu0 0
        %693 = vmatprep.subr.bf16.mxu0 0
        %694 = vmatpush2.bf16.msra.mxu0 0
        %695 = vmatprep.mubr.bf16.mxu0 0
        %696 = vmatmul.mubr.bf16.gmra.mxu0 %v657
        %v697 = vpop.f32.mrf.mxu0
        %v698 = vadd.f32 0.0, %v697
        %v699 = vpop.f32.mrf.mxu0
        %v700 = vpop.f32.mrf.mxu0
        %v701 = vpop.f32.mrf.mxu0
        %702 = vdwg.mxu0
        %v704 = vsel %vm655, %v644, 0
        %v707 = vsel %vm659, %v648, 0
        %709 = vmatprep.subr.bf16.mxu0 0
        %710 = vmatpush1.bf16.msra.mxu0 0
        %711 = vmatprep.subr.bf16.mxu0 0
        %712 = vmatpush1.bf16.msra.mxu0 0
        %713 = vmatprep.subr.bf16.mxu0 0
        %714 = vmatpush1.bf16.msra.mxu0 0
        %715 = vmatprep.subr.bf16.mxu0 0
        %716 = vmatpush1.bf16.msra.mxu0 0
        %717 = vmatprep.subr.bf16.mxu0 0
        %718 = vmatpush1.bf16.msra.mxu0 0
        %719 = vmatprep.subr.bf16.mxu0 0
        %720 = vmatpush1.bf16.msra.mxu0 0
        %721 = vmatprep.subr.bf16.mxu0 0
        %722 = vmatpush1.bf16.msra.mxu0 0
        %723 = vmatprep.subr.bf16.mxu0 0
        %724 = vmatpush1.bf16.msra.mxu0 %v707
        %725 = vmatprep.subr.bf16.mxu0 0
        %726 = vmatpush2.bf16.msra.mxu0 0
        %727 = vmatprep.subr.bf16.mxu0 0
        %728 = vmatpush2.bf16.msra.mxu0 0
        %729 = vmatprep.subr.bf16.mxu0 0
        %730 = vmatpush2.bf16.msra.mxu0 0
        %731 = vmatprep.subr.bf16.mxu0 0
        %732 = vmatpush2.bf16.msra.mxu0 0
        %733 = vmatprep.subr.bf16.mxu0 0
        %734 = vmatpush2.bf16.msra.mxu0 0
        %735 = vmatprep.subr.bf16.mxu0 0
        %736 = vmatpush2.bf16.msra.mxu0 0
        %737 = vmatprep.subr.bf16.mxu0 0
        %738 = vmatpush2.bf16.msra.mxu0 0
        %739 = vmatprep.subr.bf16.mxu0 0
        %740 = vmatpush2.bf16.msra.mxu0 0
        %741 = vmatprep.mubr.bf16.mxu0 0
        %742 = vmatmul.mubr.bf16.gmra.mxu0 %v704
        %v743 = vpop.f32.mrf.mxu0
        %v744 = vadd.f32 0.0, %v743
        %v745 = vpop.f32.mrf.mxu0
        %v746 = vpop.f32.mrf.mxu0
        %v747 = vpop.f32.mrf.mxu0
        %748 = vdwg.mxu0
        %v750 = vsel %vm655, %v645, 0
        %v753 = vsel %vm659, %v649, 0
        %755 = vmatprep.subr.bf16.mxu0 0
        %756 = vmatpush1.bf16.msra.mxu0 0
        %757 = vmatprep.subr.bf16.mxu0 0
        %758 = vmatpush1.bf16.msra.mxu0 0
        %759 = vmatprep.subr.bf16.mxu0 0
        %760 = vmatpush1.bf16.msra.mxu0 0
        %761 = vmatprep.subr.bf16.mxu0 0
        %762 = vmatpush1.bf16.msra.mxu0 0
        %763 = vmatprep.subr.bf16.mxu0 0
        %764 = vmatpush1.bf16.msra.mxu0 0
        %765 = vmatprep.subr.bf16.mxu0 0
        %766 = vmatpush1.bf16.msra.mxu0 0
        %767 = vmatprep.subr.bf16.mxu0 0
        %768 = vmatpush1.bf16.msra.mxu0 0
        %769 = vmatprep.subr.bf16.mxu0 0
        %770 = vmatpush1.bf16.msra.mxu0 %v753
        %771 = vmatprep.subr.bf16.mxu0 0
        %772 = vmatpush2.bf16.msra.mxu0 0
        %773 = vmatprep.subr.bf16.mxu0 0
        %774 = vmatpush2.bf16.msra.mxu0 0
        %775 = vmatprep.subr.bf16.mxu0 0
        %776 = vmatpush2.bf16.msra.mxu0 0
        %777 = vmatprep.subr.bf16.mxu0 0
        %778 = vmatpush2.bf16.msra.mxu0 0
        %779 = vmatprep.subr.bf16.mxu0 0
        %780 = vmatpush2.bf16.msra.mxu0 0
        %781 = vmatprep.subr.bf16.mxu0 0
        %782 = vmatpush2.bf16.msra.mxu0 0
        %783 = vmatprep.subr.bf16.mxu0 0
        %784 = vmatpush2.bf16.msra.mxu0 0
        %785 = vmatprep.subr.bf16.mxu0 0
        %786 = vmatpush2.bf16.msra.mxu0 0
        %787 = vmatprep.mubr.bf16.mxu0 0
        %788 = vmatmul.mubr.bf16.gmra.mxu0 %v750
        %v789 = vpop.f32.mrf.mxu0
        %v790 = vadd.f32 0.0, %v789
        %v791 = vpop.f32.mrf.mxu0
        %v792 = vpop.f32.mrf.mxu0
        %v793 = vpop.f32.mrf.mxu0
        %794 = vdwg.mxu0
        %v796 = vsel %vm655, %v646, 0
        %v799 = vsel %vm659, %v650, 0
        %801 = vmatprep.subr.bf16.mxu0 0
        %802 = vmatpush1.bf16.msra.mxu0 0
        %803 = vmatprep.subr.bf16.mxu0 0
        %804 = vmatpush1.bf16.msra.mxu0 0
        %805 = vmatprep.subr.bf16.mxu0 0
        %806 = vmatpush1.bf16.msra.mxu0 0
        %807 = vmatprep.subr.bf16.mxu0 0
        %808 = vmatpush1.bf16.msra.mxu0 0
        %809 = vmatprep.subr.bf16.mxu0 0
        %810 = vmatpush1.bf16.msra.mxu0 0
        %811 = vmatprep.subr.bf16.mxu0 0
        %812 = vmatpush1.bf16.msra.mxu0 0
        %813 = vmatprep.subr.bf16.mxu0 0
        %814 = vmatpush1.bf16.msra.mxu0 0
        %815 = vmatprep.subr.bf16.mxu0 0
        %816 = vmatpush1.bf16.msra.mxu0 %v799
        %817 = vmatprep.subr.bf16.mxu0 0
        %818 = vmatpush2.bf16.msra.mxu0 0
        %819 = vmatprep.subr.bf16.mxu0 0
        %820 = vmatpush2.bf16.msra.mxu0 0
        %821 = vmatprep.subr.bf16.mxu0 0
        %822 = vmatpush2.bf16.msra.mxu0 0
        %823 = vmatprep.subr.bf16.mxu0 0
        %824 = vmatpush2.bf16.msra.mxu0 0
        %825 = vmatprep.subr.bf16.mxu0 0
        %826 = vmatpush2.bf16.msra.mxu0 0
        %827 = vmatprep.subr.bf16.mxu0 0
        %828 = vmatpush2.bf16.msra.mxu0 0
        %829 = vmatprep.subr.bf16.mxu0 0
        %830 = vmatpush2.bf16.msra.mxu0 0
        %831 = vmatprep.subr.bf16.mxu0 0
        %832 = vmatpush2.bf16.msra.mxu0 0
        %833 = vmatprep.mubr.bf16.mxu0 0
        %834 = vmatmul.mubr.bf16.gmra.mxu0 %v796
        %v835 = vpop.f32.mrf.mxu0
        %v836 = vadd.f32 0.0, %v835
        %v837 = vpop.f32.mrf.mxu0
        %v838 = vpop.f32.mrf.mxu0
        %v839 = vpop.f32.mrf.mxu0
        %840 = vdwg.mxu0
        %v841 = vmul.f32 %v698, 0.35355338
        %v842 = vmul.f32 %v744, 0.35355338
        %v843 = vmul.f32 %v790, 0.35355338
        %v844 = vmul.f32 %v836, 0.35355338
        %v845 = vadd.f32 %v841, %v530
        %v846 = vadd.f32 %v842, %v530
        %v847 = vadd.f32 %v843, %v530
        %v848 = vadd.f32 %v844, %v530
        %v849 = vsel %vm655, %v845, -inf
        %850 = vmax.xlane.f32.xlu0 %v849
        %v851 = vpop.xlane.xlu0 %850
        %v852 = vsel %vm655, %v846, -inf
        %853 = vmax.xlane.f32.xlu0 %v852
        %v854 = vpop.xlane.xlu0 %853
        %v855 = vsel %vm655, %v847, -inf
        %856 = vmax.xlane.f32.xlu0 %v855
        %v857 = vpop.xlane.xlu0 %856
        %v858 = vsel %vm655, %v848, -inf
        %859 = vmax.xlane.f32.xlu0 %v858
        %v860 = vpop.xlane.xlu0 %859
        %v861 = vsub.f32 %v845, %v851
        %v862 = vsub.f32 %v846, %v854
        %v863 = vsub.f32 %v847, %v857
        %v864 = vsub.f32 %v848, %v860
        %v865 = vmul.f32 %v861, 1.442695
        %v866 = vpow.pop %v865
        %v867 = vmul.f32 %v862, 1.442695
        %v868 = vpow.pop %v867
        %v869 = vmul.f32 %v863, 1.442695
        %v870 = vpow.pop %v869
        %v871 = vmul.f32 %v864, 1.442695
        %v872 = vpow.pop %v871
        %v873 = vsel %vm655, %v866, 0.0
        %874 = vadd.xlane.f32.xlu0 %v873
        %v875 = vpop.xlane.xlu0 %874
        %v876 = vsel %vm655, %v868, 0.0
        %877 = vadd.xlane.f32.xlu0 %v876
        %v878 = vpop.xlane.xlu0 %877
        %v879 = vsel %vm655, %v870, 0.0
        %880 = vadd.xlane.f32.xlu0 %v879
        %v881 = vpop.xlane.xlu0 %880
        %v882 = vsel %vm655, %v872, 0.0
        %883 = vadd.xlane.f32.xlu0 %v882
        %v884 = vpop.xlane.xlu0 %883
        %v885 = vrcp.pop %v875
        %v886 = vrcp.pop %v878
        %v887 = vrcp.pop %v881
        %v888 = vrcp.pop %v884
        %v889 = vmul.f32 %v866, %v885
        %v890 = vmul.f32 %v868, %v886
        %v891 = vmul.f32 %v870, %v887
        %v892 = vmul.f32 %v872, %v888
        %v893 = vpack.c.bf16 %v889, %v889
        %v894 = vpack.c.bf16 %v890, %v890
        %v895 = vpack.c.bf16 %v891, %v891
        %v896 = vpack.c.bf16 %v892, %v892
        %v898 = vsel %vm655, %v651, 0
        %v901 = vsel %vm655, %v893, 0
        %903 = vmatprep.subr.bf16.mxu0 0
        %904 = vmatpush1.bf16.xpose.msra.mxu0 0
        %905 = vmatprep.subr.bf16.mxu0 0
        %906 = vmatpush1.bf16.xpose.msra.mxu0 0
        %907 = vmatprep.subr.bf16.mxu0 0
        %908 = vmatpush1.bf16.xpose.msra.mxu0 0
        %909 = vmatprep.subr.bf16.mxu0 0
        %910 = vmatpush1.bf16.xpose.msra.mxu0 0
        %911 = vmatprep.subr.bf16.mxu0 0
        %912 = vmatpush1.bf16.xpose.msra.mxu0 0
        %913 = vmatprep.subr.bf16.mxu0 0
        %914 = vmatpush1.bf16.xpose.msra.mxu0 0
        %915 = vmatprep.subr.bf16.mxu0 0
        %916 = vmatpush1.bf16.xpose.msra.mxu0 0
        %917 = vmatprep.subr.bf16.mxu0 0
        %918 = vmatpush1.bf16.xpose.msra.mxu0 %v901
        %919 = vmatprep.subr.bf16.mxu0 0
        %920 = vmatpush2.bf16.xpose.msra.mxu0 0
        %921 = vmatprep.subr.bf16.mxu0 0
        %922 = vmatpush2.bf16.xpose.msra.mxu0 0
        %923 = vmatprep.subr.bf16.mxu0 0
        %924 = vmatpush2.bf16.xpose.msra.mxu0 0
        %925 = vmatprep.subr.bf16.mxu0 0
        %926 = vmatpush2.bf16.xpose.msra.mxu0 0
        %927 = vmatprep.subr.bf16.mxu0 0
        %928 = vmatpush2.bf16.xpose.msra.mxu0 0
        %929 = vmatprep.subr.bf16.mxu0 0
        %930 = vmatpush2.bf16.xpose.msra.mxu0 0
        %931 = vmatprep.subr.bf16.mxu0 0
        %932 = vmatpush2.bf16.xpose.msra.mxu0 0
        %933 = vmatprep.subr.bf16.mxu0 0
        %934 = vmatpush2.bf16.xpose.msra.mxu0 0
        %935 = vmatprep.mubr.bf16.mxu0 0
        %936 = vmatmul.mubr.bf16.gmra.mxu0 %v898
        %v937 = vpop.f32.mrf.mxu0
        %v938 = vadd.f32 0.0, %v937
        %v939 = vpop.f32.mrf.mxu0
        %v940 = vpop.f32.mrf.mxu0
        %v941 = vpop.f32.mrf.mxu0
        %942 = vdwg.mxu0
        %v944 = vsel %vm655, %v652, 0
        %v947 = vsel %vm655, %v894, 0
        %949 = vmatprep.subr.bf16.mxu0 0
        %950 = vmatpush1.bf16.xpose.msra.mxu0 0
        %951 = vmatprep.subr.bf16.mxu0 0
        %952 = vmatpush1.bf16.xpose.msra.mxu0 0
        %953 = vmatprep.subr.bf16.mxu0 0
        %954 = vmatpush1.bf16.xpose.msra.mxu0 0
        %955 = vmatprep.subr.bf16.mxu0 0
        %956 = vmatpush1.bf16.xpose.msra.mxu0 0
        %957 = vmatprep.subr.bf16.mxu0 0
        %958 = vmatpush1.bf16.xpose.msra.mxu0 0
        %959 = vmatprep.subr.bf16.mxu0 0
        %960 = vmatpush1.bf16.xpose.msra.mxu0 0
        %961 = vmatprep.subr.bf16.mxu0 0
        %962 = vmatpush1.bf16.xpose.msra.mxu0 0
        %963 = vmatprep.subr.bf16.mxu0 0
        %964 = vmatpush1.bf16.xpose.msra.mxu0 %v947
        %965 = vmatprep.subr.bf16.mxu0 0
        %966 = vmatpush2.bf16.xpose.msra.mxu0 0
        %967 = vmatprep.subr.bf16.mxu0 0
        %968 = vmatpush2.bf16.xpose.msra.mxu0 0
        %969 = vmatprep.subr.bf16.mxu0 0
        %970 = vmatpush2.bf16.xpose.msra.mxu0 0
        %971 = vmatprep.subr.bf16.mxu0 0
        %972 = vmatpush2.bf16.xpose.msra.mxu0 0
        %973 = vmatprep.subr.bf16.mxu0 0
        %974 = vmatpush2.bf16.xpose.msra.mxu0 0
        %975 = vmatprep.subr.bf16.mxu0 0
        %976 = vmatpush2.bf16.xpose.msra.mxu0 0
        %977 = vmatprep.subr.bf16.mxu0 0
        %978 = vmatpush2.bf16.xpose.msra.mxu0 0
        %979 = vmatprep.subr.bf16.mxu0 0
        %980 = vmatpush2.bf16.xpose.msra.mxu0 0
        %981 = vmatprep.mubr.bf16.mxu0 0
        %982 = vmatmul.mubr.bf16.gmra.mxu0 %v944
        %v983 = vpop.f32.mrf.mxu0
        %v984 = vadd.f32 0.0, %v983
        %v985 = vpop.f32.mrf.mxu0
        %v986 = vpop.f32.mrf.mxu0
        %v987 = vpop.f32.mrf.mxu0
        %988 = vdwg.mxu0
        %v990 = vsel %vm655, %v653, 0
        %v993 = vsel %vm655, %v895, 0
        %995 = vmatprep.subr.bf16.mxu0 0
        %996 = vmatpush1.bf16.xpose.msra.mxu0 0
        %997 = vmatprep.subr.bf16.mxu0 0
        %998 = vmatpush1.bf16.xpose.msra.mxu0 0
        %999 = vmatprep.subr.bf16.mxu0 0
        %1000 = vmatpush1.bf16.xpose.msra.mxu0 0
        %1001 = vmatprep.subr.bf16.mxu0 0
        %1002 = vmatpush1.bf16.xpose.msra.mxu0 0
        %1003 = vmatprep.subr.bf16.mxu0 0
        %1004 = vmatpush1.bf16.xpose.msra.mxu0 0
        %1005 = vmatprep.subr.bf16.mxu0 0
        %1006 = vmatpush1.bf16.xpose.msra.mxu0 0
        %1007 = vmatprep.subr.bf16.mxu0 0
        %1008 = vmatpush1.bf16.xpose.msra.mxu0 0
        %1009 = vmatprep.subr.bf16.mxu0 0
        %1010 = vmatpush1.bf16.xpose.msra.mxu0 %v993
        %1011 = vmatprep.subr.bf16.mxu0 0
        %1012 = vmatpush2.bf16.xpose.msra.mxu0 0
        %1013 = vmatprep.subr.bf16.mxu0 0
        %1014 = vmatpush2.bf16.xpose.msra.mxu0 0
        %1015 = vmatprep.subr.bf16.mxu0 0
        %1016 = vmatpush2.bf16.xpose.msra.mxu0 0
        %1017 = vmatprep.subr.bf16.mxu0 0
        %1018 = vmatpush2.bf16.xpose.msra.mxu0 0
        %1019 = vmatprep.subr.bf16.mxu0 0
        %1020 = vmatpush2.bf16.xpose.msra.mxu0 0
        %1021 = vmatprep.subr.bf16.mxu0 0
        %1022 = vmatpush2.bf16.xpose.msra.mxu0 0
        %1023 = vmatprep.subr.bf16.mxu0 0
        %1024 = vmatpush2.bf16.xpose.msra.mxu0 0
        %1025 = vmatprep.subr.bf16.mxu0 0
        %1026 = vmatpush2.bf16.xpose.msra.mxu0 0
        %1027 = vmatprep.mubr.bf16.mxu0 0
        %1028 = vmatmul.mubr.bf16.gmra.mxu0 %v990
        %v1029 = vpop.f32.mrf.mxu0
        %v1030 = vadd.f32 0.0, %v1029
        %v1031 = vpop.f32.mrf.mxu0
        %v1032 = vpop.f32.mrf.mxu0
        %v1033 = vpop.f32.mrf.mxu0
        %1034 = vdwg.mxu0
        %v1036 = vsel %vm655, %v654, 0
        %v1039 = vsel %vm655, %v896, 0
        %1041 = vmatprep.subr.bf16.mxu0 0
        %1042 = vmatpush1.bf16.xpose.msra.mxu0 0
        %1043 = vmatprep.subr.bf16.mxu0 0
        %1044 = vmatpush1.bf16.xpose.msra.mxu0 0
        %1045 = vmatprep.subr.bf16.mxu0 0
        %1046 = vmatpush1.bf16.xpose.msra.mxu0 0
        %1047 = vmatprep.subr.bf16.mxu0 0
        %1048 = vmatpush1.bf16.xpose.msra.mxu0 0
        %1049 = vmatprep.subr.bf16.mxu0 0
        %1050 = vmatpush1.bf16.xpose.msra.mxu0 0
        %1051 = vmatprep.subr.bf16.mxu0 0
        %1052 = vmatpush1.bf16.xpose.msra.mxu0 0
        %1053 = vmatprep.subr.bf16.mxu0 0
        %1054 = vmatpush1.bf16.xpose.msra.mxu0 0
        %1055 = vmatprep.subr.bf16.mxu0 0
        %1056 = vmatpush1.bf16.xpose.msra.mxu0 %v1039
        %1057 = vmatprep.subr.bf16.mxu0 0
        %1058 = vmatpush2.bf16.xpose.msra.mxu0 0
        %1059 = vmatprep.subr.bf16.mxu0 0
        %1060 = vmatpush2.bf16.xpose.msra.mxu0 0
        %1061 = vmatprep.subr.bf16.mxu0 0
        %1062 = vmatpush2.bf16.xpose.msra.mxu0 0
        %1063 = vmatprep.subr.bf16.mxu0 0
        %1064 = vmatpush2.bf16.xpose.msra.mxu0 0
        %1065 = vmatprep.subr.bf16.mxu0 0
        %1066 = vmatpush2.bf16.xpose.msra.mxu0 0
        %1067 = vmatprep.subr.bf16.mxu0 0
        %1068 = vmatpush2.bf16.xpose.msra.mxu0 0
        %1069 = vmatprep.subr.bf16.mxu0 0
        %1070 = vmatpush2.bf16.xpose.msra.mxu0 0
        %1071 = vmatprep.subr.bf16.mxu0 0
        %1072 = vmatpush2.bf16.xpose.msra.mxu0 0
        %1073 = vmatprep.mubr.bf16.mxu0 0
        %1074 = vmatmul.mubr.bf16.gmra.mxu0 %v1036
        %v1075 = vpop.f32.mrf.mxu0
        %v1076 = vadd.f32 0.0, %v1075
        %v1077 = vpop.f32.mrf.mxu0
        %v1078 = vpop.f32.mrf.mxu0
        %v1079 = vpop.f32.mrf.mxu0
        %1080 = vdwg.mxu0
        %1081 = vxpose.xlu0.b32.start [1/16] %v938, 128
        %1082 = vxpose.xlu0.b32.cont [2/16] %v984, 128
        %1083 = vxpose.xlu0.b32.cont [3/16] %v1030, 128
        %1084 = vxpose.xlu0.b32.cont [4/16] %v1076, 128
        %1085 = vxpose.xlu0.b32.cont [5/16] 0.0, 128
        %1086 = vxpose.xlu0.b32.cont [6/16] 0.0, 128
        %1087 = vxpose.xlu0.b32.cont [7/16] 0.0, 128
        %1088 = vxpose.xlu0.b32.cont [8/16] 0.0, 128
        %1089 = vxpose.xlu0.b32.cont [9/16] 0.0, 128
        %1090 = vxpose.xlu0.b32.cont [10/16] 0.0, 128
        %1091 = vxpose.xlu0.b32.cont [11/16] 0.0, 128
        %1092 = vxpose.xlu0.b32.cont [12/16] 0.0, 128
        %1093 = vxpose.xlu0.b32.cont [13/16] 0.0, 128
        %1094 = vxpose.xlu0.b32.cont [14/16] 0.0, 128
        %1095 = vxpose.xlu0.b32.cont [15/16] 0.0, 128
        %1096 = vxpose.xlu0.b32.end [16/16] 0.0, 128
        %v1097 = vpop.trf.xlu0
        %v1098 = vpop.trf.xlu0
        %v1099 = vpop.trf.xlu0
        %v1100 = vpop.trf.xlu0
        %v1101 = vpop.trf.xlu0
        %v1102 = vpop.trf.xlu0
        %v1103 = vpop.trf.xlu0
        %v1104 = vpop.trf.xlu0
        %v1105 = vpop.trf.xlu0
        %v1106 = vpop.trf.xlu0
        %v1107 = vpop.trf.xlu0
        %v1108 = vpop.trf.xlu0
        %v1109 = vpop.trf.xlu0
        %v1110 = vpop.trf.xlu0
        %v1111 = vpop.trf.xlu0
        %v1112 = vpop.trf.xlu0
        %v1113 = vld [vmem:[%s3] sm:$0xf]
        %v1114 = vld [vmem:[%s3 + $0x4] sm:$0xf]
        %v1115 = vld [vmem:[%s3 + $0x8] sm:$0xf]
        %v1116 = vld [vmem:[%s3 + $0xc] sm:$0xf]
        %v1117 = vpack.c.bf16 %v1097, %v1097
        %v1118 = vlaneseq
        %v1119 = vshrl.u32 %v1118, 7
        %v1120 = vsub.s32 1, %v1119
        %v1121 = vrot.slane %v531, %v1120
        %v1126 = vunpack.c.l.b16 %v1113
        %v1127 = vunpack.c.l.b16 %v1114
        %v1128 = vunpack.c.l.b16 %v1115
        %v1129 = vunpack.c.l.b16 %v1116
        %v1130 = vpack.c.b16 %v1127, %v1126
        %v1131 = vpack.c.b16 %v1129, %v1128
        %v1135 = vsel %vm557, %v1117, 0
        %1137 = vmatprep.subr.bf16.mxu0 0
        %1138 = vmatpush1.bf16.msra.mxu0 0
        %1139 = vmatprep.subr.bf16.mxu0 0
        %1140 = vmatpush1.bf16.msra.mxu0 0
        %1141 = vmatprep.subr.bf16.mxu0 0
        %1142 = vmatpush1.bf16.msra.mxu0 0
        %1143 = vmatprep.subr.bf16.mxu0 0
        %1144 = vmatpush1.bf16.msra.mxu0 0
        %1145 = vmatprep.subr.bf16.mxu0 0
        %1146 = vmatpush1.bf16.msra.mxu0 0
        %1147 = vmatprep.subr.bf16.mxu0 0
        %1148 = vmatpush1.bf16.msra.mxu0 0
        %1149 = vmatprep.subr.bf16.mxu0 0
        %1150 = vmatpush1.bf16.msra.mxu0 %v1131
        %1151 = vmatprep.subr.bf16.mxu0 0
        %1152 = vmatpush1.bf16.msra.mxu0 %v1130
        %1153 = vmatprep.subr.bf16.mxu0 0
        %1154 = vmatpush2.bf16.msra.mxu0 0
        %1155 = vmatprep.subr.bf16.mxu0 0
        %1156 = vmatpush2.bf16.msra.mxu0 0
        %1157 = vmatprep.subr.bf16.mxu0 0
        %1158 = vmatpush2.bf16.msra.mxu0 0
        %1159 = vmatprep.subr.bf16.mxu0 0
        %1160 = vmatpush2.bf16.msra.mxu0 0
        %1161 = vmatprep.subr.bf16.mxu0 0
        %1162 = vmatpush2.bf16.msra.mxu0 0
        %1163 = vmatprep.subr.bf16.mxu0 0
        %1164 = vmatpush2.bf16.msra.mxu0 0
        %1165 = vmatprep.subr.bf16.mxu0 0
        %1166 = vmatpush2.bf16.msra.mxu0 0
        %1167 = vmatprep.subr.bf16.mxu0 0
        %1168 = vmatpush2.bf16.msra.mxu0 0
        %1169 = vmatprep.mubr.bf16.mxu0 0
        %1170 = vmatmul.mubr.bf16.gmra.mxu0 %v1135
        %v1171 = vpop.f32.mrf.mxu0
        %v1172 = vadd.f32 %v1121, %v1171
        %v1173 = vpop.f32.mrf.mxu0
        %v1174 = vpop.f32.mrf.mxu0
        %v1175 = vpop.f32.mrf.mxu0
        %1176 = vdwg.mxu0
        %v1177 = vadd.f32 %v523, %v1172
        %v1178 = vsel %vm557, %v1177, 0.0
        %1179 = vadd.xlane.f32.xlu0 %v1178
        %v1180 = vpop.xlane.xlu0 %1179
        %v1181 = vrcp.pop 32.0
        %v1182 = vmul.f32 %v1180, %v1181
        %v1183 = vmul.f32 %v1177, %v1177
        %v1184 = vsel %vm557, %v1183, 0.0
        %1185 = vadd.xlane.f32.xlu0 %v1184
        %v1186 = vpop.xlane.xlu0 %1185
        %v1187 = vmul.f32 %v1186, %v1181
        %v1188 = vmul.f32 %v1182, %v1182
        %v1189 = vsub.f32 %v1187, %v1188
        %v1190 = vsub.f32 %v1177, %v1182
        %v1191 = vadd.f32 %v1189, 1e-05
        %v1192 = vrsqrt.pop %v1191
        %v1193 = vmul.f32 %v1190, %v1192
        %v1194 = vlaneseq
        %v1195 = vshrl.u32 %v1194, 7
        %v1196 = vsub.s32 4, %v1195
        %v1197 = vrot.slane %v531, %v1196
        %v1198 = vmul.f32 %v1193, %v1197
        %v1199 = vlaneseq
        %v1200 = vshrl.u32 %v1199, 7
        %v1201 = vsub.s32 5, %v1200
        %v1202 = vrot.slane %v531, %v1201
        %v1203 = vadd.f32 %v1198, %v1202
        %v1204 = vld [vmem:[%s4] sm:$0xf]
        %v1205 = vld [vmem:[%s4 + $0x4] sm:$0xf]
        %v1206 = vld [vmem:[%s4 + $0x8] sm:$0xf]
        %v1207 = vld [vmem:[%s4 + $0xc] sm:$0xf]
        %v1208 = vpack.c.bf16 %v1203, %v1203
        %v1209 = vlaneseq
        %v1210 = vshrl.u32 %v1209, 7
        %v1211 = vsub.s32 0, %v1210
        %v1212 = vrot.slane %v531, %v1211
        %v1217 = vunpack.c.l.b16 %v1204
        %v1218 = vunpack.c.l.b16 %v1205
        %v1219 = vunpack.c.l.b16 %v1206
        %v1220 = vunpack.c.l.b16 %v1207
        %v1221 = vpack.c.b16 %v1218, %v1217
        %v1222 = vpack.c.b16 %v1220, %v1219
        %v1226 = vsel %vm557, %v1208, 0
        %1228 = vmatprep.subr.bf16.mxu0 0
        %1229 = vmatpush1.bf16.msra.mxu0 0
        %1230 = vmatprep.subr.bf16.mxu0 0
        %1231 = vmatpush1.bf16.msra.mxu0 0
        %1232 = vmatprep.subr.bf16.mxu0 0
        %1233 = vmatpush1.bf16.msra.mxu0 0
        %1234 = vmatprep.subr.bf16.mxu0 0
        %1235 = vmatpush1.bf16.msra.mxu0 0
        %1236 = vmatprep.subr.bf16.mxu0 0
        %1237 = vmatpush1.bf16.msra.mxu0 0
        %1238 = vmatprep.subr.bf16.mxu0 0
        %1239 = vmatpush1.bf16.msra.mxu0 0
        %1240 = vmatprep.subr.bf16.mxu0 0
        %1241 = vmatpush1.bf16.msra.mxu0 %v1222
        %1242 = vmatprep.subr.bf16.mxu0 0
        %1243 = vmatpush1.bf16.msra.mxu0 %v1221
        %1244 = vmatprep.subr.bf16.mxu0 0
        %1245 = vmatpush2.bf16.msra.mxu0 0
        %1246 = vmatprep.subr.bf16.mxu0 0
        %1247 = vmatpush2.bf16.msra.mxu0 0
        %1248 = vmatprep.subr.bf16.mxu0 0
        %1249 = vmatpush2.bf16.msra.mxu0 0
        %1250 = vmatprep.subr.bf16.mxu0 0
        %1251 = vmatpush2.bf16.msra.mxu0 0
        %1252 = vmatprep.subr.bf16.mxu0 0
        %1253 = vmatpush2.bf16.msra.mxu0 0
        %1254 = vmatprep.subr.bf16.mxu0 0
        %1255 = vmatpush2.bf16.msra.mxu0 0
        %1256 = vmatprep.subr.bf16.mxu0 0
        %1257 = vmatpush2.bf16.msra.mxu0 0
        %1258 = vmatprep.subr.bf16.mxu0 0
        %1259 = vmatpush2.bf16.msra.mxu0 0
        %1260 = vmatprep.mubr.bf16.mxu0 0
        %1261 = vmatmul.mubr.bf16.gmra.mxu0 %v1226
        %v1262 = vpop.f32.mrf.mxu0
        %v1263 = vadd.f32 %v1212, %v1262
        %v1264 = vpop.f32.mrf.mxu0
        %v1265 = vpop.f32.mrf.mxu0
        %v1266 = vpop.f32.mrf.mxu0
        %1267 = vdwg.mxu0
        %v1268 = vld [vmem:[%s5] sm:$0xf]
        %v1269 = vld [vmem:[%s5 + $0x4] sm:$0xf]
        %v1270 = vld [vmem:[%s5 + $0x8] sm:$0xf]
        %v1271 = vld [vmem:[%s5 + $0xc] sm:$0xf]
        %v1272 = vpack.c.bf16 %v524, %v524
        %v1273 = vld [vmem:[%s10] sm:$0x1]
        %v1275 = vlaneseq
        %v1276 = vshrl.u32 %v1275, 7
        %v1277 = vsub.s32 0, %v1276
        %v1278 = vrot.slane %v1273, %v1277
        %v1284 = vunpack.c.l.b16 %v1268
        %v1285 = vunpack.c.l.b16 %v1269
        %v1286 = vunpack.c.l.b16 %v1270
        %v1287 = vunpack.c.l.b16 %v1271
        %v1288 = vpack.c.b16 %v1285, %v1284
        %v1289 = vpack.c.b16 %v1287, %v1286
        %v1293 = vsel %vm557, %v1272, 0
        %1295 = vmatprep.subr.bf16.mxu0 0
        %1296 = vmatpush1.bf16.msra.mxu0 0
        %1297 = vmatprep.subr.bf16.mxu0 0
        %1298 = vmatpush1.bf16.msra.mxu0 0
        %1299 = vmatprep.subr.bf16.mxu0 0
        %1300 = vmatpush1.bf16.msra.mxu0 0
        %1301 = vmatprep.subr.bf16.mxu0 0
        %1302 = vmatpush1.bf16.msra.mxu0 0
        %1303 = vmatprep.subr.bf16.mxu0 0
        %1304 = vmatpush1.bf16.msra.mxu0 0
        %1305 = vmatprep.subr.bf16.mxu0 0
        %1306 = vmatpush1.bf16.msra.mxu0 0
        %1307 = vmatprep.subr.bf16.mxu0 0
        %1308 = vmatpush1.bf16.msra.mxu0 %v1289
        %1309 = vmatprep.subr.bf16.mxu0 0
        %1310 = vmatpush1.bf16.msra.mxu0 %v1288
        %1311 = vmatprep.subr.bf16.mxu0 0
        %1312 = vmatpush2.bf16.msra.mxu0 0
        %1313 = vmatprep.subr.bf16.mxu0 0
        %1314 = vmatpush2.bf16.msra.mxu0 0
        %1315 = vmatprep.subr.bf16.mxu0 0
        %1316 = vmatpush2.bf16.msra.mxu0 0
        %1317 = vmatprep.subr.bf16.mxu0 0
        %1318 = vmatpush2.bf16.msra.mxu0 0
        %1319 = vmatprep.subr.bf16.mxu0 0
        %1320 = vmatpush2.bf16.msra.mxu0 0
        %1321 = vmatprep.subr.bf16.mxu0 0
        %1322 = vmatpush2.bf16.msra.mxu0 0
        %1323 = vmatprep.subr.bf16.mxu0 0
        %1324 = vmatpush2.bf16.msra.mxu0 0
        %1325 = vmatprep.subr.bf16.mxu0 0
        %1326 = vmatpush2.bf16.msra.mxu0 0
        %1327 = vmatprep.mubr.bf16.mxu0 0
        %1328 = vmatmul.mubr.bf16.gmra.mxu0 %v1293
        %v1329 = vpop.f32.mrf.mxu0
        %v1330 = vadd.f32 %v1278, %v1329
        %v1331 = vpop.f32.mrf.mxu0
        %v1332 = vpop.f32.mrf.mxu0
        %v1333 = vpop.f32.mrf.mxu0
        %1334 = vdwg.mxu0
        %1335 = vxpose.xlu0.b32.start [1/16] %v1330, 128
        %1336 = vxpose.xlu0.b32.cont [2/16] 0.0, 128
        %1337 = vxpose.xlu0.b32.cont [3/16] 0.0, 128
        %1338 = vxpose.xlu0.b32.cont [4/16] 0.0, 128
        %1339 = vxpose.xlu0.b32.cont [5/16] 0.0, 128
        %1340 = vxpose.xlu0.b32.cont [6/16] 0.0, 128
        %1341 = vxpose.xlu0.b32.cont [7/16] 0.0, 128
        %1342 = vxpose.xlu0.b32.cont [8/16] 0.0, 128
        %1343 = vxpose.xlu0.b32.cont [9/16] 0.0, 128
        %1344 = vxpose.xlu0.b32.cont [10/16] 0.0, 128
        %1345 = vxpose.xlu0.b32.cont [11/16] 0.0, 128
        %1346 = vxpose.xlu0.b32.cont [12/16] 0.0, 128
        %1347 = vxpose.xlu0.b32.cont [13/16] 0.0, 128
        %1348 = vxpose.xlu0.b32.cont [14/16] 0.0, 128
        %1349 = vxpose.xlu0.b32.cont [15/16] 0.0, 128
        %1350 = vxpose.xlu0.b32.end [16/16] 0.0, 128
        %v1351 = vpop.trf.xlu0
        %v1352 = vpop.trf.xlu0
        %v1353 = vpop.trf.xlu0
        %v1354 = vpop.trf.xlu0
        %v1355 = vpop.trf.xlu0
        %v1356 = vpop.trf.xlu0
        %v1357 = vpop.trf.xlu0
        %v1358 = vpop.trf.xlu0
        %v1359 = vpop.trf.xlu0
        %v1360 = vpop.trf.xlu0
        %v1361 = vpop.trf.xlu0
        %v1362 = vpop.trf.xlu0
        %v1363 = vpop.trf.xlu0
        %v1364 = vpop.trf.xlu0
        %v1365 = vpop.trf.xlu0
        %v1366 = vpop.trf.xlu0
        %1368 = vrot.lane.b32.xlu0 %v1263, 120
        %v1369 = vpop.permute.xlu0 %1368
        %1371 = vrot.lane.b32.xlu0 %v1263, 112
        %v1372 = vpop.permute.xlu0 %1371
        %1374 = vrot.lane.b32.xlu0 %v1263, 104
        %v1375 = vpop.permute.xlu0 %1374
        %v1377 = vpack.c.bf16 %v1263, %v1263
        %v1378 = vpack.c.bf16 %v1369, %v1369
        %v1379 = vpack.c.bf16 %v1372, %v1372
        %v1380 = vpack.c.bf16 %v1375, %v1375
        %v1381 = vpack.c.bf16 %v1351, %v1351
        %v1382 = vpack.c.bf16 %v1352, %v1352
        %v1383 = vpack.c.bf16 %v1353, %v1353
        %v1384 = vpack.c.bf16 %v1354, %v1354
        %v1385 = vpack.c.bf16 %v1355, %v1355
        %v1386 = vpack.c.bf16 %v1356, %v1356
        %v1387 = vpack.c.bf16 %v1357, %v1357
        %v1388 = vpack.c.bf16 %v1358, %v1358
        %v1390 = vsel %vm655, %v1377, 0
        %v1393 = vsel %vm659, %v1381, 0
        %1395 = vmatprep.subr.bf16.mxu0 0
        %1396 = vmatpush1.bf16.msra.mxu0 0
        %1397 = vmatprep.subr.bf16.mxu0 0
        %1398 = vmatpush1.bf16.msra.mxu0 0
        %1399 = vmatprep.subr.bf16.mxu0 0
        %1400 = vmatpush1.bf16.msra.mxu0 0
        %1401 = vmatprep.subr.bf16.mxu0 0
        %1402 = vmatpush1.bf16.msra.mxu0 0
        %1403 = vmatprep.subr.bf16.mxu0 0
        %1404 = vmatpush1.bf16.msra.mxu0 0
        %1405 = vmatprep.subr.bf16.mxu0 0
        %1406 = vmatpush1.bf16.msra.mxu0 0
        %1407 = vmatprep.subr.bf16.mxu0 0
        %1408 = vmatpush1.bf16.msra.mxu0 0
        %1409 = vmatprep.subr.bf16.mxu0 0
        %1410 = vmatpush1.bf16.msra.mxu0 %v1393
        %1411 = vmatprep.subr.bf16.mxu0 0
        %1412 = vmatpush2.bf16.msra.mxu0 0
        %1413 = vmatprep.subr.bf16.mxu0 0
        %1414 = vmatpush2.bf16.msra.mxu0 0
        %1415 = vmatprep.subr.bf16.mxu0 0
        %1416 = vmatpush2.bf16.msra.mxu0 0
        %1417 = vmatprep.subr.bf16.mxu0 0
        %1418 = vmatpush2.bf16.msra.mxu0 0
        %1419 = vmatprep.subr.bf16.mxu0 0
        %1420 = vmatpush2.bf16.msra.mxu0 0
        %1421 = vmatprep.subr.bf16.mxu0 0
        %1422 = vmatpush2.bf16.msra.mxu0 0
        %1423 = vmatprep.subr.bf16.mxu0 0
        %1424 = vmatpush2.bf16.msra.mxu0 0
        %1425 = vmatprep.subr.bf16.mxu0 0
        %1426 = vmatpush2.bf16.msra.mxu0 0
        %1427 = vmatprep.mubr.bf16.mxu0 0
        %1428 = vmatmul.mubr.bf16.gmra.mxu0 %v1390
        %v1429 = vpop.f32.mrf.mxu0
        %v1430 = vadd.f32 0.0, %v1429
        %v1431 = vpop.f32.mrf.mxu0
        %v1432 = vpop.f32.mrf.mxu0
        %v1433 = vpop.f32.mrf.mxu0
        %1434 = vdwg.mxu0
        %v1436 = vsel %vm655, %v1378, 0
        %v1439 = vsel %vm659, %v1382, 0
        %1441 = vmatprep.subr.bf16.mxu0 0
        %1442 = vmatpush1.bf16.msra.mxu0 0
        %1443 = vmatprep.subr.bf16.mxu0 0
        %1444 = vmatpush1.bf16.msra.mxu0 0
        %1445 = vmatprep.subr.bf16.mxu0 0
        %1446 = vmatpush1.bf16.msra.mxu0 0
        %1447 = vmatprep.subr.bf16.mxu0 0
        %1448 = vmatpush1.bf16.msra.mxu0 0
        %1449 = vmatprep.subr.bf16.mxu0 0
        %1450 = vmatpush1.bf16.msra.mxu0 0
        %1451 = vmatprep.subr.bf16.mxu0 0
        %1452 = vmatpush1.bf16.msra.mxu0 0
        %1453 = vmatprep.subr.bf16.mxu0 0
        %1454 = vmatpush1.bf16.msra.mxu0 0
        %1455 = vmatprep.subr.bf16.mxu0 0
        %1456 = vmatpush1.bf16.msra.mxu0 %v1439
        %1457 = vmatprep.subr.bf16.mxu0 0
        %1458 = vmatpush2.bf16.msra.mxu0 0
        %1459 = vmatprep.subr.bf16.mxu0 0
        %1460 = vmatpush2.bf16.msra.mxu0 0
        %1461 = vmatprep.subr.bf16.mxu0 0
        %1462 = vmatpush2.bf16.msra.mxu0 0
        %1463 = vmatprep.subr.bf16.mxu0 0
        %1464 = vmatpush2.bf16.msra.mxu0 0
        %1465 = vmatprep.subr.bf16.mxu0 0
        %1466 = vmatpush2.bf16.msra.mxu0 0
        %1467 = vmatprep.subr.bf16.mxu0 0
        %1468 = vmatpush2.bf16.msra.mxu0 0
        %1469 = vmatprep.subr.bf16.mxu0 0
        %1470 = vmatpush2.bf16.msra.mxu0 0
        %1471 = vmatprep.subr.bf16.mxu0 0
        %1472 = vmatpush2.bf16.msra.mxu0 0
        %1473 = vmatprep.mubr.bf16.mxu0 0
        %1474 = vmatmul.mubr.bf16.gmra.mxu0 %v1436
        %v1475 = vpop.f32.mrf.mxu0
        %v1476 = vadd.f32 0.0, %v1475
        %v1477 = vpop.f32.mrf.mxu0
        %v1478 = vpop.f32.mrf.mxu0
        %v1479 = vpop.f32.mrf.mxu0
        %1480 = vdwg.mxu0
        %v1482 = vsel %vm655, %v1379, 0
        %v1485 = vsel %vm659, %v1383, 0
        %1487 = vmatprep.subr.bf16.mxu0 0
        %1488 = vmatpush1.bf16.msra.mxu0 0
        %1489 = vmatprep.subr.bf16.mxu0 0
        %1490 = vmatpush1.bf16.msra.mxu0 0
        %1491 = vmatprep.subr.bf16.mxu0 0
        %1492 = vmatpush1.bf16.msra.mxu0 0
        %1493 = vmatprep.subr.bf16.mxu0 0
        %1494 = vmatpush1.bf16.msra.mxu0 0
        %1495 = vmatprep.subr.bf16.mxu0 0
        %1496 = vmatpush1.bf16.msra.mxu0 0
        %1497 = vmatprep.subr.bf16.mxu0 0
        %1498 = vmatpush1.bf16.msra.mxu0 0
        %1499 = vmatprep.subr.bf16.mxu0 0
        %1500 = vmatpush1.bf16.msra.mxu0 0
        %1501 = vmatprep.subr.bf16.mxu0 0
        %1502 = vmatpush1.bf16.msra.mxu0 %v1485
        %1503 = vmatprep.subr.bf16.mxu0 0
        %1504 = vmatpush2.bf16.msra.mxu0 0
        %1505 = vmatprep.subr.bf16.mxu0 0
        %1506 = vmatpush2.bf16.msra.mxu0 0
        %1507 = vmatprep.subr.bf16.mxu0 0
        %1508 = vmatpush2.bf16.msra.mxu0 0
        %1509 = vmatprep.subr.bf16.mxu0 0
        %1510 = vmatpush2.bf16.msra.mxu0 0
        %1511 = vmatprep.subr.bf16.mxu0 0
        %1512 = vmatpush2.bf16.msra.mxu0 0
        %1513 = vmatprep.subr.bf16.mxu0 0
        %1514 = vmatpush2.bf16.msra.mxu0 0
        %1515 = vmatprep.subr.bf16.mxu0 0
        %1516 = vmatpush2.bf16.msra.mxu0 0
        %1517 = vmatprep.subr.bf16.mxu0 0
        %1518 = vmatpush2.bf16.msra.mxu0 0
        %1519 = vmatprep.mubr.bf16.mxu0 0
        %1520 = vmatmul.mubr.bf16.gmra.mxu0 %v1482
        %v1521 = vpop.f32.mrf.mxu0
        %v1522 = vadd.f32 0.0, %v1521
        %v1523 = vpop.f32.mrf.mxu0
        %v1524 = vpop.f32.mrf.mxu0
        %v1525 = vpop.f32.mrf.mxu0
        %1526 = vdwg.mxu0
        %v1528 = vsel %vm655, %v1380, 0
        %v1531 = vsel %vm659, %v1384, 0
        %1533 = vmatprep.subr.bf16.mxu0 0
        %1534 = vmatpush1.bf16.msra.mxu0 0
        %1535 = vmatprep.subr.bf16.mxu0 0
        %1536 = vmatpush1.bf16.msra.mxu0 0
        %1537 = vmatprep.subr.bf16.mxu0 0
        %1538 = vmatpush1.bf16.msra.mxu0 0
        %1539 = vmatprep.subr.bf16.mxu0 0
        %1540 = vmatpush1.bf16.msra.mxu0 0
        %1541 = vmatprep.subr.bf16.mxu0 0
        %1542 = vmatpush1.bf16.msra.mxu0 0
        %1543 = vmatprep.subr.bf16.mxu0 0
        %1544 = vmatpush1.bf16.msra.mxu0 0
        %1545 = vmatprep.subr.bf16.mxu0 0
        %1546 = vmatpush1.bf16.msra.mxu0 0
        %1547 = vmatprep.subr.bf16.mxu0 0
        %1548 = vmatpush1.bf16.msra.mxu0 %v1531
        %1549 = vmatprep.subr.bf16.mxu0 0
        %1550 = vmatpush2.bf16.msra.mxu0 0
        %1551 = vmatprep.subr.bf16.mxu0 0
        %1552 = vmatpush2.bf16.msra.mxu0 0
        %1553 = vmatprep.subr.bf16.mxu0 0
        %1554 = vmatpush2.bf16.msra.mxu0 0
        %1555 = vmatprep.subr.bf16.mxu0 0
        %1556 = vmatpush2.bf16.msra.mxu0 0
        %1557 = vmatprep.subr.bf16.mxu0 0
        %1558 = vmatpush2.bf16.msra.mxu0 0
        %1559 = vmatprep.subr.bf16.mxu0 0
        %1560 = vmatpush2.bf16.msra.mxu0 0
        %1561 = vmatprep.subr.bf16.mxu0 0
        %1562 = vmatpush2.bf16.msra.mxu0 0
        %1563 = vmatprep.subr.bf16.mxu0 0
        %1564 = vmatpush2.bf16.msra.mxu0 0
        %1565 = vmatprep.mubr.bf16.mxu0 0
        %1566 = vmatmul.mubr.bf16.gmra.mxu0 %v1528
        %v1567 = vpop.f32.mrf.mxu0
        %v1568 = vadd.f32 0.0, %v1567
        %v1569 = vpop.f32.mrf.mxu0
        %v1570 = vpop.f32.mrf.mxu0
        %v1571 = vpop.f32.mrf.mxu0
        %1572 = vdwg.mxu0
        %v1573 = vmul.f32 %v1430, 0.35355338
        %v1574 = vmul.f32 %v1476, 0.35355338
        %v1575 = vmul.f32 %v1522, 0.35355338
        %v1576 = vmul.f32 %v1568, 0.35355338
        %v1577 = vsel %vm655, %v1573, -inf
        %1578 = vmax.xlane.f32.xlu0 %v1577
        %v1579 = vpop.xlane.xlu0 %1578
        %v1580 = vsel %vm655, %v1574, -inf
        %1581 = vmax.xlane.f32.xlu0 %v1580
        %v1582 = vpop.xlane.xlu0 %1581
        %v1583 = vsel %vm655, %v1575, -inf
        %1584 = vmax.xlane.f32.xlu0 %v1583
        %v1585 = vpop.xlane.xlu0 %1584
        %v1586 = vsel %vm655, %v1576, -inf
        %1587 = vmax.xlane.f32.xlu0 %v1586
        %v1588 = vpop.xlane.xlu0 %1587
        %v1589 = vsub.f32 %v1573, %v1579
        %v1590 = vsub.f32 %v1574, %v1582
        %v1591 = vsub.f32 %v1575, %v1585
        %v1592 = vsub.f32 %v1576, %v1588
        %v1593 = vmul.f32 %v1589, 1.442695
        %v1594 = vpow.pop %v1593
        %v1595 = vmul.f32 %v1590, 1.442695
        %v1596 = vpow.pop %v1595
        %v1597 = vmul.f32 %v1591, 1.442695
        %v1598 = vpow.pop %v1597
        %v1599 = vmul.f32 %v1592, 1.442695
        %v1600 = vpow.pop %v1599
        %v1601 = vsel %vm655, %v1594, 0.0
        %1602 = vadd.xlane.f32.xlu0 %v1601
        %v1603 = vpop.xlane.xlu0 %1602
        %v1604 = vsel %vm655, %v1596, 0.0
        %1605 = vadd.xlane.f32.xlu0 %v1604
        %v1606 = vpop.xlane.xlu0 %1605
        %v1607 = vsel %vm655, %v1598, 0.0
        %1608 = vadd.xlane.f32.xlu0 %v1607
        %v1609 = vpop.xlane.xlu0 %1608
        %v1610 = vsel %vm655, %v1600, 0.0
        %1611 = vadd.xlane.f32.xlu0 %v1610
        %v1612 = vpop.xlane.xlu0 %1611
        %v1613 = vrcp.pop %v1603
        %v1614 = vrcp.pop %v1606
        %v1615 = vrcp.pop %v1609
        %v1616 = vrcp.pop %v1612
        %v1617 = vmul.f32 %v1594, %v1613
        %v1618 = vmul.f32 %v1596, %v1614
        %v1619 = vmul.f32 %v1598, %v1615
        %v1620 = vmul.f32 %v1600, %v1616
        %v1621 = vpack.c.bf16 %v1617, %v1617
        %v1622 = vpack.c.bf16 %v1618, %v1618
        %v1623 = vpack.c.bf16 %v1619, %v1619
        %v1624 = vpack.c.bf16 %v1620, %v1620
        %v1626 = vsel %vm655, %v1385, 0
        %v1629 = vsel %vm655, %v1621, 0
        %1631 = vmatprep.subr.bf16.mxu0 0
        %1632 = vmatpush1.bf16.xpose.msra.mxu0 0
        %1633 = vmatprep.subr.bf16.mxu0 0
        %1634 = vmatpush1.bf16.xpose.msra.mxu0 0
        %1635 = vmatprep.subr.bf16.mxu0 0
        %1636 = vmatpush1.bf16.xpose.msra.mxu0 0
        %1637 = vmatprep.subr.bf16.mxu0 0
        %1638 = vmatpush1.bf16.xpose.msra.mxu0 0
        %1639 = vmatprep.subr.bf16.mxu0 0
        %1640 = vmatpush1.bf16.xpose.msra.mxu0 0
        %1641 = vmatprep.subr.bf16.mxu0 0
        %1642 = vmatpush1.bf16.xpose.msra.mxu0 0
        %1643 = vmatprep.subr.bf16.mxu0 0
        %1644 = vmatpush1.bf16.xpose.msra.mxu0 0
        %1645 = vmatprep.subr.bf16.mxu0 0
        %1646 = vmatpush1.bf16.xpose.msra.mxu0 %v1629
        %1647 = vmatprep.subr.bf16.mxu0 0
        %1648 = vmatpush2.bf16.xpose.msra.mxu0 0
        %1649 = vmatprep.subr.bf16.mxu0 0
        %1650 = vmatpush2.bf16.xpose.msra.mxu0 0
        %1651 = vmatprep.subr.bf16.mxu0 0
        %1652 = vmatpush2.bf16.xpose.msra.mxu0 0
        %1653 = vmatprep.subr.bf16.mxu0 0
        %1654 = vmatpush2.bf16.xpose.msra.mxu0 0
        %1655 = vmatprep.subr.bf16.mxu0 0
        %1656 = vmatpush2.bf16.xpose.msra.mxu0 0
        %1657 = vmatprep.subr.bf16.mxu0 0
        %1658 = vmatpush2.bf16.xpose.msra.mxu0 0
        %1659 = vmatprep.subr.bf16.mxu0 0
        %1660 = vmatpush2.bf16.xpose.msra.mxu0 0
        %1661 = vmatprep.subr.bf16.mxu0 0
        %1662 = vmatpush2.bf16.xpose.msra.mxu0 0
        %1663 = vmatprep.mubr.bf16.mxu0 0
        %1664 = vmatmul.mubr.bf16.gmra.mxu0 %v1626
        %v1665 = vpop.f32.mrf.mxu0
        %v1666 = vadd.f32 0.0, %v1665
        %v1667 = vpop.f32.mrf.mxu0
        %v1668 = vpop.f32.mrf.mxu0
        %v1669 = vpop.f32.mrf.mxu0
        %1670 = vdwg.mxu0
        %v1672 = vsel %vm655, %v1386, 0
        %v1675 = vsel %vm655, %v1622, 0
        %1677 = vmatprep.subr.bf16.mxu0 0
        %1678 = vmatpush1.bf16.xpose.msra.mxu0 0
        %1679 = vmatprep.subr.bf16.mxu0 0
        %1680 = vmatpush1.bf16.xpose.msra.mxu0 0
        %1681 = vmatprep.subr.bf16.mxu0 0
        %1682 = vmatpush1.bf16.xpose.msra.mxu0 0
        %1683 = vmatprep.subr.bf16.mxu0 0
        %1684 = vmatpush1.bf16.xpose.msra.mxu0 0
        %1685 = vmatprep.subr.bf16.mxu0 0
        %1686 = vmatpush1.bf16.xpose.msra.mxu0 0
        %1687 = vmatprep.subr.bf16.mxu0 0
        %1688 = vmatpush1.bf16.xpose.msra.mxu0 0
        %1689 = vmatprep.subr.bf16.mxu0 0
        %1690 = vmatpush1.bf16.xpose.msra.mxu0 0
        %1691 = vmatprep.subr.bf16.mxu0 0
        %1692 = vmatpush1.bf16.xpose.msra.mxu0 %v1675
        %1693 = vmatprep.subr.bf16.mxu0 0
        %1694 = vmatpush2.bf16.xpose.msra.mxu0 0
        %1695 = vmatprep.subr.bf16.mxu0 0
        %1696 = vmatpush2.bf16.xpose.msra.mxu0 0
        %1697 = vmatprep.subr.bf16.mxu0 0
        %1698 = vmatpush2.bf16.xpose.msra.mxu0 0
        %1699 = vmatprep.subr.bf16.mxu0 0
        %1700 = vmatpush2.bf16.xpose.msra.mxu0 0
        %1701 = vmatprep.subr.bf16.mxu0 0
        %1702 = vmatpush2.bf16.xpose.msra.mxu0 0
        %1703 = vmatprep.subr.bf16.mxu0 0
        %1704 = vmatpush2.bf16.xpose.msra.mxu0 0
        %1705 = vmatprep.subr.bf16.mxu0 0
        %1706 = vmatpush2.bf16.xpose.msra.mxu0 0
        %1707 = vmatprep.subr.bf16.mxu0 0
        %1708 = vmatpush2.bf16.xpose.msra.mxu0 0
        %1709 = vmatprep.mubr.bf16.mxu0 0
        %1710 = vmatmul.mubr.bf16.gmra.mxu0 %v1672
        %v1711 = vpop.f32.mrf.mxu0
        %v1712 = vadd.f32 0.0, %v1711
        %v1713 = vpop.f32.mrf.mxu0
        %v1714 = vpop.f32.mrf.mxu0
        %v1715 = vpop.f32.mrf.mxu0
        %1716 = vdwg.mxu0
        %v1718 = vsel %vm655, %v1387, 0
        %v1721 = vsel %vm655, %v1623, 0
        %1723 = vmatprep.subr.bf16.mxu0 0
        %1724 = vmatpush1.bf16.xpose.msra.mxu0 0
        %1725 = vmatprep.subr.bf16.mxu0 0
        %1726 = vmatpush1.bf16.xpose.msra.mxu0 0
        %1727 = vmatprep.subr.bf16.mxu0 0
        %1728 = vmatpush1.bf16.xpose.msra.mxu0 0
        %1729 = vmatprep.subr.bf16.mxu0 0
        %1730 = vmatpush1.bf16.xpose.msra.mxu0 0
        %1731 = vmatprep.subr.bf16.mxu0 0
        %1732 = vmatpush1.bf16.xpose.msra.mxu0 0
        %1733 = vmatprep.subr.bf16.mxu0 0
        %1734 = vmatpush1.bf16.xpose.msra.mxu0 0
        %1735 = vmatprep.subr.bf16.mxu0 0
        %1736 = vmatpush1.bf16.xpose.msra.mxu0 0
        %1737 = vmatprep.subr.bf16.mxu0 0
        %1738 = vmatpush1.bf16.xpose.msra.mxu0 %v1721
        %1739 = vmatprep.subr.bf16.mxu0 0
        %1740 = vmatpush2.bf16.xpose.msra.mxu0 0
        %1741 = vmatprep.subr.bf16.mxu0 0
        %1742 = vmatpush2.bf16.xpose.msra.mxu0 0
        %1743 = vmatprep.subr.bf16.mxu0 0
        %1744 = vmatpush2.bf16.xpose.msra.mxu0 0
        %1745 = vmatprep.subr.bf16.mxu0 0
        %1746 = vmatpush2.bf16.xpose.msra.mxu0 0
        %1747 = vmatprep.subr.bf16.mxu0 0
        %1748 = vmatpush2.bf16.xpose.msra.mxu0 0
        %1749 = vmatprep.subr.bf16.mxu0 0
        %1750 = vmatpush2.bf16.xpose.msra.mxu0 0
        %1751 = vmatprep.subr.bf16.mxu0 0
        %1752 = vmatpush2.bf16.xpose.msra.mxu0 0
        %1753 = vmatprep.subr.bf16.mxu0 0
        %1754 = vmatpush2.bf16.xpose.msra.mxu0 0
        %1755 = vmatprep.mubr.bf16.mxu0 0
        %1756 = vmatmul.mubr.bf16.gmra.mxu0 %v1718
        %v1757 = vpop.f32.mrf.mxu0
        %v1758 = vadd.f32 0.0, %v1757
        %v1759 = vpop.f32.mrf.mxu0
        %v1760 = vpop.f32.mrf.mxu0
        %v1761 = vpop.f32.mrf.mxu0
        %1762 = vdwg.mxu0
        %v1764 = vsel %vm655, %v1388, 0
        %v1767 = vsel %vm655, %v1624, 0
        %1769 = vmatprep.subr.bf16.mxu0 0
        %1770 = vmatpush1.bf16.xpose.msra.mxu0 0
        %1771 = vmatprep.subr.bf16.mxu0 0
        %1772 = vmatpush1.bf16.xpose.msra.mxu0 0
        %1773 = vmatprep.subr.bf16.mxu0 0
        %1774 = vmatpush1.bf16.xpose.msra.mxu0 0
        %1775 = vmatprep.subr.bf16.mxu0 0
        %1776 = vmatpush1.bf16.xpose.msra.mxu0 0
        %1777 = vmatprep.subr.bf16.mxu0 0
        %1778 = vmatpush1.bf16.xpose.msra.mxu0 0
        %1779 = vmatprep.subr.bf16.mxu0 0
        %1780 = vmatpush1.bf16.xpose.msra.mxu0 0
        %1781 = vmatprep.subr.bf16.mxu0 0
        %1782 = vmatpush1.bf16.xpose.msra.mxu0 0
        %1783 = vmatprep.subr.bf16.mxu0 0
        %1784 = vmatpush1.bf16.xpose.msra.mxu0 %v1767
        %1785 = vmatprep.subr.bf16.mxu0 0
        %1786 = vmatpush2.bf16.xpose.msra.mxu0 0
        %1787 = vmatprep.subr.bf16.mxu0 0
        %1788 = vmatpush2.bf16.xpose.msra.mxu0 0
        %1789 = vmatprep.subr.bf16.mxu0 0
        %1790 = vmatpush2.bf16.xpose.msra.mxu0 0
        %1791 = vmatprep.subr.bf16.mxu0 0
        %1792 = vmatpush2.bf16.xpose.msra.mxu0 0
        %1793 = vmatprep.subr.bf16.mxu0 0
        %1794 = vmatpush2.bf16.xpose.msra.mxu0 0
        %1795 = vmatprep.subr.bf16.mxu0 0
        %1796 = vmatpush2.bf16.xpose.msra.mxu0 0
        %1797 = vmatprep.subr.bf16.mxu0 0
        %1798 = vmatpush2.bf16.xpose.msra.mxu0 0
        %1799 = vmatprep.subr.bf16.mxu0 0
        %1800 = vmatpush2.bf16.xpose.msra.mxu0 0
        %1801 = vmatprep.mubr.bf16.mxu0 0
        %1802 = vmatmul.mubr.bf16.gmra.mxu0 %v1764
        %v1803 = vpop.f32.mrf.mxu0
        %v1804 = vadd.f32 0.0, %v1803
        %v1805 = vpop.f32.mrf.mxu0
        %v1806 = vpop.f32.mrf.mxu0
        %v1807 = vpop.f32.mrf.mxu0
        %1808 = vdwg.mxu0
        %1809 = vxpose.xlu0.b32.start [1/16] %v1666, 128
        %1810 = vxpose.xlu0.b32.cont [2/16] %v1712, 128
        %1811 = vxpose.xlu0.b32.cont [3/16] %v1758, 128
        %1812 = vxpose.xlu0.b32.cont [4/16] %v1804, 128
        %1813 = vxpose.xlu0.b32.cont [5/16] 0.0, 128
        %1814 = vxpose.xlu0.b32.cont [6/16] 0.0, 128
        %1815 = vxpose.xlu0.b32.cont [7/16] 0.0, 128
        %1816 = vxpose.xlu0.b32.cont [8/16] 0.0, 128
        %1817 = vxpose.xlu0.b32.cont [9/16] 0.0, 128
        %1818 = vxpose.xlu0.b32.cont [10/16] 0.0, 128
        %1819 = vxpose.xlu0.b32.cont [11/16] 0.0, 128
        %1820 = vxpose.xlu0.b32.cont [12/16] 0.0, 128
        %1821 = vxpose.xlu0.b32.cont [13/16] 0.0, 128
        %1822 = vxpose.xlu0.b32.cont [14/16] 0.0, 128
        %1823 = vxpose.xlu0.b32.cont [15/16] 0.0, 128
        %1824 = vxpose.xlu0.b32.end [16/16] 0.0, 128
        %v1825 = vpop.trf.xlu0
        %v1826 = vpop.trf.xlu0
        %v1827 = vpop.trf.xlu0
        %v1828 = vpop.trf.xlu0
        %v1829 = vpop.trf.xlu0
        %v1830 = vpop.trf.xlu0
        %v1831 = vpop.trf.xlu0
        %v1832 = vpop.trf.xlu0
        %v1833 = vpop.trf.xlu0
        %v1834 = vpop.trf.xlu0
        %v1835 = vpop.trf.xlu0
        %v1836 = vpop.trf.xlu0
        %v1837 = vpop.trf.xlu0
        %v1838 = vpop.trf.xlu0
        %v1839 = vpop.trf.xlu0
        %v1840 = vpop.trf.xlu0
        %v1841 = vld [vmem:[#allocation7] sm:$0xf]
        %v1842 = vld [vmem:[#allocation7 + $0x4] sm:$0xf]
        %v1843 = vld [vmem:[#allocation7 + $0x8] sm:$0xf]
        %v1844 = vld [vmem:[#allocation7 + $0xc] sm:$0xf]
        %v1845 = vpack.c.bf16 %v1825, %v1825
        %v1846 = vlaneseq
        %v1847 = vshrl.u32 %v1846, 7
        %v1848 = vsub.s32 2, %v1847
        %v1849 = vrot.slane %v531, %v1848
        %v1854 = vunpack.c.l.b16 %v1841
        %v1855 = vunpack.c.l.b16 %v1842
        %v1856 = vunpack.c.l.b16 %v1843
        %v1857 = vunpack.c.l.b16 %v1844
        %v1858 = vpack.c.b16 %v1855, %v1854
        %v1859 = vpack.c.b16 %v1857, %v1856
        %v1863 = vsel %vm557, %v1845, 0
        %1865 = vmatprep.subr.bf16.mxu0 0
        %1866 = vmatpush1.bf16.msra.mxu0 0
        %1867 = vmatprep.subr.bf16.mxu0 0
        %1868 = vmatpush1.bf16.msra.mxu0 0
        %1869 = vmatprep.subr.bf16.mxu0 0
        %1870 = vmatpush1.bf16.msra.mxu0 0
        %1871 = vmatprep.subr.bf16.mxu0 0
        %1872 = vmatpush1.bf16.msra.mxu0 0
        %1873 = vmatprep.subr.bf16.mxu0 0
        %1874 = vmatpush1.bf16.msra.mxu0 0
        %1875 = vmatprep.subr.bf16.mxu0 0
        %1876 = vmatpush1.bf16.msra.mxu0 0
        %1877 = vmatprep.subr.bf16.mxu0 0
        %1878 = vmatpush1.bf16.msra.mxu0 %v1859
        %1879 = vmatprep.subr.bf16.mxu0 0
        %1880 = vmatpush1.bf16.msra.mxu0 %v1858
        %1881 = vmatprep.subr.bf16.mxu0 0
        %1882 = vmatpush2.bf16.msra.mxu0 0
        %1883 = vmatprep.subr.bf16.mxu0 0
        %1884 = vmatpush2.bf16.msra.mxu0 0
        %1885 = vmatprep.subr.bf16.mxu0 0
        %1886 = vmatpush2.bf16.msra.mxu0 0
        %1887 = vmatprep.subr.bf16.mxu0 0
        %1888 = vmatpush2.bf16.msra.mxu0 0
        %1889 = vmatprep.subr.bf16.mxu0 0
        %1890 = vmatpush2.bf16.msra.mxu0 0
        %1891 = vmatprep.subr.bf16.mxu0 0
        %1892 = vmatpush2.bf16.msra.mxu0 0
        %1893 = vmatprep.subr.bf16.mxu0 0
        %1894 = vmatpush2.bf16.msra.mxu0 0
        %1895 = vmatprep.subr.bf16.mxu0 0
        %1896 = vmatpush2.bf16.msra.mxu0 0
        %1897 = vmatprep.mubr.bf16.mxu0 0
        %1898 = vmatmul.mubr.bf16.gmra.mxu0 %v1863
        %v1899 = vpop.f32.mrf.mxu0
        %v1900 = vadd.f32 %v1849, %v1899
        %v1901 = vpop.f32.mrf.mxu0
        %v1902 = vpop.f32.mrf.mxu0
        %v1903 = vpop.f32.mrf.mxu0
        %1904 = vdwg.mxu0
        %v1905 = vadd.f32 %v1203, %v1900
        %v1906 = vsel %vm557, %v1905, 0.0
        %1907 = vadd.xlane.f32.xlu0 %v1906
        %v1908 = vpop.xlane.xlu0 %1907
        %v1909 = vmul.f32 %v1908, %v1181
        %v1910 = vmul.f32 %v1905, %v1905
        %v1911 = vsel %vm557, %v1910, 0.0
        %1912 = vadd.xlane.f32.xlu0 %v1911
        %v1913 = vpop.xlane.xlu0 %1912
        %v1914 = vmul.f32 %v1913, %v1181
        %v1915 = vmul.f32 %v1909, %v1909
        %v1916 = vsub.f32 %v1914, %v1915
        %v1917 = vsub.f32 %v1905, %v1909
        %v1918 = vadd.f32 %v1916, 1e-05
        %v1919 = vrsqrt.pop %v1918
        %v1920 = vmul.f32 %v1917, %v1919
        %v1921 = vlaneseq
        %v1922 = vshrl.u32 %v1921, 7
        %v1923 = vsub.s32 6, %v1922
        %v1924 = vrot.slane %v531, %v1923
        %v1925 = vmul.f32 %v1920, %v1924
        %v1926 = vlaneseq
        %v1927 = vshrl.u32 %v1926, 7
        %v1928 = vsub.s32 7, %v1927
        %v1929 = vrot.slane %v531, %v1928
        %v1930 = vadd.f32 %v1925, %v1929
        %v1931 = vld [vmem:[#allocation8] sm:$0xf]
        %v1932 = vld [vmem:[#allocation8 + $0x4] sm:$0xf]
        %v1933 = vld [vmem:[#allocation8 + $0x8] sm:$0xf]
        %v1934 = vld [vmem:[#allocation8 + $0xc] sm:$0xf]
        %v1935 = vpack.c.bf16 %v1930, %v1930
        %v1936 = vld [vmem:[%s11] sm:$0x1]
        %v1938 = vlaneseq
        %v1939 = vshrl.u32 %v1938, 7
        %v1940 = vsub.s32 0, %v1939
        %v1941 = vrot.slane %v1936, %v1940
        %v1947 = vunpack.c.l.b16 %v1931
        %v1948 = vunpack.c.l.b16 %v1932
        %v1949 = vunpack.c.l.b16 %v1933
        %v1950 = vunpack.c.l.b16 %v1934
        %v1951 = vpack.c.b16 %v1948, %v1947
        %v1952 = vpack.c.b16 %v1950, %v1949
        %v1956 = vsel %vm557, %v1935, 0
        %1958 = vmatprep.subr.bf16.mxu0 0
        %1959 = vmatpush1.bf16.msra.mxu0 0
        %1960 = vmatprep.subr.bf16.mxu0 0
        %1961 = vmatpush1.bf16.msra.mxu0 0
        %1962 = vmatprep.subr.bf16.mxu0 0
        %1963 = vmatpush1.bf16.msra.mxu0 0
        %1964 = vmatprep.subr.bf16.mxu0 0
        %1965 = vmatpush1.bf16.msra.mxu0 0
        %1966 = vmatprep.subr.bf16.mxu0 0
        %1967 = vmatpush1.bf16.msra.mxu0 0
        %1968 = vmatprep.subr.bf16.mxu0 0
        %1969 = vmatpush1.bf16.msra.mxu0 0
        %1970 = vmatprep.subr.bf16.mxu0 0
        %1971 = vmatpush1.bf16.msra.mxu0 %v1952
        %1972 = vmatprep.subr.bf16.mxu0 0
        %1973 = vmatpush1.bf16.msra.mxu0 %v1951
        %1974 = vmatprep.subr.bf16.mxu0 0
        %1975 = vmatpush2.bf16.msra.mxu0 0
        %1976 = vmatprep.subr.bf16.mxu0 0
        %1977 = vmatpush2.bf16.msra.mxu0 0
        %1978 = vmatprep.subr.bf16.mxu0 0
        %1979 = vmatpush2.bf16.msra.mxu0 0
        %1980 = vmatprep.subr.bf16.mxu0 0
        %1981 = vmatpush2.bf16.msra.mxu0 0
        %1982 = vmatprep.subr.bf16.mxu0 0
        %1983 = vmatpush2.bf16.msra.mxu0 0
        %1984 = vmatprep.subr.bf16.mxu0 0
        %1985 = vmatpush2.bf16.msra.mxu0 0
        %1986 = vmatprep.subr.bf16.mxu0 0
        %1987 = vmatpush2.bf16.msra.mxu0 0
        %1988 = vmatprep.subr.bf16.mxu0 0
        %1989 = vmatpush2.bf16.msra.mxu0 0
        %1990 = vmatprep.mubr.bf16.mxu0 0
        %1991 = vmatmul.mubr.bf16.gmra.mxu0 %v1956
        %v1992 = vpop.f32.mrf.mxu0
        %v1993 = vadd.f32 %v1941, %v1992
        %v1994 = vpop.f32.mrf.mxu0
        %v1995 = vpop.f32.mrf.mxu0
        %v1996 = vpop.f32.mrf.mxu0
        %1997 = vdwg.mxu0
        %v1998 = vmax.f32 %v1993, 0.0
        %v1999 = vld [vmem:[%s8] sm:$0xf]
        %v2000 = vld [vmem:[%s8 + $0x4] sm:$0xf]
        %v2001 = vld [vmem:[%s8 + $0x8] sm:$0xf]
        %v2002 = vld [vmem:[%s8 + $0xc] sm:$0xf]
        %v2003 = vld [vmem:[%s8 + $0x10] sm:$0xf]
        %v2004 = vld [vmem:[%s8 + $0x14] sm:$0xf]
        %v2005 = vld [vmem:[%s8 + $0x18] sm:$0xf]
        %v2006 = vld [vmem:[%s8 + $0x1c] sm:$0xf]
        %v2007 = vpack.c.bf16 %v1998, %v1998
        %v2008 = vlaneseq
        %v2009 = vshrl.u32 %v2008, 7
        %v2010 = vsub.s32 3, %v2009
        %v2011 = vrot.slane %v531, %v2010
        %v2020 = vunpack.c.l.b16 %v1999
        %v2021 = vunpack.c.l.b16 %v2000
        %v2022 = vunpack.c.l.b16 %v2001
        %v2023 = vunpack.c.l.b16 %v2002
        %v2024 = vunpack.c.l.b16 %v2003
        %v2025 = vunpack.c.l.b16 %v2004
        %v2026 = vunpack.c.l.b16 %v2005
        %v2027 = vunpack.c.l.b16 %v2006
        %v2028 = vpack.c.b16 %v2021, %v2020
        %v2029 = vpack.c.b16 %v2023, %v2022
        %v2030 = vpack.c.b16 %v2025, %v2024
        %v2031 = vpack.c.b16 %v2027, %v2026
        %vm2036 = vcmask 523264
        %v2038 = vsel %vm2036, %v2007, 0
        %2040 = vmatprep.subr.bf16.mxu0 0
        %2041 = vmatpush1.bf16.msra.mxu0 0
        %2042 = vmatprep.subr.bf16.mxu0 0
        %2043 = vmatpush1.bf16.msra.mxu0 0
        %2044 = vmatprep.subr.bf16.mxu0 0
        %2045 = vmatpush1.bf16.msra.mxu0 0
        %2046 = vmatprep.subr.bf16.mxu0 0
        %2047 = vmatpush1.bf16.msra.mxu0 0
        %2048 = vmatprep.subr.bf16.mxu0 0
        %2049 = vmatpush1.bf16.msra.mxu0 %v2031
        %2050 = vmatprep.subr.bf16.mxu0 0
        %2051 = vmatpush1.bf16.msra.mxu0 %v2030
        %2052 = vmatprep.subr.bf16.mxu0 0
        %2053 = vmatpush1.bf16.msra.mxu0 %v2029
        %2054 = vmatprep.subr.bf16.mxu0 0
        %2055 = vmatpush1.bf16.msra.mxu0 %v2028
        %2056 = vmatprep.subr.bf16.mxu0 0
        %2057 = vmatpush2.bf16.msra.mxu0 0
        %2058 = vmatprep.subr.bf16.mxu0 0
        %2059 = vmatpush2.bf16.msra.mxu0 0
        %2060 = vmatprep.subr.bf16.mxu0 0
        %2061 = vmatpush2.bf16.msra.mxu0 0
        %2062 = vmatprep.subr.bf16.mxu0 0
        %2063 = vmatpush2.bf16.msra.mxu0 0
        %2064 = vmatprep.subr.bf16.mxu0 0
        %2065 = vmatpush2.bf16.msra.mxu0 0
        %2066 = vmatprep.subr.bf16.mxu0 0
        %2067 = vmatpush2.bf16.msra.mxu0 0
        %2068 = vmatprep.subr.bf16.mxu0 0
        %2069 = vmatpush2.bf16.msra.mxu0 0
        %2070 = vmatprep.subr.bf16.mxu0 0
        %2071 = vmatpush2.bf16.msra.mxu0 0
        %2072 = vmatprep.mubr.bf16.mxu0 0
        %2073 = vmatmul.mubr.bf16.gmra.mxu0 %v2038
        %v2074 = vpop.f32.mrf.mxu0
        %v2075 = vadd.f32 %v2011, %v2074
        %v2076 = vpop.f32.mrf.mxu0
        %v2077 = vpop.f32.mrf.mxu0
        %v2078 = vpop.f32.mrf.mxu0
        %2079 = vdwg.mxu0
        %v2080 = vadd.f32 %v1930, %v2075
        %v2081 = vsel %vm557, %v2080, 0.0
        %2082 = vadd.xlane.f32.xlu0 %v2081
        %v2083 = vpop.xlane.xlu0 %2082
        %v2084 = vmul.f32 %v2083, %v1181
        %v2085 = vmul.f32 %v2080, %v2080
        %v2086 = vsel %vm557, %v2085, 0.0
        %2087 = vadd.xlane.f32.xlu0 %v2086
        %v2088 = vpop.xlane.xlu0 %2087
        %v2089 = vmul.f32 %v2088, %v1181
        %v2090 = vmul.f32 %v2084, %v2084
        %v2091 = vsub.f32 %v2089, %v2090
        %v2092 = vsub.f32 %v2080, %v2084
        %v2093 = vadd.f32 %v2091, 1e-05
        %v2094 = vrsqrt.pop %v2093
        %v2095 = vmul.f32 %v2092, %v2094
        %v2096 = vlaneseq
        %v2097 = vshrl.u32 %v2096, 7
        %v2098 = vsub.s32 0, %v2097
        %v2099 = vrot.slane %v532, %v2098
        %v2100 = vmul.f32 %v2095, %v2099
        %v2101 = vlaneseq
        %v2102 = vshrl.u32 %v2101, 7
        %v2103 = vsub.s32 1, %v2102
        %v2104 = vrot.slane %v532, %v2103
        %v2105 = vadd.f32 %v2100, %v2104
        %s2106 = scalar_lea.vmem %s12, 16
        %v2107 = vld [vmem:[%s2106] sm:$0xff]
        %v2108 = vld [vmem:[%s2106 + $0x8] sm:$0x3]
        %s2109 = scalar_lea.vmem %s2, 16
        %v2110 = vld [vmem:[%s2109] sm:$0xf]
        %v2111 = vld [vmem:[%s2109 + $0x4] sm:$0xf]
        %v2112 = vld [vmem:[%s2109 + $0x8] sm:$0xf]
        %v2113 = vld [vmem:[%s2109 + $0xc] sm:$0xf]
        %v2114 = vpack.c.bf16 %v2105, %v2105
        %s2115 = scalar_lea.vmem %s9, 1
        %v2116 = vld [vmem:[%s2115] sm:$0x1]
        %v2118 = vlaneseq
        %v2119 = vshrl.u32 %v2118, 7
        %v2120 = vsub.s32 0, %v2119
        %v2121 = vrot.slane %v2116, %v2120
        %v2127 = vunpack.c.l.b16 %v2110
        %v2128 = vunpack.c.l.b16 %v2111
        %v2129 = vunpack.c.l.b16 %v2112
        %v2130 = vunpack.c.l.b16 %v2113
        %v2131 = vpack.c.b16 %v2128, %v2127
        %v2132 = vpack.c.b16 %v2130, %v2129
        %v2136 = vsel %vm557, %v2114, 0
        %2138 = vmatprep.subr.bf16.mxu0 0
        %2139 = vmatpush1.bf16.msra.mxu0 0
        %2140 = vmatprep.subr.bf16.mxu0 0
        %2141 = vmatpush1.bf16.msra.mxu0 0
        %2142 = vmatprep.subr.bf16.mxu0 0
        %2143 = vmatpush1.bf16.msra.mxu0 0
        %2144 = vmatprep.subr.bf16.mxu0 0
        %2145 = vmatpush1.bf16.msra.mxu0 0
        %2146 = vmatprep.subr.bf16.mxu0 0
        %2147 = vmatpush1.bf16.msra.mxu0 0
        %2148 = vmatprep.subr.bf16.mxu0 0
        %2149 = vmatpush1.bf16.msra.mxu0 0
        %2150 = vmatprep.subr.bf16.mxu0 0
        %2151 = vmatpush1.bf16.msra.mxu0 %v2132
        %2152 = vmatprep.subr.bf16.mxu0 0
        %2153 = vmatpush1.bf16.msra.mxu0 %v2131
        %2154 = vmatprep.subr.bf16.mxu0 0
        %2155 = vmatpush2.bf16.msra.mxu0 0
        %2156 = vmatprep.subr.bf16.mxu0 0
        %2157 = vmatpush2.bf16.msra.mxu0 0
        %2158 = vmatprep.subr.bf16.mxu0 0
        %2159 = vmatpush2.bf16.msra.mxu0 0
        %2160 = vmatprep.subr.bf16.mxu0 0
        %2161 = vmatpush2.bf16.msra.mxu0 0
        %2162 = vmatprep.subr.bf16.mxu0 0
        %2163 = vmatpush2.bf16.msra.mxu0 0
        %2164 = vmatprep.subr.bf16.mxu0 0
        %2165 = vmatpush2.bf16.msra.mxu0 0
        %2166 = vmatprep.subr.bf16.mxu0 0
        %2167 = vmatpush2.bf16.msra.mxu0 0
        %2168 = vmatprep.subr.bf16.mxu0 0
        %2169 = vmatpush2.bf16.msra.mxu0 0
        %2170 = vmatprep.mubr.bf16.mxu0 0
        %2171 = vmatmul.mubr.bf16.gmra.mxu0 %v2136
        %v2172 = vpop.f32.mrf.mxu0
        %v2173 = vadd.f32 %v2121, %v2172
        %v2174 = vpop.f32.mrf.mxu0
        %v2175 = vpop.f32.mrf.mxu0
        %v2176 = vpop.f32.mrf.mxu0
        %2177 = vdwg.mxu0
        %2178 = vxpose.xlu0.b32.start [1/16] %v2173, 128
        %2179 = vxpose.xlu0.b32.cont [2/16] 0.0, 128
        %2180 = vxpose.xlu0.b32.cont [3/16] 0.0, 128
        %2181 = vxpose.xlu0.b32.cont [4/16] 0.0, 128
        %2182 = vxpose.xlu0.b32.cont [5/16] 0.0, 128
        %2183 = vxpose.xlu0.b32.cont [6/16] 0.0, 128
        %2184 = vxpose.xlu0.b32.cont [7/16] 0.0, 128
        %2185 = vxpose.xlu0.b32.cont [8/16] 0.0, 128
        %2186 = vxpose.xlu0.b32.cont [9/16] 0.0, 128
        %2187 = vxpose.xlu0.b32.cont [10/16] 0.0, 128
        %2188 = vxpose.xlu0.b32.cont [11/16] 0.0, 128
        %2189 = vxpose.xlu0.b32.cont [12/16] 0.0, 128
        %2190 = vxpose.xlu0.b32.cont [13/16] 0.0, 128
        %2191 = vxpose.xlu0.b32.cont [14/16] 0.0, 128
        %2192 = vxpose.xlu0.b32.cont [15/16] 0.0, 128
        %2193 = vxpose.xlu0.b32.end [16/16] 0.0, 128
        %v2194 = vpop.trf.xlu0
        %v2195 = vpop.trf.xlu0
        %v2196 = vpop.trf.xlu0
        %v2197 = vpop.trf.xlu0
        %v2198 = vpop.trf.xlu0
        %v2199 = vpop.trf.xlu0
        %v2200 = vpop.trf.xlu0
        %v2201 = vpop.trf.xlu0
        %v2202 = vpop.trf.xlu0
        %v2203 = vpop.trf.xlu0
        %v2204 = vpop.trf.xlu0
        %v2205 = vpop.trf.xlu0
        %v2206 = vpop.trf.xlu0
        %v2207 = vpop.trf.xlu0
        %v2208 = vpop.trf.xlu0
        %v2209 = vpop.trf.xlu0
        %2211 = vrot.lane.b32.xlu0 %v2173, 120
        %v2212 = vpop.permute.xlu0 %2211
        %2214 = vrot.lane.b32.xlu0 %v2173, 112
        %v2215 = vpop.permute.xlu0 %2214
        %2217 = vrot.lane.b32.xlu0 %v2173, 104
        %v2218 = vpop.permute.xlu0 %2217
        %v2220 = vpack.c.bf16 %v2173, %v2173
        %v2221 = vpack.c.bf16 %v2212, %v2212
        %v2222 = vpack.c.bf16 %v2215, %v2215
        %v2223 = vpack.c.bf16 %v2218, %v2218
        %v2224 = vpack.c.bf16 %v2198, %v2198
        %v2225 = vpack.c.bf16 %v2199, %v2199
        %v2226 = vpack.c.bf16 %v2200, %v2200
        %v2227 = vpack.c.bf16 %v2201, %v2201
        %v2228 = vpack.c.bf16 %v2202, %v2202
        %v2229 = vpack.c.bf16 %v2203, %v2203
        %v2230 = vpack.c.bf16 %v2204, %v2204
        %v2231 = vpack.c.bf16 %v2205, %v2205
        %v2233 = vsel %vm655, %v2220, 0
        %v2236 = vsel %vm659, %v2224, 0
        %2238 = vmatprep.subr.bf16.mxu0 0
        %2239 = vmatpush1.bf16.msra.mxu0 0
        %2240 = vmatprep.subr.bf16.mxu0 0
        %2241 = vmatpush1.bf16.msra.mxu0 0
        %2242 = vmatprep.subr.bf16.mxu0 0
        %2243 = vmatpush1.bf16.msra.mxu0 0
        %2244 = vmatprep.subr.bf16.mxu0 0
        %2245 = vmatpush1.bf16.msra.mxu0 0
        %2246 = vmatprep.subr.bf16.mxu0 0
        %2247 = vmatpush1.bf16.msra.mxu0 0
        %2248 = vmatprep.subr.bf16.mxu0 0
        %2249 = vmatpush1.bf16.msra.mxu0 0
        %2250 = vmatprep.subr.bf16.mxu0 0
        %2251 = vmatpush1.bf16.msra.mxu0 0
        %2252 = vmatprep.subr.bf16.mxu0 0
        %2253 = vmatpush1.bf16.msra.mxu0 %v2236
        %2254 = vmatprep.subr.bf16.mxu0 0
        %2255 = vmatpush2.bf16.msra.mxu0 0
        %2256 = vmatprep.subr.bf16.mxu0 0
        %2257 = vmatpush2.bf16.msra.mxu0 0
        %2258 = vmatprep.subr.bf16.mxu0 0
        %2259 = vmatpush2.bf16.msra.mxu0 0
        %2260 = vmatprep.subr.bf16.mxu0 0
        %2261 = vmatpush2.bf16.msra.mxu0 0
        %2262 = vmatprep.subr.bf16.mxu0 0
        %2263 = vmatpush2.bf16.msra.mxu0 0
        %2264 = vmatprep.subr.bf16.mxu0 0
        %2265 = vmatpush2.bf16.msra.mxu0 0
        %2266 = vmatprep.subr.bf16.mxu0 0
        %2267 = vmatpush2.bf16.msra.mxu0 0
        %2268 = vmatprep.subr.bf16.mxu0 0
        %2269 = vmatpush2.bf16.msra.mxu0 0
        %2270 = vmatprep.mubr.bf16.mxu0 0
        %2271 = vmatmul.mubr.bf16.gmra.mxu0 %v2233
        %v2272 = vpop.f32.mrf.mxu0
        %v2273 = vadd.f32 0.0, %v2272
        %v2274 = vpop.f32.mrf.mxu0
        %v2275 = vpop.f32.mrf.mxu0
        %v2276 = vpop.f32.mrf.mxu0
        %2277 = vdwg.mxu0
        %v2279 = vsel %vm655, %v2221, 0
        %v2282 = vsel %vm659, %v2225, 0
        %2284 = vmatprep.subr.bf16.mxu0 0
        %2285 = vmatpush1.bf16.msra.mxu0 0
        %2286 = vmatprep.subr.bf16.mxu0 0
        %2287 = vmatpush1.bf16.msra.mxu0 0
        %2288 = vmatprep.subr.bf16.mxu0 0
        %2289 = vmatpush1.bf16.msra.mxu0 0
        %2290 = vmatprep.subr.bf16.mxu0 0
        %2291 = vmatpush1.bf16.msra.mxu0 0
        %2292 = vmatprep.subr.bf16.mxu0 0
        %2293 = vmatpush1.bf16.msra.mxu0 0
        %2294 = vmatprep.subr.bf16.mxu0 0
        %2295 = vmatpush1.bf16.msra.mxu0 0
        %2296 = vmatprep.subr.bf16.mxu0 0
        %2297 = vmatpush1.bf16.msra.mxu0 0
        %2298 = vmatprep.subr.bf16.mxu0 0
        %2299 = vmatpush1.bf16.msra.mxu0 %v2282
        %2300 = vmatprep.subr.bf16.mxu0 0
        %2301 = vmatpush2.bf16.msra.mxu0 0
        %2302 = vmatprep.subr.bf16.mxu0 0
        %2303 = vmatpush2.bf16.msra.mxu0 0
        %2304 = vmatprep.subr.bf16.mxu0 0
        %2305 = vmatpush2.bf16.msra.mxu0 0
        %2306 = vmatprep.subr.bf16.mxu0 0
        %2307 = vmatpush2.bf16.msra.mxu0 0
        %2308 = vmatprep.subr.bf16.mxu0 0
        %2309 = vmatpush2.bf16.msra.mxu0 0
        %2310 = vmatprep.subr.bf16.mxu0 0
        %2311 = vmatpush2.bf16.msra.mxu0 0
        %2312 = vmatprep.subr.bf16.mxu0 0
        %2313 = vmatpush2.bf16.msra.mxu0 0
        %2314 = vmatprep.subr.bf16.mxu0 0
        %2315 = vmatpush2.bf16.msra.mxu0 0
        %2316 = vmatprep.mubr.bf16.mxu0 0
        %2317 = vmatmul.mubr.bf16.gmra.mxu0 %v2279
        %v2318 = vpop.f32.mrf.mxu0
        %v2319 = vadd.f32 0.0, %v2318
        %v2320 = vpop.f32.mrf.mxu0
        %v2321 = vpop.f32.mrf.mxu0
        %v2322 = vpop.f32.mrf.mxu0
        %2323 = vdwg.mxu0
        %v2325 = vsel %vm655, %v2222, 0
        %v2328 = vsel %vm659, %v2226, 0
        %2330 = vmatprep.subr.bf16.mxu0 0
        %2331 = vmatpush1.bf16.msra.mxu0 0
        %2332 = vmatprep.subr.bf16.mxu0 0
        %2333 = vmatpush1.bf16.msra.mxu0 0
        %2334 = vmatprep.subr.bf16.mxu0 0
        %2335 = vmatpush1.bf16.msra.mxu0 0
        %2336 = vmatprep.subr.bf16.mxu0 0
        %2337 = vmatpush1.bf16.msra.mxu0 0
        %2338 = vmatprep.subr.bf16.mxu0 0
        %2339 = vmatpush1.bf16.msra.mxu0 0
        %2340 = vmatprep.subr.bf16.mxu0 0
        %2341 = vmatpush1.bf16.msra.mxu0 0
        %2342 = vmatprep.subr.bf16.mxu0 0
        %2343 = vmatpush1.bf16.msra.mxu0 0
        %2344 = vmatprep.subr.bf16.mxu0 0
        %2345 = vmatpush1.bf16.msra.mxu0 %v2328
        %2346 = vmatprep.subr.bf16.mxu0 0
        %2347 = vmatpush2.bf16.msra.mxu0 0
        %2348 = vmatprep.subr.bf16.mxu0 0
        %2349 = vmatpush2.bf16.msra.mxu0 0
        %2350 = vmatprep.subr.bf16.mxu0 0
        %2351 = vmatpush2.bf16.msra.mxu0 0
        %2352 = vmatprep.subr.bf16.mxu0 0
        %2353 = vmatpush2.bf16.msra.mxu0 0
        %2354 = vmatprep.subr.bf16.mxu0 0
        %2355 = vmatpush2.bf16.msra.mxu0 0
        %2356 = vmatprep.subr.bf16.mxu0 0
        %2357 = vmatpush2.bf16.msra.mxu0 0
        %2358 = vmatprep.subr.bf16.mxu0 0
        %2359 = vmatpush2.bf16.msra.mxu0 0
        %2360 = vmatprep.subr.bf16.mxu0 0
        %2361 = vmatpush2.bf16.msra.mxu0 0
        %2362 = vmatprep.mubr.bf16.mxu0 0
        %2363 = vmatmul.mubr.bf16.gmra.mxu0 %v2325
        %v2364 = vpop.f32.mrf.mxu0
        %v2365 = vadd.f32 0.0, %v2364
        %v2366 = vpop.f32.mrf.mxu0
        %v2367 = vpop.f32.mrf.mxu0
        %v2368 = vpop.f32.mrf.mxu0
        %2369 = vdwg.mxu0
        %v2371 = vsel %vm655, %v2223, 0
        %v2374 = vsel %vm659, %v2227, 0
        %2376 = vmatprep.subr.bf16.mxu0 0
        %2377 = vmatpush1.bf16.msra.mxu0 0
        %2378 = vmatprep.subr.bf16.mxu0 0
        %2379 = vmatpush1.bf16.msra.mxu0 0
        %2380 = vmatprep.subr.bf16.mxu0 0
        %2381 = vmatpush1.bf16.msra.mxu0 0
        %2382 = vmatprep.subr.bf16.mxu0 0
        %2383 = vmatpush1.bf16.msra.mxu0 0
        %2384 = vmatprep.subr.bf16.mxu0 0
        %2385 = vmatpush1.bf16.msra.mxu0 0
        %2386 = vmatprep.subr.bf16.mxu0 0
        %2387 = vmatpush1.bf16.msra.mxu0 0
        %2388 = vmatprep.subr.bf16.mxu0 0
        %2389 = vmatpush1.bf16.msra.mxu0 0
        %2390 = vmatprep.subr.bf16.mxu0 0
        %2391 = vmatpush1.bf16.msra.mxu0 %v2374
        %2392 = vmatprep.subr.bf16.mxu0 0
        %2393 = vmatpush2.bf16.msra.mxu0 0
        %2394 = vmatprep.subr.bf16.mxu0 0
        %2395 = vmatpush2.bf16.msra.mxu0 0
        %2396 = vmatprep.subr.bf16.mxu0 0
        %2397 = vmatpush2.bf16.msra.mxu0 0
        %2398 = vmatprep.subr.bf16.mxu0 0
        %2399 = vmatpush2.bf16.msra.mxu0 0
        %2400 = vmatprep.subr.bf16.mxu0 0
        %2401 = vmatpush2.bf16.msra.mxu0 0
        %2402 = vmatprep.subr.bf16.mxu0 0
        %2403 = vmatpush2.bf16.msra.mxu0 0
        %2404 = vmatprep.subr.bf16.mxu0 0
        %2405 = vmatpush2.bf16.msra.mxu0 0
        %2406 = vmatprep.subr.bf16.mxu0 0
        %2407 = vmatpush2.bf16.msra.mxu0 0
        %2408 = vmatprep.mubr.bf16.mxu0 0
        %2409 = vmatmul.mubr.bf16.gmra.mxu0 %v2371
        %v2410 = vpop.f32.mrf.mxu0
        %v2411 = vadd.f32 0.0, %v2410
        %v2412 = vpop.f32.mrf.mxu0
        %v2413 = vpop.f32.mrf.mxu0
        %v2414 = vpop.f32.mrf.mxu0
        %2415 = vdwg.mxu0
        %v2416 = vmul.f32 %v2273, 0.35355338
        %v2417 = vmul.f32 %v2319, 0.35355338
        %v2418 = vmul.f32 %v2365, 0.35355338
        %v2419 = vmul.f32 %v2411, 0.35355338
        %v2420 = vadd.f32 %v2416, %v530
        %v2421 = vadd.f32 %v2417, %v530
        %v2422 = vadd.f32 %v2418, %v530
        %v2423 = vadd.f32 %v2419, %v530
        %v2424 = vsel %vm655, %v2420, -inf
        %2425 = vmax.xlane.f32.xlu0 %v2424
        %v2426 = vpop.xlane.xlu0 %2425
        %v2427 = vsel %vm655, %v2421, -inf
        %2428 = vmax.xlane.f32.xlu0 %v2427
        %v2429 = vpop.xlane.xlu0 %2428
        %v2430 = vsel %vm655, %v2422, -inf
        %2431 = vmax.xlane.f32.xlu0 %v2430
        %v2432 = vpop.xlane.xlu0 %2431
        %v2433 = vsel %vm655, %v2423, -inf
        %2434 = vmax.xlane.f32.xlu0 %v2433
        %v2435 = vpop.xlane.xlu0 %2434
        %v2436 = vsub.f32 %v2420, %v2426
        %v2437 = vsub.f32 %v2421, %v2429
        %v2438 = vsub.f32 %v2422, %v2432
        %v2439 = vsub.f32 %v2423, %v2435
        %v2440 = vmul.f32 %v2436, 1.442695
        %v2441 = vpow.pop %v2440
        %v2442 = vmul.f32 %v2437, 1.442695
        %v2443 = vpow.pop %v2442
        %v2444 = vmul.f32 %v2438, 1.442695
        %v2445 = vpow.pop %v2444
        %v2446 = vmul.f32 %v2439, 1.442695
        %v2447 = vpow.pop %v2446
        %v2448 = vsel %vm655, %v2441, 0.0
        %2449 = vadd.xlane.f32.xlu0 %v2448
        %v2450 = vpop.xlane.xlu0 %2449
        %v2451 = vsel %vm655, %v2443, 0.0
        %2452 = vadd.xlane.f32.xlu0 %v2451
        %v2453 = vpop.xlane.xlu0 %2452
        %v2454 = vsel %vm655, %v2445, 0.0
        %2455 = vadd.xlane.f32.xlu0 %v2454
        %v2456 = vpop.xlane.xlu0 %2455
        %v2457 = vsel %vm655, %v2447, 0.0
        %2458 = vadd.xlane.f32.xlu0 %v2457
        %v2459 = vpop.xlane.xlu0 %2458
        %v2460 = vrcp.pop %v2450
        %v2461 = vrcp.pop %v2453
        %v2462 = vrcp.pop %v2456
        %v2463 = vrcp.pop %v2459
        %v2464 = vmul.f32 %v2441, %v2460
        %v2465 = vmul.f32 %v2443, %v2461
        %v2466 = vmul.f32 %v2445, %v2462
        %v2467 = vmul.f32 %v2447, %v2463
        %v2468 = vpack.c.bf16 %v2464, %v2464
        %v2469 = vpack.c.bf16 %v2465, %v2465
        %v2470 = vpack.c.bf16 %v2466, %v2466
        %v2471 = vpack.c.bf16 %v2467, %v2467
        %v2473 = vsel %vm655, %v2228, 0
        %v2476 = vsel %vm655, %v2468, 0
        %2478 = vmatprep.subr.bf16.mxu0 0
        %2479 = vmatpush1.bf16.xpose.msra.mxu0 0
        %2480 = vmatprep.subr.bf16.mxu0 0
        %2481 = vmatpush1.bf16.xpose.msra.mxu0 0
        %2482 = vmatprep.subr.bf16.mxu0 0
        %2483 = vmatpush1.bf16.xpose.msra.mxu0 0
        %2484 = vmatprep.subr.bf16.mxu0 0
        %2485 = vmatpush1.bf16.xpose.msra.mxu0 0
        %2486 = vmatprep.subr.bf16.mxu0 0
        %2487 = vmatpush1.bf16.xpose.msra.mxu0 0
        %2488 = vmatprep.subr.bf16.mxu0 0
        %2489 = vmatpush1.bf16.xpose.msra.mxu0 0
        %2490 = vmatprep.subr.bf16.mxu0 0
        %2491 = vmatpush1.bf16.xpose.msra.mxu0 0
        %2492 = vmatprep.subr.bf16.mxu0 0
        %2493 = vmatpush1.bf16.xpose.msra.mxu0 %v2476
        %2494 = vmatprep.subr.bf16.mxu0 0
        %2495 = vmatpush2.bf16.xpose.msra.mxu0 0
        %2496 = vmatprep.subr.bf16.mxu0 0
        %2497 = vmatpush2.bf16.xpose.msra.mxu0 0
        %2498 = vmatprep.subr.bf16.mxu0 0
        %2499 = vmatpush2.bf16.xpose.msra.mxu0 0
        %2500 = vmatprep.subr.bf16.mxu0 0
        %2501 = vmatpush2.bf16.xpose.msra.mxu0 0
        %2502 = vmatprep.subr.bf16.mxu0 0
        %2503 = vmatpush2.bf16.xpose.msra.mxu0 0
        %2504 = vmatprep.subr.bf16.mxu0 0
        %2505 = vmatpush2.bf16.xpose.msra.mxu0 0
        %2506 = vmatprep.subr.bf16.mxu0 0
        %2507 = vmatpush2.bf16.xpose.msra.mxu0 0
        %2508 = vmatprep.subr.bf16.mxu0 0
        %2509 = vmatpush2.bf16.xpose.msra.mxu0 0
        %2510 = vmatprep.mubr.bf16.mxu0 0
        %2511 = vmatmul.mubr.bf16.gmra.mxu0 %v2473
        %v2512 = vpop.f32.mrf.mxu0
        %v2513 = vadd.f32 0.0, %v2512
        %v2514 = vpop.f32.mrf.mxu0
        %v2515 = vpop.f32.mrf.mxu0
        %v2516 = vpop.f32.mrf.mxu0
        %2517 = vdwg.mxu0
        %v2519 = vsel %vm655, %v2229, 0
        %v2522 = vsel %vm655, %v2469, 0
        %2524 = vmatprep.subr.bf16.mxu0 0
        %2525 = vmatpush1.bf16.xpose.msra.mxu0 0
        %2526 = vmatprep.subr.bf16.mxu0 0
        %2527 = vmatpush1.bf16.xpose.msra.mxu0 0
        %2528 = vmatprep.subr.bf16.mxu0 0
        %2529 = vmatpush1.bf16.xpose.msra.mxu0 0
        %2530 = vmatprep.subr.bf16.mxu0 0
        %2531 = vmatpush1.bf16.xpose.msra.mxu0 0
        %2532 = vmatprep.subr.bf16.mxu0 0
        %2533 = vmatpush1.bf16.xpose.msra.mxu0 0
        %2534 = vmatprep.subr.bf16.mxu0 0
        %2535 = vmatpush1.bf16.xpose.msra.mxu0 0
        %2536 = vmatprep.subr.bf16.mxu0 0
        %2537 = vmatpush1.bf16.xpose.msra.mxu0 0
        %2538 = vmatprep.subr.bf16.mxu0 0
        %2539 = vmatpush1.bf16.xpose.msra.mxu0 %v2522
        %2540 = vmatprep.subr.bf16.mxu0 0
        %2541 = vmatpush2.bf16.xpose.msra.mxu0 0
        %2542 = vmatprep.subr.bf16.mxu0 0
        %2543 = vmatpush2.bf16.xpose.msra.mxu0 0
        %2544 = vmatprep.subr.bf16.mxu0 0
        %2545 = vmatpush2.bf16.xpose.msra.mxu0 0
        %2546 = vmatprep.subr.bf16.mxu0 0
        %2547 = vmatpush2.bf16.xpose.msra.mxu0 0
        %2548 = vmatprep.subr.bf16.mxu0 0
        %2549 = vmatpush2.bf16.xpose.msra.mxu0 0
        %2550 = vmatprep.subr.bf16.mxu0 0
        %2551 = vmatpush2.bf16.xpose.msra.mxu0 0
        %2552 = vmatprep.subr.bf16.mxu0 0
        %2553 = vmatpush2.bf16.xpose.msra.mxu0 0
        %2554 = vmatprep.subr.bf16.mxu0 0
        %2555 = vmatpush2.bf16.xpose.msra.mxu0 0
        %2556 = vmatprep.mubr.bf16.mxu0 0
        %2557 = vmatmul.mubr.bf16.gmra.mxu0 %v2519
        %v2558 = vpop.f32.mrf.mxu0
        %v2559 = vadd.f32 0.0, %v2558
        %v2560 = vpop.f32.mrf.mxu0
        %v2561 = vpop.f32.mrf.mxu0
        %v2562 = vpop.f32.mrf.mxu0
        %2563 = vdwg.mxu0
        %v2565 = vsel %vm655, %v2230, 0
        %v2568 = vsel %vm655, %v2470, 0
        %2570 = vmatprep.subr.bf16.mxu0 0
        %2571 = vmatpush1.bf16.xpose.msra.mxu0 0
        %2572 = vmatprep.subr.bf16.mxu0 0
        %2573 = vmatpush1.bf16.xpose.msra.mxu0 0
        %2574 = vmatprep.subr.bf16.mxu0 0
        %2575 = vmatpush1.bf16.xpose.msra.mxu0 0
        %2576 = vmatprep.subr.bf16.mxu0 0
        %2577 = vmatpush1.bf16.xpose.msra.mxu0 0
        %2578 = vmatprep.subr.bf16.mxu0 0
        %2579 = vmatpush1.bf16.xpose.msra.mxu0 0
        %2580 = vmatprep.subr.bf16.mxu0 0
        %2581 = vmatpush1.bf16.xpose.msra.mxu0 0
        %2582 = vmatprep.subr.bf16.mxu0 0
        %2583 = vmatpush1.bf16.xpose.msra.mxu0 0
        %2584 = vmatprep.subr.bf16.mxu0 0
        %2585 = vmatpush1.bf16.xpose.msra.mxu0 %v2568
        %2586 = vmatprep.subr.bf16.mxu0 0
        %2587 = vmatpush2.bf16.xpose.msra.mxu0 0
        %2588 = vmatprep.subr.bf16.mxu0 0
        %2589 = vmatpush2.bf16.xpose.msra.mxu0 0
        %2590 = vmatprep.subr.bf16.mxu0 0
        %2591 = vmatpush2.bf16.xpose.msra.mxu0 0
        %2592 = vmatprep.subr.bf16.mxu0 0
        %2593 = vmatpush2.bf16.xpose.msra.mxu0 0
        %2594 = vmatprep.subr.bf16.mxu0 0
        %2595 = vmatpush2.bf16.xpose.msra.mxu0 0
        %2596 = vmatprep.subr.bf16.mxu0 0
        %2597 = vmatpush2.bf16.xpose.msra.mxu0 0
        %2598 = vmatprep.subr.bf16.mxu0 0
        %2599 = vmatpush2.bf16.xpose.msra.mxu0 0
        %2600 = vmatprep.subr.bf16.mxu0 0
        %2601 = vmatpush2.bf16.xpose.msra.mxu0 0
        %2602 = vmatprep.mubr.bf16.mxu0 0
        %2603 = vmatmul.mubr.bf16.gmra.mxu0 %v2565
        %v2604 = vpop.f32.mrf.mxu0
        %v2605 = vadd.f32 0.0, %v2604
        %v2606 = vpop.f32.mrf.mxu0
        %v2607 = vpop.f32.mrf.mxu0
        %v2608 = vpop.f32.mrf.mxu0
        %2609 = vdwg.mxu0
        %v2611 = vsel %vm655, %v2231, 0
        %v2614 = vsel %vm655, %v2471, 0
        %2616 = vmatprep.subr.bf16.mxu0 0
        %2617 = vmatpush1.bf16.xpose.msra.mxu0 0
        %2618 = vmatprep.subr.bf16.mxu0 0
        %2619 = vmatpush1.bf16.xpose.msra.mxu0 0
        %2620 = vmatprep.subr.bf16.mxu0 0
        %2621 = vmatpush1.bf16.xpose.msra.mxu0 0
        %2622 = vmatprep.subr.bf16.mxu0 0
        %2623 = vmatpush1.bf16.xpose.msra.mxu0 0
        %2624 = vmatprep.subr.bf16.mxu0 0
        %2625 = vmatpush1.bf16.xpose.msra.mxu0 0
        %2626 = vmatprep.subr.bf16.mxu0 0
        %2627 = vmatpush1.bf16.xpose.msra.mxu0 0
        %2628 = vmatprep.subr.bf16.mxu0 0
        %2629 = vmatpush1.bf16.xpose.msra.mxu0 0
        %2630 = vmatprep.subr.bf16.mxu0 0
        %2631 = vmatpush1.bf16.xpose.msra.mxu0 %v2614
        %2632 = vmatprep.subr.bf16.mxu0 0
        %2633 = vmatpush2.bf16.xpose.msra.mxu0 0
        %2634 = vmatprep.subr.bf16.mxu0 0
        %2635 = vmatpush2.bf16.xpose.msra.mxu0 0
        %2636 = vmatprep.subr.bf16.mxu0 0
        %2637 = vmatpush2.bf16.xpose.msra.mxu0 0
        %2638 = vmatprep.subr.bf16.mxu0 0
        %2639 = vmatpush2.bf16.xpose.msra.mxu0 0
        %2640 = vmatprep.subr.bf16.mxu0 0
        %2641 = vmatpush2.bf16.xpose.msra.mxu0 0
        %2642 = vmatprep.subr.bf16.mxu0 0
        %2643 = vmatpush2.bf16.xpose.msra.mxu0 0
        %2644 = vmatprep.subr.bf16.mxu0 0
        %2645 = vmatpush2.bf16.xpose.msra.mxu0 0
        %2646 = vmatprep.subr.bf16.mxu0 0
        %2647 = vmatpush2.bf16.xpose.msra.mxu0 0
        %2648 = vmatprep.mubr.bf16.mxu0 0
        %2649 = vmatmul.mubr.bf16.gmra.mxu0 %v2611
        %v2650 = vpop.f32.mrf.mxu0
        %v2651 = vadd.f32 0.0, %v2650
        %v2652 = vpop.f32.mrf.mxu0
        %v2653 = vpop.f32.mrf.mxu0
        %v2654 = vpop.f32.mrf.mxu0
        %2655 = vdwg.mxu0
        %2656 = vxpose.xlu0.b32.start [1/16] %v2513, 128
        %2657 = vxpose.xlu0.b32.cont [2/16] %v2559, 128
        %2658 = vxpose.xlu0.b32.cont [3/16] %v2605, 128
        %2659 = vxpose.xlu0.b32.cont [4/16] %v2651, 128
        %2660 = vxpose.xlu0.b32.cont [5/16] 0.0, 128
        %2661 = vxpose.xlu0.b32.cont [6/16] 0.0, 128
        %2662 = vxpose.xlu0.b32.cont [7/16] 0.0, 128
        %2663 = vxpose.xlu0.b32.cont [8/16] 0.0, 128
        %2664 = vxpose.xlu0.b32.cont [9/16] 0.0, 128
        %2665 = vxpose.xlu0.b32.cont [10/16] 0.0, 128
        %2666 = vxpose.xlu0.b32.cont [11/16] 0.0, 128
        %2667 = vxpose.xlu0.b32.cont [12/16] 0.0, 128
        %2668 = vxpose.xlu0.b32.cont [13/16] 0.0, 128
        %2669 = vxpose.xlu0.b32.cont [14/16] 0.0, 128
        %2670 = vxpose.xlu0.b32.cont [15/16] 0.0, 128
        %2671 = vxpose.xlu0.b32.end [16/16] 0.0, 128
        %v2672 = vpop.trf.xlu0
        %v2673 = vpop.trf.xlu0
        %v2674 = vpop.trf.xlu0
        %v2675 = vpop.trf.xlu0
        %v2676 = vpop.trf.xlu0
        %v2677 = vpop.trf.xlu0
        %v2678 = vpop.trf.xlu0
        %v2679 = vpop.trf.xlu0
        %v2680 = vpop.trf.xlu0
        %v2681 = vpop.trf.xlu0
        %v2682 = vpop.trf.xlu0
        %v2683 = vpop.trf.xlu0
        %v2684 = vpop.trf.xlu0
        %v2685 = vpop.trf.xlu0
        %v2686 = vpop.trf.xlu0
        %v2687 = vpop.trf.xlu0
        %s2688 = scalar_lea.vmem %s3, 16
        %v2689 = vld [vmem:[%s2688] sm:$0xf]
        %v2690 = vld [vmem:[%s2688 + $0x4] sm:$0xf]
        %v2691 = vld [vmem:[%s2688 + $0x8] sm:$0xf]
        %v2692 = vld [vmem:[%s2688 + $0xc] sm:$0xf]
        %v2693 = vpack.c.bf16 %v2672, %v2672
        %v2694 = vlaneseq
        %v2695 = vshrl.u32 %v2694, 7
        %v2696 = vsub.s32 1, %v2695
        %v2697 = vrot.slane %v2107, %v2696
        %v2702 = vunpack.c.l.b16 %v2689
        %v2703 = vunpack.c.l.b16 %v2690
        %v2704 = vunpack.c.l.b16 %v2691
        %v2705 = vunpack.c.l.b16 %v2692
        %v2706 = vpack.c.b16 %v2703, %v2702
        %v2707 = vpack.c.b16 %v2705, %v2704
        %v2711 = vsel %vm557, %v2693, 0
        %2713 = vmatprep.subr.bf16.mxu0 0
        %2714 = vmatpush1.bf16.msra.mxu0 0
        %2715 = vmatprep.subr.bf16.mxu0 0
        %2716 = vmatpush1.bf16.msra.mxu0 0
        %2717 = vmatprep.subr.bf16.mxu0 0
        %2718 = vmatpush1.bf16.msra.mxu0 0
        %2719 = vmatprep.subr.bf16.mxu0 0
        %2720 = vmatpush1.bf16.msra.mxu0 0
        %2721 = vmatprep.subr.bf16.mxu0 0
        %2722 = vmatpush1.bf16.msra.mxu0 0
        %2723 = vmatprep.subr.bf16.mxu0 0
        %2724 = vmatpush1.bf16.msra.mxu0 0
        %2725 = vmatprep.subr.bf16.mxu0 0
        %2726 = vmatpush1.bf16.msra.mxu0 %v2707
        %2727 = vmatprep.subr.bf16.mxu0 0
        %2728 = vmatpush1.bf16.msra.mxu0 %v2706
        %2729 = vmatprep.subr.bf16.mxu0 0
        %2730 = vmatpush2.bf16.msra.mxu0 0
        %2731 = vmatprep.subr.bf16.mxu0 0
        %2732 = vmatpush2.bf16.msra.mxu0 0
        %2733 = vmatprep.subr.bf16.mxu0 0
        %2734 = vmatpush2.bf16.msra.mxu0 0
        %2735 = vmatprep.subr.bf16.mxu0 0
        %2736 = vmatpush2.bf16.msra.mxu0 0
        %2737 = vmatprep.subr.bf16.mxu0 0
        %2738 = vmatpush2.bf16.msra.mxu0 0
        %2739 = vmatprep.subr.bf16.mxu0 0
        %2740 = vmatpush2.bf16.msra.mxu0 0
        %2741 = vmatprep.subr.bf16.mxu0 0
        %2742 = vmatpush2.bf16.msra.mxu0 0
        %2743 = vmatprep.subr.bf16.mxu0 0
        %2744 = vmatpush2.bf16.msra.mxu0 0
        %2745 = vmatprep.mubr.bf16.mxu0 0
        %2746 = vmatmul.mubr.bf16.gmra.mxu0 %v2711
        %v2747 = vpop.f32.mrf.mxu0
        %v2748 = vadd.f32 %v2697, %v2747
        %v2749 = vpop.f32.mrf.mxu0
        %v2750 = vpop.f32.mrf.mxu0
        %v2751 = vpop.f32.mrf.mxu0
        %2752 = vdwg.mxu0
        %v2753 = vadd.f32 %v2105, %v2748
        %v2754 = vsel %vm557, %v2753, 0.0
        %2755 = vadd.xlane.f32.xlu0 %v2754
        %v2756 = vpop.xlane.xlu0 %2755
        %v2757 = vmul.f32 %v2756, %v1181
        %v2758 = vmul.f32 %v2753, %v2753
        %v2759 = vsel %vm557, %v2758, 0.0
        %2760 = vadd.xlane.f32.xlu0 %v2759
        %v2761 = vpop.xlane.xlu0 %2760
        %v2762 = vmul.f32 %v2761, %v1181
        %v2763 = vmul.f32 %v2757, %v2757
        %v2764 = vsub.f32 %v2762, %v2763
        %v2765 = vsub.f32 %v2753, %v2757
        %v2766 = vadd.f32 %v2764, 1e-05
        %v2767 = vrsqrt.pop %v2766
        %v2768 = vmul.f32 %v2765, %v2767
        %v2769 = vlaneseq
        %v2770 = vshrl.u32 %v2769, 7
        %v2771 = vsub.s32 4, %v2770
        %v2772 = vrot.slane %v2107, %v2771
        %v2773 = vmul.f32 %v2768, %v2772
        %v2774 = vlaneseq
        %v2775 = vshrl.u32 %v2774, 7
        %v2776 = vsub.s32 5, %v2775
        %v2777 = vrot.slane %v2107, %v2776
        %v2778 = vadd.f32 %v2773, %v2777
        %s2779 = scalar_lea.vmem %s4, 16
        %v2780 = vld [vmem:[%s2779] sm:$0xf]
        %v2781 = vld [vmem:[%s2779 + $0x4] sm:$0xf]
        %v2782 = vld [vmem:[%s2779 + $0x8] sm:$0xf]
        %v2783 = vld [vmem:[%s2779 + $0xc] sm:$0xf]
        %v2784 = vpack.c.bf16 %v2778, %v2778
        %v2785 = vlaneseq
        %v2786 = vshrl.u32 %v2785, 7
        %v2787 = vsub.s32 0, %v2786
        %v2788 = vrot.slane %v2107, %v2787
        %v2793 = vunpack.c.l.b16 %v2780
        %v2794 = vunpack.c.l.b16 %v2781
        %v2795 = vunpack.c.l.b16 %v2782
        %v2796 = vunpack.c.l.b16 %v2783
        %v2797 = vpack.c.b16 %v2794, %v2793
        %v2798 = vpack.c.b16 %v2796, %v2795
        %v2802 = vsel %vm557, %v2784, 0
        %2804 = vmatprep.subr.bf16.mxu0 0
        %2805 = vmatpush1.bf16.msra.mxu0 0
        %2806 = vmatprep.subr.bf16.mxu0 0
        %2807 = vmatpush1.bf16.msra.mxu0 0
        %2808 = vmatprep.subr.bf16.mxu0 0
        %2809 = vmatpush1.bf16.msra.mxu0 0
        %2810 = vmatprep.subr.bf16.mxu0 0
        %2811 = vmatpush1.bf16.msra.mxu0 0
        %2812 = vmatprep.subr.bf16.mxu0 0
        %2813 = vmatpush1.bf16.msra.mxu0 0
        %2814 = vmatprep.subr.bf16.mxu0 0
        %2815 = vmatpush1.bf16.msra.mxu0 0
        %2816 = vmatprep.subr.bf16.mxu0 0
        %2817 = vmatpush1.bf16.msra.mxu0 %v2798
        %2818 = vmatprep.subr.bf16.mxu0 0
        %2819 = vmatpush1.bf16.msra.mxu0 %v2797
        %2820 = vmatprep.subr.bf16.mxu0 0
        %2821 = vmatpush2.bf16.msra.mxu0 0
        %2822 = vmatprep.subr.bf16.mxu0 0
        %2823 = vmatpush2.bf16.msra.mxu0 0
        %2824 = vmatprep.subr.bf16.mxu0 0
        %2825 = vmatpush2.bf16.msra.mxu0 0
        %2826 = vmatprep.subr.bf16.mxu0 0
        %2827 = vmatpush2.bf16.msra.mxu0 0
        %2828 = vmatprep.subr.bf16.mxu0 0
        %2829 = vmatpush2.bf16.msra.mxu0 0
        %2830 = vmatprep.subr.bf16.mxu0 0
        %2831 = vmatpush2.bf16.msra.mxu0 0
        %2832 = vmatprep.subr.bf16.mxu0 0
        %2833 = vmatpush2.bf16.msra.mxu0 0
        %2834 = vmatprep.subr.bf16.mxu0 0
        %2835 = vmatpush2.bf16.msra.mxu0 0
        %2836 = vmatprep.mubr.bf16.mxu0 0
        %2837 = vmatmul.mubr.bf16.gmra.mxu0 %v2802
        %v2838 = vpop.f32.mrf.mxu0
        %v2839 = vadd.f32 %v2788, %v2838
        %v2840 = vpop.f32.mrf.mxu0
        %v2841 = vpop.f32.mrf.mxu0
        %v2842 = vpop.f32.mrf.mxu0
        %2843 = vdwg.mxu0
        %s2844 = scalar_lea.vmem %s5, 16
        %v2845 = vld [vmem:[%s2844] sm:$0xf]
        %v2846 = vld [vmem:[%s2844 + $0x4] sm:$0xf]
        %v2847 = vld [vmem:[%s2844 + $0x8] sm:$0xf]
        %v2848 = vld [vmem:[%s2844 + $0xc] sm:$0xf]
        %s2849 = scalar_lea.vmem %s10, 1
        %v2850 = vld [vmem:[%s2849] sm:$0x1]
        %v2852 = vlaneseq
        %v2853 = vshrl.u32 %v2852, 7
        %v2854 = vsub.s32 0, %v2853
        %v2855 = vrot.slane %v2850, %v2854
        %v2861 = vunpack.c.l.b16 %v2845
        %v2862 = vunpack.c.l.b16 %v2846
        %v2863 = vunpack.c.l.b16 %v2847
        %v2864 = vunpack.c.l.b16 %v2848
        %v2865 = vpack.c.b16 %v2862, %v2861
        %v2866 = vpack.c.b16 %v2864, %v2863
        %2869 = vmatprep.subr.bf16.mxu0 0
        %2870 = vmatpush1.bf16.msra.mxu0 0
        %2871 = vmatprep.subr.bf16.mxu0 0
        %2872 = vmatpush1.bf16.msra.mxu0 0
        %2873 = vmatprep.subr.bf16.mxu0 0
        %2874 = vmatpush1.bf16.msra.mxu0 0
        %2875 = vmatprep.subr.bf16.mxu0 0
        %2876 = vmatpush1.bf16.msra.mxu0 0
        %2877 = vmatprep.subr.bf16.mxu0 0
        %2878 = vmatpush1.bf16.msra.mxu0 0
        %2879 = vmatprep.subr.bf16.mxu0 0
        %2880 = vmatpush1.bf16.msra.mxu0 0
        %2881 = vmatprep.subr.bf16.mxu0 0
        %2882 = vmatpush1.bf16.msra.mxu0 %v2866
        %2883 = vmatprep.subr.bf16.mxu0 0
        %2884 = vmatpush1.bf16.msra.mxu0 %v2865
        %2885 = vmatprep.subr.bf16.mxu0 0
        %2886 = vmatpush2.bf16.msra.mxu0 0
        %2887 = vmatprep.subr.bf16.mxu0 0
        %2888 = vmatpush2.bf16.msra.mxu0 0
        %2889 = vmatprep.subr.bf16.mxu0 0
        %2890 = vmatpush2.bf16.msra.mxu0 0
        %2891 = vmatprep.subr.bf16.mxu0 0
        %2892 = vmatpush2.bf16.msra.mxu0 0
        %2893 = vmatprep.subr.bf16.mxu0 0
        %2894 = vmatpush2.bf16.msra.mxu0 0
        %2895 = vmatprep.subr.bf16.mxu0 0
        %2896 = vmatpush2.bf16.msra.mxu0 0
        %2897 = vmatprep.subr.bf16.mxu0 0
        %2898 = vmatpush2.bf16.msra.mxu0 0
        %2899 = vmatprep.subr.bf16.mxu0 0
        %2900 = vmatpush2.bf16.msra.mxu0 0
        %2901 = vmatprep.mubr.bf16.mxu0 0
        %2902 = vmatmul.mubr.bf16.gmra.mxu0 %v1293
        %v2903 = vpop.f32.mrf.mxu0
        %v2904 = vadd.f32 %v2855, %v2903
        %v2905 = vpop.f32.mrf.mxu0
        %v2906 = vpop.f32.mrf.mxu0
        %v2907 = vpop.f32.mrf.mxu0
        %2908 = vdwg.mxu0
        %2909 = vxpose.xlu0.b32.start [1/16] %v2904, 128
        %2910 = vxpose.xlu0.b32.cont [2/16] 0.0, 128
        %2911 = vxpose.xlu0.b32.cont [3/16] 0.0, 128
        %2912 = vxpose.xlu0.b32.cont [4/16] 0.0, 128
        %2913 = vxpose.xlu0.b32.cont [5/16] 0.0, 128
        %2914 = vxpose.xlu0.b32.cont [6/16] 0.0, 128
        %2915 = vxpose.xlu0.b32.cont [7/16] 0.0, 128
        %2916 = vxpose.xlu0.b32.cont [8/16] 0.0, 128
        %2917 = vxpose.xlu0.b32.cont [9/16] 0.0, 128
        %2918 = vxpose.xlu0.b32.cont [10/16] 0.0, 128
        %2919 = vxpose.xlu0.b32.cont [11/16] 0.0, 128
        %2920 = vxpose.xlu0.b32.cont [12/16] 0.0, 128
        %2921 = vxpose.xlu0.b32.cont [13/16] 0.0, 128
        %2922 = vxpose.xlu0.b32.cont [14/16] 0.0, 128
        %2923 = vxpose.xlu0.b32.cont [15/16] 0.0, 128
        %2924 = vxpose.xlu0.b32.end [16/16] 0.0, 128
        %v2925 = vpop.trf.xlu0
        %v2926 = vpop.trf.xlu0
        %v2927 = vpop.trf.xlu0
        %v2928 = vpop.trf.xlu0
        %v2929 = vpop.trf.xlu0
        %v2930 = vpop.trf.xlu0
        %v2931 = vpop.trf.xlu0
        %v2932 = vpop.trf.xlu0
        %v2933 = vpop.trf.xlu0
        %v2934 = vpop.trf.xlu0
        %v2935 = vpop.trf.xlu0
        %v2936 = vpop.trf.xlu0
        %v2937 = vpop.trf.xlu0
        %v2938 = vpop.trf.xlu0
        %v2939 = vpop.trf.xlu0
        %v2940 = vpop.trf.xlu0
        %2942 = vrot.lane.b32.xlu0 %v2839, 120
        %v2943 = vpop.permute.xlu0 %2942
        %2945 = vrot.lane.b32.xlu0 %v2839, 112
        %v2946 = vpop.permute.xlu0 %2945
        %2948 = vrot.lane.b32.xlu0 %v2839, 104
        %v2949 = vpop.permute.xlu0 %2948
        %v2951 = vpack.c.bf16 %v2839, %v2839
        %v2952 = vpack.c.bf16 %v2943, %v2943
        %v2953 = vpack.c.bf16 %v2946, %v2946
        %v2954 = vpack.c.bf16 %v2949, %v2949
        %v2955 = vpack.c.bf16 %v2925, %v2925
        %v2956 = vpack.c.bf16 %v2926, %v2926
        %v2957 = vpack.c.bf16 %v2927, %v2927
        %v2958 = vpack.c.bf16 %v2928, %v2928
        %v2959 = vpack.c.bf16 %v2929, %v2929
        %v2960 = vpack.c.bf16 %v2930, %v2930
        %v2961 = vpack.c.bf16 %v2931, %v2931
        %v2962 = vpack.c.bf16 %v2932, %v2932
        %v2964 = vsel %vm655, %v2951, 0
        %v2967 = vsel %vm659, %v2955, 0
        %2969 = vmatprep.subr.bf16.mxu0 0
        %2970 = vmatpush1.bf16.msra.mxu0 0
        %2971 = vmatprep.subr.bf16.mxu0 0
        %2972 = vmatpush1.bf16.msra.mxu0 0
        %2973 = vmatprep.subr.bf16.mxu0 0
        %2974 = vmatpush1.bf16.msra.mxu0 0
        %2975 = vmatprep.subr.bf16.mxu0 0
        %2976 = vmatpush1.bf16.msra.mxu0 0
        %2977 = vmatprep.subr.bf16.mxu0 0
        %2978 = vmatpush1.bf16.msra.mxu0 0
        %2979 = vmatprep.subr.bf16.mxu0 0
        %2980 = vmatpush1.bf16.msra.mxu0 0
        %2981 = vmatprep.subr.bf16.mxu0 0
        %2982 = vmatpush1.bf16.msra.mxu0 0
        %2983 = vmatprep.subr.bf16.mxu0 0
        %2984 = vmatpush1.bf16.msra.mxu0 %v2967
        %2985 = vmatprep.subr.bf16.mxu0 0
        %2986 = vmatpush2.bf16.msra.mxu0 0
        %2987 = vmatprep.subr.bf16.mxu0 0
        %2988 = vmatpush2.bf16.msra.mxu0 0
        %2989 = vmatprep.subr.bf16.mxu0 0
        %2990 = vmatpush2.bf16.msra.mxu0 0
        %2991 = vmatprep.subr.bf16.mxu0 0
        %2992 = vmatpush2.bf16.msra.mxu0 0
        %2993 = vmatprep.subr.bf16.mxu0 0
        %2994 = vmatpush2.bf16.msra.mxu0 0
        %2995 = vmatprep.subr.bf16.mxu0 0
        %2996 = vmatpush2.bf16.msra.mxu0 0
        %2997 = vmatprep.subr.bf16.mxu0 0
        %2998 = vmatpush2.bf16.msra.mxu0 0
        %2999 = vmatprep.subr.bf16.mxu0 0
        %3000 = vmatpush2.bf16.msra.mxu0 0
        %3001 = vmatprep.mubr.bf16.mxu0 0
        %3002 = vmatmul.mubr.bf16.gmra.mxu0 %v2964
        %v3003 = vpop.f32.mrf.mxu0
        %v3004 = vadd.f32 0.0, %v3003
        %v3005 = vpop.f32.mrf.mxu0
        %v3006 = vpop.f32.mrf.mxu0
        %v3007 = vpop.f32.mrf.mxu0
        %3008 = vdwg.mxu0
        %v3010 = vsel %vm655, %v2952, 0
        %v3013 = vsel %vm659, %v2956, 0
        %3015 = vmatprep.subr.bf16.mxu0 0
        %3016 = vmatpush1.bf16.msra.mxu0 0
        %3017 = vmatprep.subr.bf16.mxu0 0
        %3018 = vmatpush1.bf16.msra.mxu0 0
        %3019 = vmatprep.subr.bf16.mxu0 0
        %3020 = vmatpush1.bf16.msra.mxu0 0
        %3021 = vmatprep.subr.bf16.mxu0 0
        %3022 = vmatpush1.bf16.msra.mxu0 0
        %3023 = vmatprep.subr.bf16.mxu0 0
        %3024 = vmatpush1.bf16.msra.mxu0 0
        %3025 = vmatprep.subr.bf16.mxu0 0
        %3026 = vmatpush1.bf16.msra.mxu0 0
        %3027 = vmatprep.subr.bf16.mxu0 0
        %3028 = vmatpush1.bf16.msra.mxu0 0
        %3029 = vmatprep.subr.bf16.mxu0 0
        %3030 = vmatpush1.bf16.msra.mxu0 %v3013
        %3031 = vmatprep.subr.bf16.mxu0 0
        %3032 = vmatpush2.bf16.msra.mxu0 0
        %3033 = vmatprep.subr.bf16.mxu0 0
        %3034 = vmatpush2.bf16.msra.mxu0 0
        %3035 = vmatprep.subr.bf16.mxu0 0
        %3036 = vmatpush2.bf16.msra.mxu0 0
        %3037 = vmatprep.subr.bf16.mxu0 0
        %3038 = vmatpush2.bf16.msra.mxu0 0
        %3039 = vmatprep.subr.bf16.mxu0 0
        %3040 = vmatpush2.bf16.msra.mxu0 0
        %3041 = vmatprep.subr.bf16.mxu0 0
        %3042 = vmatpush2.bf16.msra.mxu0 0
        %3043 = vmatprep.subr.bf16.mxu0 0
        %3044 = vmatpush2.bf16.msra.mxu0 0
        %3045 = vmatprep.subr.bf16.mxu0 0
        %3046 = vmatpush2.bf16.msra.mxu0 0
        %3047 = vmatprep.mubr.bf16.mxu0 0
        %3048 = vmatmul.mubr.bf16.gmra.mxu0 %v3010
        %v3049 = vpop.f32.mrf.mxu0
        %v3050 = vadd.f32 0.0, %v3049
        %v3051 = vpop.f32.mrf.mxu0
        %v3052 = vpop.f32.mrf.mxu0
        %v3053 = vpop.f32.mrf.mxu0
        %3054 = vdwg.mxu0
        %v3056 = vsel %vm655, %v2953, 0
        %v3059 = vsel %vm659, %v2957, 0
        %3061 = vmatprep.subr.bf16.mxu0 0
        %3062 = vmatpush1.bf16.msra.mxu0 0
        %3063 = vmatprep.subr.bf16.mxu0 0
        %3064 = vmatpush1.bf16.msra.mxu0 0
        %3065 = vmatprep.subr.bf16.mxu0 0
        %3066 = vmatpush1.bf16.msra.mxu0 0
        %3067 = vmatprep.subr.bf16.mxu0 0
        %3068 = vmatpush1.bf16.msra.mxu0 0
        %3069 = vmatprep.subr.bf16.mxu0 0
        %3070 = vmatpush1.bf16.msra.mxu0 0
        %3071 = vmatprep.subr.bf16.mxu0 0
        %3072 = vmatpush1.bf16.msra.mxu0 0
        %3073 = vmatprep.subr.bf16.mxu0 0
        %3074 = vmatpush1.bf16.msra.mxu0 0
        %3075 = vmatprep.subr.bf16.mxu0 0
        %3076 = vmatpush1.bf16.msra.mxu0 %v3059
        %3077 = vmatprep.subr.bf16.mxu0 0
        %3078 = vmatpush2.bf16.msra.mxu0 0
        %3079 = vmatprep.subr.bf16.mxu0 0
        %3080 = vmatpush2.bf16.msra.mxu0 0
        %3081 = vmatprep.subr.bf16.mxu0 0
        %3082 = vmatpush2.bf16.msra.mxu0 0
        %3083 = vmatprep.subr.bf16.mxu0 0
        %3084 = vmatpush2.bf16.msra.mxu0 0
        %3085 = vmatprep.subr.bf16.mxu0 0
        %3086 = vmatpush2.bf16.msra.mxu0 0
        %3087 = vmatprep.subr.bf16.mxu0 0
        %3088 = vmatpush2.bf16.msra.mxu0 0
        %3089 = vmatprep.subr.bf16.mxu0 0
        %3090 = vmatpush2.bf16.msra.mxu0 0
        %3091 = vmatprep.subr.bf16.mxu0 0
        %3092 = vmatpush2.bf16.msra.mxu0 0
        %3093 = vmatprep.mubr.bf16.mxu0 0
        %3094 = vmatmul.mubr.bf16.gmra.mxu0 %v3056
        %v3095 = vpop.f32.mrf.mxu0
        %v3096 = vadd.f32 0.0, %v3095
        %v3097 = vpop.f32.mrf.mxu0
        %v3098 = vpop.f32.mrf.mxu0
        %v3099 = vpop.f32.mrf.mxu0
        %3100 = vdwg.mxu0
        %v3102 = vsel %vm655, %v2954, 0
        %v3105 = vsel %vm659, %v2958, 0
        %3107 = vmatprep.subr.bf16.mxu0 0
        %3108 = vmatpush1.bf16.msra.mxu0 0
        %3109 = vmatprep.subr.bf16.mxu0 0
        %3110 = vmatpush1.bf16.msra.mxu0 0
        %3111 = vmatprep.subr.bf16.mxu0 0
        %3112 = vmatpush1.bf16.msra.mxu0 0
        %3113 = vmatprep.subr.bf16.mxu0 0
        %3114 = vmatpush1.bf16.msra.mxu0 0
        %3115 = vmatprep.subr.bf16.mxu0 0
        %3116 = vmatpush1.bf16.msra.mxu0 0
        %3117 = vmatprep.subr.bf16.mxu0 0
        %3118 = vmatpush1.bf16.msra.mxu0 0
        %3119 = vmatprep.subr.bf16.mxu0 0
        %3120 = vmatpush1.bf16.msra.mxu0 0
        %3121 = vmatprep.subr.bf16.mxu0 0
        %3122 = vmatpush1.bf16.msra.mxu0 %v3105
        %3123 = vmatprep.subr.bf16.mxu0 0
        %3124 = vmatpush2.bf16.msra.mxu0 0
        %3125 = vmatprep.subr.bf16.mxu0 0
        %3126 = vmatpush2.bf16.msra.mxu0 0
        %3127 = vmatprep.subr.bf16.mxu0 0
        %3128 = vmatpush2.bf16.msra.mxu0 0
        %3129 = vmatprep.subr.bf16.mxu0 0
        %3130 = vmatpush2.bf16.msra.mxu0 0
        %3131 = vmatprep.subr.bf16.mxu0 0
        %3132 = vmatpush2.bf16.msra.mxu0 0
        %3133 = vmatprep.subr.bf16.mxu0 0
        %3134 = vmatpush2.bf16.msra.mxu0 0
        %3135 = vmatprep.subr.bf16.mxu0 0
        %3136 = vmatpush2.bf16.msra.mxu0 0
        %3137 = vmatprep.subr.bf16.mxu0 0
        %3138 = vmatpush2.bf16.msra.mxu0 0
        %3139 = vmatprep.mubr.bf16.mxu0 0
        %3140 = vmatmul.mubr.bf16.gmra.mxu0 %v3102
        %v3141 = vpop.f32.mrf.mxu0
        %v3142 = vadd.f32 0.0, %v3141
        %v3143 = vpop.f32.mrf.mxu0
        %v3144 = vpop.f32.mrf.mxu0
        %v3145 = vpop.f32.mrf.mxu0
        %3146 = vdwg.mxu0
        %v3147 = vmul.f32 %v3004, 0.35355338
        %v3148 = vmul.f32 %v3050, 0.35355338
        %v3149 = vmul.f32 %v3096, 0.35355338
        %v3150 = vmul.f32 %v3142, 0.35355338
        %v3151 = vsel %vm655, %v3147, -inf
        %3152 = vmax.xlane.f32.xlu0 %v3151
        %v3153 = vpop.xlane.xlu0 %3152
        %v3154 = vsel %vm655, %v3148, -inf
        %3155 = vmax.xlane.f32.xlu0 %v3154
        %v3156 = vpop.xlane.xlu0 %3155
        %v3157 = vsel %vm655, %v3149, -inf
        %3158 = vmax.xlane.f32.xlu0 %v3157
        %v3159 = vpop.xlane.xlu0 %3158
        %v3160 = vsel %vm655, %v3150, -inf
        %3161 = vmax.xlane.f32.xlu0 %v3160
        %v3162 = vpop.xlane.xlu0 %3161
        %v3163 = vsub.f32 %v3147, %v3153
        %v3164 = vsub.f32 %v3148, %v3156
        %v3165 = vsub.f32 %v3149, %v3159
        %v3166 = vsub.f32 %v3150, %v3162
        %v3167 = vmul.f32 %v3163, 1.442695
        %v3168 = vpow.pop %v3167
        %v3169 = vmul.f32 %v3164, 1.442695
        %v3170 = vpow.pop %v3169
        %v3171 = vmul.f32 %v3165, 1.442695
        %v3172 = vpow.pop %v3171
        %v3173 = vmul.f32 %v3166, 1.442695
        %v3174 = vpow.pop %v3173
        %v3175 = vsel %vm655, %v3168, 0.0
        %3176 = vadd.xlane.f32.xlu0 %v3175
        %v3177 = vpop.xlane.xlu0 %3176
        %v3178 = vsel %vm655, %v3170, 0.0
        %3179 = vadd.xlane.f32.xlu0 %v3178
        %v3180 = vpop.xlane.xlu0 %3179
        %v3181 = vsel %vm655, %v3172, 0.0
        %3182 = vadd.xlane.f32.xlu0 %v3181
        %v3183 = vpop.xlane.xlu0 %3182
        %v3184 = vsel %vm655, %v3174, 0.0
        %3185 = vadd.xlane.f32.xlu0 %v3184
        %v3186 = vpop.xlane.xlu0 %3185
        %v3187 = vrcp.pop %v3177
        %v3188 = vrcp.pop %v3180
        %v3189 = vrcp.pop %v3183
        %v3190 = vrcp.pop %v3186
        %v3191 = vmul.f32 %v3168, %v3187
        %v3192 = vmul.f32 %v3170, %v3188
        %v3193 = vmul.f32 %v3172, %v3189
        %v3194 = vmul.f32 %v3174, %v3190
        %v3195 = vpack.c.bf16 %v3191, %v3191
        %v3196 = vpack.c.bf16 %v3192, %v3192
        %v3197 = vpack.c.bf16 %v3193, %v3193
        %v3198 = vpack.c.bf16 %v3194, %v3194
        %v3200 = vsel %vm655, %v2959, 0
        %v3203 = vsel %vm655, %v3195, 0
        %3205 = vmatprep.subr.bf16.mxu0 0
        %3206 = vmatpush1.bf16.xpose.msra.mxu0 0
        %3207 = vmatprep.subr.bf16.mxu0 0
        %3208 = vmatpush1.bf16.xpose.msra.mxu0 0
        %3209 = vmatprep.subr.bf16.mxu0 0
        %3210 = vmatpush1.bf16.xpose.msra.mxu0 0
        %3211 = vmatprep.subr.bf16.mxu0 0
        %3212 = vmatpush1.bf16.xpose.msra.mxu0 0
        %3213 = vmatprep.subr.bf16.mxu0 0
        %3214 = vmatpush1.bf16.xpose.msra.mxu0 0
        %3215 = vmatprep.subr.bf16.mxu0 0
        %3216 = vmatpush1.bf16.xpose.msra.mxu0 0
        %3217 = vmatprep.subr.bf16.mxu0 0
        %3218 = vmatpush1.bf16.xpose.msra.mxu0 0
        %3219 = vmatprep.subr.bf16.mxu0 0
        %3220 = vmatpush1.bf16.xpose.msra.mxu0 %v3203
        %3221 = vmatprep.subr.bf16.mxu0 0
        %3222 = vmatpush2.bf16.xpose.msra.mxu0 0
        %3223 = vmatprep.subr.bf16.mxu0 0
        %3224 = vmatpush2.bf16.xpose.msra.mxu0 0
        %3225 = vmatprep.subr.bf16.mxu0 0
        %3226 = vmatpush2.bf16.xpose.msra.mxu0 0
        %3227 = vmatprep.subr.bf16.mxu0 0
        %3228 = vmatpush2.bf16.xpose.msra.mxu0 0
        %3229 = vmatprep.subr.bf16.mxu0 0
        %3230 = vmatpush2.bf16.xpose.msra.mxu0 0
        %3231 = vmatprep.subr.bf16.mxu0 0
        %3232 = vmatpush2.bf16.xpose.msra.mxu0 0
        %3233 = vmatprep.subr.bf16.mxu0 0
        %3234 = vmatpush2.bf16.xpose.msra.mxu0 0
        %3235 = vmatprep.subr.bf16.mxu0 0
        %3236 = vmatpush2.bf16.xpose.msra.mxu0 0
        %3237 = vmatprep.mubr.bf16.mxu0 0
        %3238 = vmatmul.mubr.bf16.gmra.mxu0 %v3200
        %v3239 = vpop.f32.mrf.mxu0
        %v3240 = vadd.f32 0.0, %v3239
        %v3241 = vpop.f32.mrf.mxu0
        %v3242 = vpop.f32.mrf.mxu0
        %v3243 = vpop.f32.mrf.mxu0
        %3244 = vdwg.mxu0
        %v3246 = vsel %vm655, %v2960, 0
        %v3249 = vsel %vm655, %v3196, 0
        %3251 = vmatprep.subr.bf16.mxu0 0
        %3252 = vmatpush1.bf16.xpose.msra.mxu0 0
        %3253 = vmatprep.subr.bf16.mxu0 0
        %3254 = vmatpush1.bf16.xpose.msra.mxu0 0
        %3255 = vmatprep.subr.bf16.mxu0 0
        %3256 = vmatpush1.bf16.xpose.msra.mxu0 0
        %3257 = vmatprep.subr.bf16.mxu0 0
        %3258 = vmatpush1.bf16.xpose.msra.mxu0 0
        %3259 = vmatprep.subr.bf16.mxu0 0
        %3260 = vmatpush1.bf16.xpose.msra.mxu0 0
        %3261 = vmatprep.subr.bf16.mxu0 0
        %3262 = vmatpush1.bf16.xpose.msra.mxu0 0
        %3263 = vmatprep.subr.bf16.mxu0 0
        %3264 = vmatpush1.bf16.xpose.msra.mxu0 0
        %3265 = vmatprep.subr.bf16.mxu0 0
        %3266 = vmatpush1.bf16.xpose.msra.mxu0 %v3249
        %3267 = vmatprep.subr.bf16.mxu0 0
        %3268 = vmatpush2.bf16.xpose.msra.mxu0 0
        %3269 = vmatprep.subr.bf16.mxu0 0
        %3270 = vmatpush2.bf16.xpose.msra.mxu0 0
        %3271 = vmatprep.subr.bf16.mxu0 0
        %3272 = vmatpush2.bf16.xpose.msra.mxu0 0
        %3273 = vmatprep.subr.bf16.mxu0 0
        %3274 = vmatpush2.bf16.xpose.msra.mxu0 0
        %3275 = vmatprep.subr.bf16.mxu0 0
        %3276 = vmatpush2.bf16.xpose.msra.mxu0 0
        %3277 = vmatprep.subr.bf16.mxu0 0
        %3278 = vmatpush2.bf16.xpose.msra.mxu0 0
        %3279 = vmatprep.subr.bf16.mxu0 0
        %3280 = vmatpush2.bf16.xpose.msra.mxu0 0
        %3281 = vmatprep.subr.bf16.mxu0 0
        %3282 = vmatpush2.bf16.xpose.msra.mxu0 0
        %3283 = vmatprep.mubr.bf16.mxu0 0
        %3284 = vmatmul.mubr.bf16.gmra.mxu0 %v3246
        %v3285 = vpop.f32.mrf.mxu0
        %v3286 = vadd.f32 0.0, %v3285
        %v3287 = vpop.f32.mrf.mxu0
        %v3288 = vpop.f32.mrf.mxu0
        %v3289 = vpop.f32.mrf.mxu0
        %3290 = vdwg.mxu0
        %v3292 = vsel %vm655, %v2961, 0
        %v3295 = vsel %vm655, %v3197, 0
        %3297 = vmatprep.subr.bf16.mxu0 0
        %3298 = vmatpush1.bf16.xpose.msra.mxu0 0
        %3299 = vmatprep.subr.bf16.mxu0 0
        %3300 = vmatpush1.bf16.xpose.msra.mxu0 0
        %3301 = vmatprep.subr.bf16.mxu0 0
        %3302 = vmatpush1.bf16.xpose.msra.mxu0 0
        %3303 = vmatprep.subr.bf16.mxu0 0
        %3304 = vmatpush1.bf16.xpose.msra.mxu0 0
        %3305 = vmatprep.subr.bf16.mxu0 0
        %3306 = vmatpush1.bf16.xpose.msra.mxu0 0
        %3307 = vmatprep.subr.bf16.mxu0 0
        %3308 = vmatpush1.bf16.xpose.msra.mxu0 0
        %3309 = vmatprep.subr.bf16.mxu0 0
        %3310 = vmatpush1.bf16.xpose.msra.mxu0 0
        %3311 = vmatprep.subr.bf16.mxu0 0
        %3312 = vmatpush1.bf16.xpose.msra.mxu0 %v3295
        %3313 = vmatprep.subr.bf16.mxu0 0
        %3314 = vmatpush2.bf16.xpose.msra.mxu0 0
        %3315 = vmatprep.subr.bf16.mxu0 0
        %3316 = vmatpush2.bf16.xpose.msra.mxu0 0
        %3317 = vmatprep.subr.bf16.mxu0 0
        %3318 = vmatpush2.bf16.xpose.msra.mxu0 0
        %3319 = vmatprep.subr.bf16.mxu0 0
        %3320 = vmatpush2.bf16.xpose.msra.mxu0 0
        %3321 = vmatprep.subr.bf16.mxu0 0
        %3322 = vmatpush2.bf16.xpose.msra.mxu0 0
        %3323 = vmatprep.subr.bf16.mxu0 0
        %3324 = vmatpush2.bf16.xpose.msra.mxu0 0
        %3325 = vmatprep.subr.bf16.mxu0 0
        %3326 = vmatpush2.bf16.xpose.msra.mxu0 0
        %3327 = vmatprep.subr.bf16.mxu0 0
        %3328 = vmatpush2.bf16.xpose.msra.mxu0 0
        %3329 = vmatprep.mubr.bf16.mxu0 0
        %3330 = vmatmul.mubr.bf16.gmra.mxu0 %v3292
        %v3331 = vpop.f32.mrf.mxu0
        %v3332 = vadd.f32 0.0, %v3331
        %v3333 = vpop.f32.mrf.mxu0
        %v3334 = vpop.f32.mrf.mxu0
        %v3335 = vpop.f32.mrf.mxu0
        %3336 = vdwg.mxu0
        %v3338 = vsel %vm655, %v2962, 0
        %v3341 = vsel %vm655, %v3198, 0
        %3343 = vmatprep.subr.bf16.mxu0 0
        %3344 = vmatpush1.bf16.xpose.msra.mxu0 0
        %3345 = vmatprep.subr.bf16.mxu0 0
        %3346 = vmatpush1.bf16.xpose.msra.mxu0 0
        %3347 = vmatprep.subr.bf16.mxu0 0
        %3348 = vmatpush1.bf16.xpose.msra.mxu0 0
        %3349 = vmatprep.subr.bf16.mxu0 0
        %3350 = vmatpush1.bf16.xpose.msra.mxu0 0
        %3351 = vmatprep.subr.bf16.mxu0 0
        %3352 = vmatpush1.bf16.xpose.msra.mxu0 0
        %3353 = vmatprep.subr.bf16.mxu0 0
        %3354 = vmatpush1.bf16.xpose.msra.mxu0 0
        %3355 = vmatprep.subr.bf16.mxu0 0
        %3356 = vmatpush1.bf16.xpose.msra.mxu0 0
        %3357 = vmatprep.subr.bf16.mxu0 0
        %3358 = vmatpush1.bf16.xpose.msra.mxu0 %v3341
        %3359 = vmatprep.subr.bf16.mxu0 0
        %3360 = vmatpush2.bf16.xpose.msra.mxu0 0
        %3361 = vmatprep.subr.bf16.mxu0 0
        %3362 = vmatpush2.bf16.xpose.msra.mxu0 0
        %3363 = vmatprep.subr.bf16.mxu0 0
        %3364 = vmatpush2.bf16.xpose.msra.mxu0 0
        %3365 = vmatprep.subr.bf16.mxu0 0
        %3366 = vmatpush2.bf16.xpose.msra.mxu0 0
        %3367 = vmatprep.subr.bf16.mxu0 0
        %3368 = vmatpush2.bf16.xpose.msra.mxu0 0
        %3369 = vmatprep.subr.bf16.mxu0 0
        %3370 = vmatpush2.bf16.xpose.msra.mxu0 0
        %3371 = vmatprep.subr.bf16.mxu0 0
        %3372 = vmatpush2.bf16.xpose.msra.mxu0 0
        %3373 = vmatprep.subr.bf16.mxu0 0
        %3374 = vmatpush2.bf16.xpose.msra.mxu0 0
        %3375 = vmatprep.mubr.bf16.mxu0 0
        %3376 = vmatmul.mubr.bf16.gmra.mxu0 %v3338
        %v3377 = vpop.f32.mrf.mxu0
        %v3378 = vadd.f32 0.0, %v3377
        %v3379 = vpop.f32.mrf.mxu0
        %v3380 = vpop.f32.mrf.mxu0
        %v3381 = vpop.f32.mrf.mxu0
        %3382 = vdwg.mxu0
        %3383 = vxpose.xlu0.b32.start [1/16] %v3240, 128
        %3384 = vxpose.xlu0.b32.cont [2/16] %v3286, 128
        %3385 = vxpose.xlu0.b32.cont [3/16] %v3332, 128
        %3386 = vxpose.xlu0.b32.cont [4/16] %v3378, 128
        %3387 = vxpose.xlu0.b32.cont [5/16] 0.0, 128
        %3388 = vxpose.xlu0.b32.cont [6/16] 0.0, 128
        %3389 = vxpose.xlu0.b32.cont [7/16] 0.0, 128
        %3390 = vxpose.xlu0.b32.cont [8/16] 0.0, 128
        %3391 = vxpose.xlu0.b32.cont [9/16] 0.0, 128
        %3392 = vxpose.xlu0.b32.cont [10/16] 0.0, 128
        %3393 = vxpose.xlu0.b32.cont [11/16] 0.0, 128
        %3394 = vxpose.xlu0.b32.cont [12/16] 0.0, 128
        %3395 = vxpose.xlu0.b32.cont [13/16] 0.0, 128
        %3396 = vxpose.xlu0.b32.cont [14/16] 0.0, 128
        %3397 = vxpose.xlu0.b32.cont [15/16] 0.0, 128
        %3398 = vxpose.xlu0.b32.end [16/16] 0.0, 128
        %v3399 = vpop.trf.xlu0
        %v3400 = vpop.trf.xlu0
        %v3401 = vpop.trf.xlu0
        %v3402 = vpop.trf.xlu0
        %v3403 = vpop.trf.xlu0
        %v3404 = vpop.trf.xlu0
        %v3405 = vpop.trf.xlu0
        %v3406 = vpop.trf.xlu0
        %v3407 = vpop.trf.xlu0
        %v3408 = vpop.trf.xlu0
        %v3409 = vpop.trf.xlu0
        %v3410 = vpop.trf.xlu0
        %v3411 = vpop.trf.xlu0
        %v3412 = vpop.trf.xlu0
        %v3413 = vpop.trf.xlu0
        %v3414 = vpop.trf.xlu0
        %s3415 = scalar_lea.vmem [#allocation7], 16
        %v3416 = vld [vmem:[%s3415] sm:$0xf]
        %v3417 = vld [vmem:[%s3415 + $0x4] sm:$0xf]
        %v3418 = vld [vmem:[%s3415 + $0x8] sm:$0xf]
        %v3419 = vld [vmem:[%s3415 + $0xc] sm:$0xf]
        %v3420 = vpack.c.bf16 %v3399, %v3399
        %v3421 = vlaneseq
        %v3422 = vshrl.u32 %v3421, 7
        %v3423 = vsub.s32 2, %v3422
        %v3424 = vrot.slane %v2107, %v3423
        %v3429 = vunpack.c.l.b16 %v3416
        %v3430 = vunpack.c.l.b16 %v3417
        %v3431 = vunpack.c.l.b16 %v3418
        %v3432 = vunpack.c.l.b16 %v3419
        %v3433 = vpack.c.b16 %v3430, %v3429
        %v3434 = vpack.c.b16 %v3432, %v3431
        %v3438 = vsel %vm557, %v3420, 0
        %3440 = vmatprep.subr.bf16.mxu0 0
        %3441 = vmatpush1.bf16.msra.mxu0 0
        %3442 = vmatprep.subr.bf16.mxu0 0
        %3443 = vmatpush1.bf16.msra.mxu0 0
        %3444 = vmatprep.subr.bf16.mxu0 0
        %3445 = vmatpush1.bf16.msra.mxu0 0
        %3446 = vmatprep.subr.bf16.mxu0 0
        %3447 = vmatpush1.bf16.msra.mxu0 0
        %3448 = vmatprep.subr.bf16.mxu0 0
        %3449 = vmatpush1.bf16.msra.mxu0 0
        %3450 = vmatprep.subr.bf16.mxu0 0
        %3451 = vmatpush1.bf16.msra.mxu0 0
        %3452 = vmatprep.subr.bf16.mxu0 0
        %3453 = vmatpush1.bf16.msra.mxu0 %v3434
        %3454 = vmatprep.subr.bf16.mxu0 0
        %3455 = vmatpush1.bf16.msra.mxu0 %v3433
        %3456 = vmatprep.subr.bf16.mxu0 0
        %3457 = vmatpush2.bf16.msra.mxu0 0
        %3458 = vmatprep.subr.bf16.mxu0 0
        %3459 = vmatpush2.bf16.msra.mxu0 0
        %3460 = vmatprep.subr.bf16.mxu0 0
        %3461 = vmatpush2.bf16.msra.mxu0 0
        %3462 = vmatprep.subr.bf16.mxu0 0
        %3463 = vmatpush2.bf16.msra.mxu0 0
        %3464 = vmatprep.subr.bf16.mxu0 0
        %3465 = vmatpush2.bf16.msra.mxu0 0
        %3466 = vmatprep.subr.bf16.mxu0 0
        %3467 = vmatpush2.bf16.msra.mxu0 0
        %3468 = vmatprep.subr.bf16.mxu0 0
        %3469 = vmatpush2.bf16.msra.mxu0 0
        %3470 = vmatprep.subr.bf16.mxu0 0
        %3471 = vmatpush2.bf16.msra.mxu0 0
        %3472 = vmatprep.mubr.bf16.mxu0 0
        %3473 = vmatmul.mubr.bf16.gmra.mxu0 %v3438
        %v3474 = vpop.f32.mrf.mxu0
        %v3475 = vadd.f32 %v3424, %v3474
        %v3476 = vpop.f32.mrf.mxu0
        %v3477 = vpop.f32.mrf.mxu0
        %v3478 = vpop.f32.mrf.mxu0
        %3479 = vdwg.mxu0
        %v3480 = vadd.f32 %v2778, %v3475
        %v3481 = vsel %vm557, %v3480, 0.0
        %3482 = vadd.xlane.f32.xlu0 %v3481
        %v3483 = vpop.xlane.xlu0 %3482
        %v3484 = vmul.f32 %v3483, %v1181
        %v3485 = vmul.f32 %v3480, %v3480
        %v3486 = vsel %vm557, %v3485, 0.0
        %3487 = vadd.xlane.f32.xlu0 %v3486
        %v3488 = vpop.xlane.xlu0 %3487
        %v3489 = vmul.f32 %v3488, %v1181
        %v3490 = vmul.f32 %v3484, %v3484
        %v3491 = vsub.f32 %v3489, %v3490
        %v3492 = vsub.f32 %v3480, %v3484
        %v3493 = vadd.f32 %v3491, 1e-05
        %v3494 = vrsqrt.pop %v3493
        %v3495 = vmul.f32 %v3492, %v3494
        %v3496 = vlaneseq
        %v3497 = vshrl.u32 %v3496, 7
        %v3498 = vsub.s32 6, %v3497
        %v3499 = vrot.slane %v2107, %v3498
        %v3500 = vmul.f32 %v3495, %v3499
        %v3501 = vlaneseq
        %v3502 = vshrl.u32 %v3501, 7
        %v3503 = vsub.s32 7, %v3502
        %v3504 = vrot.slane %v2107, %v3503
        %v3505 = vadd.f32 %v3500, %v3504
        %s3506 = scalar_lea.vmem [#allocation8], 16
        %v3507 = vld [vmem:[%s3506] sm:$0xf]
        %v3508 = vld [vmem:[%s3506 + $0x4] sm:$0xf]
        %v3509 = vld [vmem:[%s3506 + $0x8] sm:$0xf]
        %v3510 = vld [vmem:[%s3506 + $0xc] sm:$0xf]
        %v3511 = vpack.c.bf16 %v3505, %v3505
        %s3512 = scalar_lea.vmem %s11, 1
        %v3513 = vld [vmem:[%s3512] sm:$0x1]
        %v3515 = vlaneseq
        %v3516 = vshrl.u32 %v3515, 7
        %v3517 = vsub.s32 0, %v3516
        %v3518 = vrot.slane %v3513, %v3517
        %v3524 = vunpack.c.l.b16 %v3507
        %v3525 = vunpack.c.l.b16 %v3508
        %v3526 = vunpack.c.l.b16 %v3509
        %v3527 = vunpack.c.l.b16 %v3510
        %v3528 = vpack.c.b16 %v3525, %v3524
        %v3529 = vpack.c.b16 %v3527, %v3526
        %v3533 = vsel %vm557, %v3511, 0
        %3535 = vmatprep.subr.bf16.mxu0 0
        %3536 = vmatpush1.bf16.msra.mxu0 0
        %3537 = vmatprep.subr.bf16.mxu0 0
        %3538 = vmatpush1.bf16.msra.mxu0 0
        %3539 = vmatprep.subr.bf16.mxu0 0
        %3540 = vmatpush1.bf16.msra.mxu0 0
        %3541 = vmatprep.subr.bf16.mxu0 0
        %3542 = vmatpush1.bf16.msra.mxu0 0
        %3543 = vmatprep.subr.bf16.mxu0 0
        %3544 = vmatpush1.bf16.msra.mxu0 0
        %3545 = vmatprep.subr.bf16.mxu0 0
        %3546 = vmatpush1.bf16.msra.mxu0 0
        %3547 = vmatprep.subr.bf16.mxu0 0
        %3548 = vmatpush1.bf16.msra.mxu0 %v3529
        %3549 = vmatprep.subr.bf16.mxu0 0
        %3550 = vmatpush1.bf16.msra.mxu0 %v3528
        %3551 = vmatprep.subr.bf16.mxu0 0
        %3552 = vmatpush2.bf16.msra.mxu0 0
        %3553 = vmatprep.subr.bf16.mxu0 0
        %3554 = vmatpush2.bf16.msra.mxu0 0
        %3555 = vmatprep.subr.bf16.mxu0 0
        %3556 = vmatpush2.bf16.msra.mxu0 0
        %3557 = vmatprep.subr.bf16.mxu0 0
        %3558 = vmatpush2.bf16.msra.mxu0 0
        %3559 = vmatprep.subr.bf16.mxu0 0
        %3560 = vmatpush2.bf16.msra.mxu0 0
        %3561 = vmatprep.subr.bf16.mxu0 0
        %3562 = vmatpush2.bf16.msra.mxu0 0
        %3563 = vmatprep.subr.bf16.mxu0 0
        %3564 = vmatpush2.bf16.msra.mxu0 0
        %3565 = vmatprep.subr.bf16.mxu0 0
        %3566 = vmatpush2.bf16.msra.mxu0 0
        %3567 = vmatprep.mubr.bf16.mxu0 0
        %3568 = vmatmul.mubr.bf16.gmra.mxu0 %v3533
        %v3569 = vpop.f32.mrf.mxu0
        %v3570 = vadd.f32 %v3518, %v3569
        %v3571 = vpop.f32.mrf.mxu0
        %v3572 = vpop.f32.mrf.mxu0
        %v3573 = vpop.f32.mrf.mxu0
        %3574 = vdwg.mxu0
        %v3575 = vmax.f32 %v3570, 0.0
        %s3576 = scalar_lea.vmem %s8, 32
        %v3577 = vld [vmem:[%s3576] sm:$0xf]
        %v3578 = vld [vmem:[%s3576 + $0x4] sm:$0xf]
        %v3579 = vld [vmem:[%s3576 + $0x8] sm:$0xf]
        %v3580 = vld [vmem:[%s3576 + $0xc] sm:$0xf]
        %v3581 = vld [vmem:[%s3576 + $0x10] sm:$0xf]
        %v3582 = vld [vmem:[%s3576 + $0x14] sm:$0xf]
        %v3583 = vld [vmem:[%s3576 + $0x18] sm:$0xf]
        %v3584 = vld [vmem:[%s3576 + $0x1c] sm:$0xf]
        %v3585 = vpack.c.bf16 %v3575, %v3575
        %v3586 = vlaneseq
        %v3587 = vshrl.u32 %v3586, 7
        %v3588 = vsub.s32 3, %v3587
        %v3589 = vrot.slane %v2107, %v3588
        %v3598 = vunpack.c.l.b16 %v3577
        %v3599 = vunpack.c.l.b16 %v3578
        %v3600 = vunpack.c.l.b16 %v3579
        %v3601 = vunpack.c.l.b16 %v3580
        %v3602 = vunpack.c.l.b16 %v3581
        %v3603 = vunpack.c.l.b16 %v3582
        %v3604 = vunpack.c.l.b16 %v3583
        %v3605 = vunpack.c.l.b16 %v3584
        %v3606 = vpack.c.b16 %v3599, %v3598
        %v3607 = vpack.c.b16 %v3601, %v3600
        %v3608 = vpack.c.b16 %v3603, %v3602
        %v3609 = vpack.c.b16 %v3605, %v3604
        %v3615 = vsel %vm2036, %v3585, 0
        %3617 = vmatprep.subr.bf16.mxu0 0
        %3618 = vmatpush1.bf16.msra.mxu0 0
        %3619 = vmatprep.subr.bf16.mxu0 0
        %3620 = vmatpush1.bf16.msra.mxu0 0
        %3621 = vmatprep.subr.bf16.mxu0 0
        %3622 = vmatpush1.bf16.msra.mxu0 0
        %3623 = vmatprep.subr.bf16.mxu0 0
        %3624 = vmatpush1.bf16.msra.mxu0 0
        %3625 = vmatprep.subr.bf16.mxu0 0
        %3626 = vmatpush1.bf16.msra.mxu0 %v3609
        %3627 = vmatprep.subr.bf16.mxu0 0
        %3628 = vmatpush1.bf16.msra.mxu0 %v3608
        %3629 = vmatprep.subr.bf16.mxu0 0
        %3630 = vmatpush1.bf16.msra.mxu0 %v3607
        %3631 = vmatprep.subr.bf16.mxu0 0
        %3632 = vmatpush1.bf16.msra.mxu0 %v3606
        %3633 = vmatprep.subr.bf16.mxu0 0
        %3634 = vmatpush2.bf16.msra.mxu0 0
        %3635 = vmatprep.subr.bf16.mxu0 0
        %3636 = vmatpush2.bf16.msra.mxu0 0
        %3637 = vmatprep.subr.bf16.mxu0 0
        %3638 = vmatpush2.bf16.msra.mxu0 0
        %3639 = vmatprep.subr.bf16.mxu0 0
        %3640 = vmatpush2.bf16.msra.mxu0 0
        %3641 = vmatprep.subr.bf16.mxu0 0
        %3642 = vmatpush2.bf16.msra.mxu0 0
        %3643 = vmatprep.subr.bf16.mxu0 0
        %3644 = vmatpush2.bf16.msra.mxu0 0
        %3645 = vmatprep.subr.bf16.mxu0 0
        %3646 = vmatpush2.bf16.msra.mxu0 0
        %3647 = vmatprep.subr.bf16.mxu0 0
        %3648 = vmatpush2.bf16.msra.mxu0 0
        %3649 = vmatprep.mubr.bf16.mxu0 0
        %3650 = vmatmul.mubr.bf16.gmra.mxu0 %v3615
        %v3651 = vpop.f32.mrf.mxu0
        %v3652 = vadd.f32 %v3589, %v3651
        %v3653 = vpop.f32.mrf.mxu0
        %v3654 = vpop.f32.mrf.mxu0
        %v3655 = vpop.f32.mrf.mxu0
        %3656 = vdwg.mxu0
        %v3657 = vadd.f32 %v3505, %v3652
        %v3658 = vsel %vm557, %v3657, 0.0
        %3659 = vadd.xlane.f32.xlu0 %v3658
        %v3660 = vpop.xlane.xlu0 %3659
        %v3661 = vmul.f32 %v3660, %v1181
        %v3662 = vmul.f32 %v3657, %v3657
        %v3663 = vsel %vm557, %v3662, 0.0
        %3664 = vadd.xlane.f32.xlu0 %v3663
        %v3665 = vpop.xlane.xlu0 %3664
        %v3666 = vmul.f32 %v3665, %v1181
        %v3667 = vmul.f32 %v3661, %v3661
        %v3668 = vsub.f32 %v3666, %v3667
        %v3669 = vsub.f32 %v3657, %v3661
        %v3670 = vadd.f32 %v3668, 1e-05
        %v3671 = vrsqrt.pop %v3670
        %v3672 = vmul.f32 %v3669, %v3671
        %v3673 = vlaneseq
        %v3674 = vshrl.u32 %v3673, 7
        %v3675 = vsub.s32 0, %v3674
        %v3676 = vrot.slane %v2108, %v3675
        %v3677 = vmul.f32 %v3672, %v3676
        %v3678 = vlaneseq
        %v3679 = vshrl.u32 %v3678, 7
        %v3680 = vsub.s32 1, %v3679
        %v3681 = vrot.slane %v2108, %v3680
        %v3682 = vadd.f32 %v3677, %v3681
        %3683 = vst.msk [vmem:[%s521] sm:$0xff] %vm557, %v3682
        %s3684 = sand.u32 %s325, 1
        %s3685 = scalar_lea.sflag [#allocation4], %s3684
        %s3686 = sand.u32 %s325, 1
        %s3687 = smul.addr %s3686, 8
        %s3688 = scalar_lea.vmem [#allocation10], %s3687
        // Predicated region
        $region89: #{tpu_custom_call.1} parent=71 // pred_check
          %p3689 = pneg %p335
        $region90: #{tpu_custom_call.1} parent=71 // pred_check_branch
          %3691 = sbr.rel (%p3689) target = $region92
        $region91: #{tpu_custom_call.1} parent=71 // pred_region
          %s3693 = ssub.s32 128, 128
          %3694 = vsyncadd %s3685, %s3693
          %s3695 = smul.addr %s34, 128
          %s3696 = scalar_lea.hbm %s13, %s3695
          %s3698 = sshll.u32 %s3688, 4
          %s3699 = int_to_ptr.vmem [resolvable:$true] %s3698
          %3701 = dma.vmem_to_hbm [thread:$0]  %s3699, 128, %s3696, %s3685
        $region92: #{tpu_custom_call.1} parent=71 // pred_fallthru
          _
      $region72: #{tpu_custom_call.1} parent=5 // pred_fallthru
        _
      %p3702 = scmp.le.s32.totalorder 2, %s29
      // Predicated region
      $region93: #{tpu_custom_call.1} parent=5 // pred_check
        %p3703 = pneg %p3702
      $region94: #{tpu_custom_call.1} parent=5 // pred_check_branch
        %3705 = sbr.rel (%p3703) target = $region96
      $region95: #{tpu_custom_call.1} parent=5 // pred_region
        %s3706 = ssub.s32 %s29, 2
        // Predicated region
        $region97: #{tpu_custom_call.1} parent=95 // pred_check
          %p3707 = pneg %p341
        $region98: #{tpu_custom_call.1} parent=95 // pred_check_branch
          %3709 = sbr.rel (%p3707) target = $region100
        $region99: #{tpu_custom_call.1} parent=95 // pred_region
          %s3710 = sand.u32 %s326, 1
          %s3711 = scalar_lea.sflag [#allocation4], %s3710
          %s3712 = sand.u32 %s326, 1
          %s3713 = smul.addr %s3712, 8
          %s3714 = scalar_lea.vmem [#allocation10], %s3713
          %3715 = dma.done %s3711, 128
        $region100: #{tpu_custom_call.1} parent=95 // pred_fallthru
          _
      $region96: #{tpu_custom_call.1} parent=5 // pred_fallthru
        _
    $region6: #{tpu_custom_call.1} parent=1 // loop_footer
      %s33 = sadd.s32 1, %s29
    $region7: #{tpu_custom_call.1} parent=1 // loop_footer_branch
      %28 = sbr.rel target = $region3
    $region8: #{tpu_custom_call.1} parent=1 // loop_exit
      _
    %3716 = vsyncpa [#allocation3], 1
    %s3717 = scalar_lea.sflag [#allocation3], 1
    %3718 = vsyncpa %s3717, 1
    %3719 = vsyncpa [#allocation6], 1
    %s3720 = scalar_lea.sflag [#allocation6], 1
    %3721 = vsyncpa %s3720, 1
    %3722 = vsyncpa [#allocation9], 1
    %3723 = vsyncpa [#allocation4], 1
    %s3724 = scalar_lea.sflag [#allocation4], 1
    %3725 = vsyncpa %s3724, 1

</llo_original>
